<compile_context>
chip_gen: v5e
topology: v5e:2x2
jax: 0.10.0
libtpu: 0.0.40
codegen_flags: <defaults>
</compile_context>

<pallas_src>
import functools

import jax
import jax.numpy as jnp
from jax import lax
from jax.experimental import pallas as pl
from jax.experimental.pallas import tpu as pltpu

LANE = 128
SUBLANE = 8


def _round_up(x, m):
    return (x + m - 1) // m * m


def _pick_tile_t(T, cap=16):
    # Largest divisor of T that is <= cap (keeps the per-tile VMEM footprint
    # bounded while still amortizing the hoisted input-projection matmul).
    for cand in range(min(T, cap), 0, -1):
        if T % cand == 0:
            return cand
    return 1


# ----------------------------- GRU tile kernel -------------------------------
def _gru_tile_kernel(*refs, fuse_fc):
    if fuse_fc:
        (x_ref, wih_ref, whh_ref, bx_ref, bhn_ref,
         fcw_ref, fcb_ref, out_ref, h_ref, hbuf_ref) = refs
    else:
        (x_ref, wih_ref, whh_ref, bx_ref, bhn_ref,
         out_ref, h_ref, hbuf_ref) = refs
        fcw_ref = fcb_ref = None

    tile_t, Bp, Iin = x_ref.shape
    Hp = whh_ref.shape[0]

    @pl.when(pl.program_id(0) == 0)
    def _init():
        h_ref[...] = jnp.zeros_like(h_ref)

    # ---- Phase 1: hoisted input projection, one big MXU matmul per tile ----
    # bias bx already contains (b_ir + b_hr, b_iz + b_hz, b_in).
    xp = jnp.dot(x_ref[...].reshape(tile_t * Bp, Iin), wih_ref[...],
                 preferred_element_type=jnp.float32) + bx_ref[...]
    xp = xp.reshape(tile_t, Bp, 3 * Hp)

    # ---- Phase 2: recurrence, one (Bp,Hp)@(Hp,3Hp) matmul per timestep ----
    whh = whh_ref[...]                                    # (Hp, 3Hp) bf16
    b_hn = jnp.broadcast_to(bhn_ref[...], (Bp, Hp))       # hoisted broadcast
    h = h_ref[...]                                        # (Bp, Hp) f32 carry
    for tt in range(tile_t):   # static unroll; grid axis bounds live ranges
        gh = jnp.dot(h.astype(whh.dtype), whh,
                     preferred_element_type=jnp.float32)  # (Bp, 3Hp)
        xp_t = xp[tt]
        r = jax.nn.sigmoid(xp_t[:, :Hp] + gh[:, :Hp])
        z = jax.nn.sigmoid(xp_t[:, Hp:2 * Hp] + gh[:, Hp:2 * Hp])
        n = jnp.tanh(xp_t[:, 2 * Hp:] + r * (gh[:, 2 * Hp:] + b_hn))
        h = (1.0 - z) * n + z * h
        hbuf_ref[tt] = h
    h_ref[...] = h

    # ---- Phase 3: tile writeback (optionally fused with the fc layer) ----
    if fuse_fc:
        y = jnp.dot(
            hbuf_ref[...].reshape(tile_t * Bp, Hp).astype(fcw_ref.dtype),
            fcw_ref[...], preferred_element_type=jnp.float32)
        y = y + fcb_ref[...]
        out_ref[...] = y.reshape(tile_t, Bp, -1).astype(out_ref.dtype)
    else:
        out_ref[...] = hbuf_ref[...].astype(out_ref.dtype)


_gru_kernel = functools.partial(_gru_tile_kernel, fuse_fc=False)
_gru_kernel_fused_fc = functools.partial(_gru_tile_kernel, fuse_fc=True)


def gru_layer(x_tm, wih, whh, bx, bhn, fc=None):
    # x_tm: (T, Bp, Iin) bf16 time-major, batch padded to a sublane multiple.
    T, Bp, Iin = x_tm.shape
    Hp = whh.shape[0]
    tile_t = _pick_tile_t(T)
    grid = (T // tile_t,)

    in_specs = [
        pl.BlockSpec((tile_t, Bp, Iin), lambda t: (t, 0, 0)),
        pl.BlockSpec((Iin, 3 * Hp), lambda t: (0, 0)),
        pl.BlockSpec((Hp, 3 * Hp), lambda t: (0, 0)),
        pl.BlockSpec((1, 3 * Hp), lambda t: (0, 0)),
        pl.BlockSpec((1, Hp), lambda t: (0, 0)),
    ]
    args = [x_tm, wih, whh, bx, bhn]

    if fc is None:
        kernel = _gru_kernel
        out_feat, out_dtype = Hp, jnp.bfloat16
    else:
        fcw, fcb = fc
        kernel = _gru_kernel_fused_fc
        out_feat, out_dtype = fcw.shape[-1], jnp.float32
        in_specs += [pl.BlockSpec((Hp, out_feat), lambda t: (0, 0)),
                     pl.BlockSpec((1, out_feat), lambda t: (0, 0))]
        args += [fcw, fcb]

    grid_spec = pltpu.PrefetchScalarGridSpec(
        num_scalar_prefetch=0,
        grid=grid,
        in_specs=in_specs,
        out_specs=pl.BlockSpec((tile_t, Bp, out_feat), lambda t: (t, 0, 0)),
        scratch_shapes=[
            pltpu.VMEM((Bp, Hp), jnp.float32),            # persistent h carry
            pltpu.VMEM((tile_t, Bp, Hp), jnp.float32),    # per-tile h buffer
        ],
    )
    return pl.pallas_call(
        kernel,
        out_shape=jax.ShapeDtypeStruct((T, Bp, out_feat), out_dtype),
        grid_spec=grid_spec,
        compiler_params=pltpu.CompilerParams(
            dimension_semantics=("arbitrary",),   # sequential (h carry)
            vmem_limit_bytes=32 * 1024 * 1024),   # portable v5e/v6e/v7x budget
    )(*args)


# ------------------------------ Full forward ---------------------------------
@functools.partial(jax.jit, static_argnames=("output_size",))
def simple_gru_forward(x_bf, packed, *, output_size):
    # x_bf: (B, T, input_size), batch_first like PyTorch.
    B, T, _ = x_bf.shape
    Bp = _round_up(B, SUBLANE)
    # Batch-first -> time-major, batch padded to full sublane group.
    # TODO(synk): fold this transpose/pad (and the output transpose below)
    # into the kernels' index_maps to avoid the extra HBM passes at scale.
    x_tm = jnp.transpose(x_bf, (1, 0, 2))
    x_tm = jnp.pad(x_tm, ((0, 0), (0, Bp - B), (0, 0))).astype(jnp.bfloat16)

    n_layers = len(packed["layers"])
    h = x_tm
    for li, layer in enumerate(packed["layers"]):
        fc = (packed["fc_w"], packed["fc_b"]) if li == n_layers - 1 else None
        h = gru_layer(h, layer["wih"], layer["whh"], layer["bx"],
                      layer["bhn"], fc=fc)
    # h: (T, Bp, Op) f32 -> strip padding, back to batch-first (B, T, O).
    return jnp.transpose(h[:, :B, :output_size], (1, 0, 2))


# ---------------------------- Parameters -------------------------------------
def init_raw_params(key, input_size, hidden_size, output_size, num_layers):
    """Raw PyTorch-layout parameters (f32)."""
    H = hidden_size
    k = 1.0 / float(H) ** 0.5
    layers = []
    for l in range(num_layers):
        in_sz = input_size if l == 0 else H
        key, k1, k2, k3, k4 = jax.random.split(key, 5)
        layers.append({
            "w_ih": jax.random.uniform(k1, (3 * H, in_sz), jnp.float32, -k, k),
            "w_hh": jax.random.uniform(k2, (3 * H, H), jnp.float32, -k, k),
            "b_ih": jax.random.uniform(k3, (3 * H,), jnp.float32, -k, k),
            "b_hh": jax.random.uniform(k4, (3 * H,), jnp.float32, -k, k),
        })
    key, k5, k6 = jax.random.split(key, 3)
    fc_w = jax.random.uniform(k5, (output_size, H), jnp.float32, -k, k)
    fc_b = jax.random.uniform(k6, (output_size,), jnp.float32, -k, k)
    return {"layers": layers, "fc_w": fc_w, "fc_b": fc_b}


def pack_params(raw):
    """Pad/concat/cast raw params into kernel layout (done once, not per call).

    Padding safety: padded gate weight rows/cols and bias lanes are zero, so
    padded pre-activations are 0 -> r=z=0.5, n=0 -> padded h lanes stay exactly
    0 forever and never leak into real lanes (contractions see zero rows).
    """
    H = raw["layers"][0]["w_hh"].shape[1]
    Hp = _round_up(H, LANE)
    O = raw["fc_w"].shape[0]
    Op = _round_up(O, LANE)

    layers = []
    for li, layer in enumerate(raw["layers"]):
        w_ih, w_hh = layer["w_ih"], layer["w_hh"]
        b_ih, b_hh = layer["b_ih"], layer["b_hh"]
        in_sz = w_ih.shape[1]
        # Layer 0 consumes the real input (I features); deeper layers consume
        # the padded hidden state (Hp features) -> pad their contraction rows.
        in_rows = in_sz if li == 0 else Hp
        wi = [jnp.pad(g.T, ((0, in_rows - in_sz), (0, Hp - H)))
              for g in jnp.split(w_ih, 3, axis=0)]        # each (in_rows, Hp)
        wh = [jnp.pad(g.T, ((0, Hp - H), (0, Hp - H)))
              for g in jnp.split(w_hh, 3, axis=0)]        # each (Hp, Hp)
        b_ir, b_iz, b_in = jnp.split(b_ih, 3)
        b_hr, b_hz, b_hn = jnp.split(b_hh, 3)
        padb = lambda b: jnp.pad(b, (0, Hp - H))
        # Fold b_ih fully and b_hr/b_hz into the hoisted projection bias.
        bx = jnp.concatenate([padb(b_ir + b_hr), padb(b_iz + b_hz), padb(b_in)])
        layers.append({
            "wih": jnp.concatenate(wi, axis=1).astype(jnp.bfloat16),  # (in_rows, 3Hp)
            "whh": jnp.concatenate(wh, axis=1).astype(jnp.bfloat16),  # (Hp, 3Hp)
            "bx": bx.reshape(1, 3 * Hp).astype(jnp.float32),
            "bhn": padb(b_hn).reshape(1, Hp).astype(jnp.float32),
        })
    fc_w = jnp.pad(raw["fc_w"].T, ((0, Hp - H), (0, Op - O))).astype(jnp.bfloat16)
    fc_b = jnp.pad(raw["fc_b"], (0, Op - O)).reshape(1, Op).astype(jnp.float32)
    return {"layers": layers, "fc_w": fc_w, "fc_b": fc_b}


# ------------------------------ Pure-JAX reference ---------------------------
def reference_forward(x_bf, raw):
    x_tm = jnp.transpose(x_bf, (1, 0, 2)).astype(jnp.float32)
    B = x_tm.shape[1]
    for layer in raw["layers"]:
        w_ih, w_hh = layer["w_ih"], layer["w_hh"]
        b_ih, b_hh = layer["b_ih"], layer["b_hh"]
        H = w_hh.shape[1]
        w_ir, w_iz, w_in = jnp.split(w_ih, 3, axis=0)
        w_hr, w_hz, w_hn = jnp.split(w_hh, 3, axis=0)
        b_ir, b_iz, b_in = jnp.split(b_ih, 3)
        b_hr, b_hz, b_hn = jnp.split(b_hh, 3)

        def step(h, x_t, w_ir=w_ir, w_iz=w_iz, w_in=w_in, w_hr=w_hr,
                 w_hz=w_hz, w_hn=w_hn, b_ir=b_ir, b_iz=b_iz, b_in=b_in,
                 b_hr=b_hr, b_hz=b_hz, b_hn=b_hn):
            r = jax.nn.sigmoid(x_t @ w_ir.T + b_ir + h @ w_hr.T + b_hr)
            z = jax.nn.sigmoid(x_t @ w_iz.T + b_iz + h @ w_hz.T + b_hz)
            n = jnp.tanh(x_t @ w_in.T + b_in + r * (h @ w_hn.T + b_hn))
            h_new = (1.0 - z) * n + z * h
            return h_new, h_new

        _, x_tm = lax.scan(step, jnp.zeros((B, H), jnp.float32), x_tm)
    out = x_tm @ raw["fc_w"].T + raw["fc_b"]
    return jnp.transpose(out, (1, 0, 2))


if __name__ == "__main__":
    B, T = 2, 8
    input_size, hidden_size, output_size, num_layers = 16, 32, 8, 2

    key = jax.random.PRNGKey(0)
    key, kx, kp = jax.random.split(key, 3)
    x = jax.random.normal(kx, (B, T, input_size), jnp.float32)
    raw = init_raw_params(kp, input_size, hidden_size, output_size, num_layers)
    packed = pack_params(raw)

    out = simple_gru_forward(x, packed, output_size=output_size)
    jax.block_until_ready(out)

    ref = reference_forward(x, raw)
    assert out.shape == (B, T, output_size)
    # bf16 MXU operands (f32 accumulation) -> looser tolerance than pure f32.
    assert jnp.allclose(out, ref, atol=5e-2, rtol=5e-2), "mismatch vs reference"

    print("KERNEL_OK")
</pallas_src>

<mosaic_0001>
module attributes {stable_mosaic.version = 11 : i64} {
  func.func @_gru_tile_kernel(%arg0: i32, %arg1: memref<8x8x16xbf16, #tpu.memory_space<vmem>>, %arg2: memref<16x384xbf16, #tpu.memory_space<vmem>>, %arg3: memref<128x384xbf16, #tpu.memory_space<vmem>>, %arg4: memref<1x384xf32, #tpu.memory_space<vmem>>, %arg5: memref<1x128xf32, #tpu.memory_space<vmem>>, %arg6: memref<8x8x128xbf16, #tpu.memory_space<vmem>>, %arg7: memref<8x128xf32, #tpu.memory_space<vmem>>, %arg8: memref<8x8x128xf32, #tpu.memory_space<vmem>>) attributes {dimension_semantics = [#tpu.dimension_semantics<arbitrary>], iteration_bounds = array<i64: 1>, scalar_prefetch = 0 : i64, scratch_operands = 2 : i64, tpu.core_type = #tpu.core_type<tc>, window_params = [{transform_indices = @transform_0, window_bounds = array<i64: 8, 8, 16>}, {pipeline_mode = #tpu.pipeline_mode<synchronous>, transform_indices = @transform_1, window_bounds = array<i64: 16, 384>}, {pipeline_mode = #tpu.pipeline_mode<synchronous>, transform_indices = @transform_2, window_bounds = array<i64: 128, 384>}, {pipeline_mode = #tpu.pipeline_mode<synchronous>, transform_indices = @transform_3, window_bounds = array<i64: 1, 384>}, {pipeline_mode = #tpu.pipeline_mode<synchronous>, transform_indices = @transform_4, window_bounds = array<i64: 1, 128>}, {transform_indices = @transform_5, window_bounds = array<i64: 8, 8, 128>}]} {
    %c0_i32 = arith.constant 0 : i32
    %0 = arith.cmpi eq, %arg0, %c0_i32 : i32
    %1 = arith.extui %0 : i1 to i32
    %c0_i32_0 = arith.constant 0 : i32
    %2 = arith.cmpi ne, %1, %c0_i32_0 : i32
    scf.if %2 {
      %cst_70 = arith.constant 0.000000e+00 : f32
      %292 = vector.broadcast %cst_70 : f32 to vector<8x128xf32>
      %c0_71 = arith.constant 0 : index
      %c0_72 = arith.constant 0 : index
      %293 = vector.load %arg7[%c0_71, %c0_72] : memref<8x128xf32, #tpu.memory_space<vmem>>, vector<8x128xf32>
      tpu.vector_store %arg7[%c0_71, %c0_72], %292 {strides = array<i32>} : memref<8x128xf32, #tpu.memory_space<vmem>>, vector<8x128xf32>,
    } else {
    }
    %c0 = arith.constant 0 : index
    %c0_1 = arith.constant 0 : index
    %c0_2 = arith.constant 0 : index
    %3 = vector.load %arg1[%c0, %c0_1, %c0_2] : memref<8x8x16xbf16, #tpu.memory_space<vmem>>, vector<8x8x16xbf16>
    %4 = vector.shape_cast %3 : vector<8x8x16xbf16> to vector<64x16xbf16>
    %c0_3 = arith.constant 0 : index
    %c0_4 = arith.constant 0 : index
    %5 = vector.load %arg2[%c0_3, %c0_4] : memref<16x384xbf16, #tpu.memory_space<vmem>>, vector<16x384xbf16>
    %cst = arith.constant dense<0.000000e+00> : vector<64x384xf32>
    %6 = tpu.matmul %4, %5, %cst {dimension_numbers = #tpu.dot_dimension_numbers<[1], [0], [0], [1], [0, 0, 1, 1], [], []>} : vector<64x16xbf16>, vector<16x384xbf16>, vector<64x384xf32> -> vector<64x384xf32>
    %c0_5 = arith.constant 0 : index
    %c0_6 = arith.constant 0 : index
    %7 = vector.load %arg4[%c0_5, %c0_6] : memref<1x384xf32, #tpu.memory_space<vmem>>, vector<1x384xf32>
    %8 = vector.broadcast %7 : vector<1x384xf32> to vector<64x384xf32>
    %9 = arith.addf %6, %8 : vector<64x384xf32>
    %10 = vector.shape_cast %9 : vector<64x384xf32> to vector<8x8x384xf32>
    %c0_7 = arith.constant 0 : index
    %c0_8 = arith.constant 0 : index
    %11 = vector.load %arg3[%c0_7, %c0_8] : memref<128x384xbf16, #tpu.memory_space<vmem>>, vector<128x384xbf16>
    %c0_9 = arith.constant 0 : index
    %c0_10 = arith.constant 0 : index
    %12 = vector.load %arg5[%c0_9, %c0_10] : memref<1x128xf32, #tpu.memory_space<vmem>>, vector<1x128xf32>
    %13 = vector.shape_cast %12 : vector<1x128xf32> to vector<1x128xf32>
    %14 = vector.broadcast %13 : vector<1x128xf32> to vector<8x128xf32>
    %c0_11 = arith.constant 0 : index
    %c0_12 = arith.constant 0 : index
    %15 = vector.load %arg7[%c0_11, %c0_12] : memref<8x128xf32, #tpu.memory_space<vmem>>, vector<8x128xf32>
    %16 = arith.truncf %15 : vector<8x128xf32> to vector<8x128xbf16>
    %cst_13 = arith.constant dense<0.000000e+00> : vector<8x384xf32>
    %17 = tpu.matmul %16, %11, %cst_13 {dimension_numbers = #tpu.dot_dimension_numbers<[1], [0], [0], [1], [0, 0, 1, 1], [], []>} : vector<8x128xbf16>, vector<128x384xbf16>, vector<8x384xf32> -> vector<8x384xf32>
    %18 = vector.extract_strided_slice %10 {offsets = [0, 0, 0], sizes = [1, 8, 384], strides = [1, 1, 1]} : vector<8x8x384xf32> to vector<1x8x384xf32>
    %19 = vector.shape_cast %18 : vector<1x8x384xf32> to vector<8x384xf32>
    %20 = vector.extract_strided_slice %19 {offsets = [0, 0], sizes = [8, 128], strides = [1, 1]} : vector<8x384xf32> to vector<8x128xf32>
    %21 = vector.extract_strided_slice %17 {offsets = [0, 0], sizes = [8, 128], strides = [1, 1]} : vector<8x384xf32> to vector<8x128xf32>
    %22 = arith.addf %20, %21 : vector<8x128xf32>
    %23 = arith.negf %22 : vector<8x128xf32>
    %24 = math.exp %23 : vector<8x128xf32>
    %cst_14 = arith.constant 1.000000e+00 : f32
    %25 = vector.broadcast %cst_14 : f32 to vector<8x128xf32>
    %26 = arith.addf %25, %24 : vector<8x128xf32>
    %27 = arith.divf %25, %26 : vector<8x128xf32>
    %28 = vector.extract_strided_slice %19 {offsets = [0, 128], sizes = [8, 128], strides = [1, 1]} : vector<8x384xf32> to vector<8x128xf32>
    %29 = vector.extract_strided_slice %17 {offsets = [0, 128], sizes = [8, 128], strides = [1, 1]} : vector<8x384xf32> to vector<8x128xf32>
    %30 = arith.addf %28, %29 : vector<8x128xf32>
    %31 = arith.negf %30 : vector<8x128xf32>
    %32 = math.exp %31 : vector<8x128xf32>
    %cst_15 = arith.constant 1.000000e+00 : f32
    %33 = vector.broadcast %cst_15 : f32 to vector<8x128xf32>
    %34 = arith.addf %33, %32 : vector<8x128xf32>
    %35 = arith.divf %33, %34 : vector<8x128xf32>
    %36 = vector.extract_strided_slice %19 {offsets = [0, 256], sizes = [8, 128], strides = [1, 1]} : vector<8x384xf32> to vector<8x128xf32>
    %37 = vector.extract_strided_slice %17 {offsets = [0, 256], sizes = [8, 128], strides = [1, 1]} : vector<8x384xf32> to vector<8x128xf32>
    %38 = arith.addf %37, %14 : vector<8x128xf32>
    %39 = arith.mulf %27, %38 : vector<8x128xf32>
    %40 = arith.addf %36, %39 : vector<8x128xf32>
    %41 = math.tanh %40 : vector<8x128xf32>
    %cst_16 = arith.constant 1.000000e+00 : f32
    %42 = vector.broadcast %cst_16 : f32 to vector<8x128xf32>
    %43 = arith.subf %42, %35 : vector<8x128xf32>
    %44 = arith.mulf %43, %41 : vector<8x128xf32>
    %45 = arith.mulf %35, %15 : vector<8x128xf32>
    %46 = arith.addf %44, %45 : vector<8x128xf32>
    %c0_17 = arith.constant 0 : index
    %c0_18 = arith.constant 0 : index
    %c0_19 = arith.constant 0 : index
    %47 = vector.load %arg8[%c0_17, %c0_18, %c0_19] : memref<8x8x128xf32, #tpu.memory_space<vmem>>, vector<1x8x128xf32>
    %48 = vector.shape_cast %47 : vector<1x8x128xf32> to vector<8x128xf32>
    %49 = vector.shape_cast %46 : vector<8x128xf32> to vector<1x8x128xf32>
    tpu.vector_store %arg8[%c0_17, %c0_18, %c0_19], %49 {strides = array<i32>} : memref<8x8x128xf32, #tpu.memory_space<vmem>>, vector<1x8x128xf32>,
    %50 = arith.truncf %46 : vector<8x128xf32> to vector<8x128xbf16>
    %cst_20 = arith.constant dense<0.000000e+00> : vector<8x384xf32>
    %51 = tpu.matmul %50, %11, %cst_20 {dimension_numbers = #tpu.dot_dimension_numbers<[1], [0], [0], [1], [0, 0, 1, 1], [], []>} : vector<8x128xbf16>, vector<128x384xbf16>, vector<8x384xf32> -> vector<8x384xf32>
    %52 = vector.extract_strided_slice %10 {offsets = [1, 0, 0], sizes = [1, 8, 384], strides = [1, 1, 1]} : vector<8x8x384xf32> to vector<1x8x384xf32>
    %53 = vector.shape_cast %52 : vector<1x8x384xf32> to vector<8x384xf32>
    %54 = vector.extract_strided_slice %53 {offsets = [0, 0], sizes = [8, 128], strides = [1, 1]} : vector<8x384xf32> to vector<8x128xf32>
    %55 = vector.extract_strided_slice %51 {offsets = [0, 0], sizes = [8, 128], strides = [1, 1]} : vector<8x384xf32> to vector<8x128xf32>
    %56 = arith.addf %54, %55 : vector<8x128xf32>
    %57 = arith.negf %56 : vector<8x128xf32>
    %58 = math.exp %57 : vector<8x128xf32>
    %cst_21 = arith.constant 1.000000e+00 : f32
    %59 = vector.broadcast %cst_21 : f32 to vector<8x128xf32>
    %60 = arith.addf %59, %58 : vector<8x128xf32>
    %61 = arith.divf %59, %60 : vector<8x128xf32>
    %62 = vector.extract_strided_slice %53 {offsets = [0, 128], sizes = [8, 128], strides = [1, 1]} : vector<8x384xf32> to vector<8x128xf32>
    %63 = vector.extract_strided_slice %51 {offsets = [0, 128], sizes = [8, 128], strides = [1, 1]} : vector<8x384xf32> to vector<8x128xf32>
    %64 = arith.addf %62, %63 : vector<8x128xf32>
    %65 = arith.negf %64 : vector<8x128xf32>
    %66 = math.exp %65 : vector<8x128xf32>
    %cst_22 = arith.constant 1.000000e+00 : f32
    %67 = vector.broadcast %cst_22 : f32 to vector<8x128xf32>
    %68 = arith.addf %67, %66 : vector<8x128xf32>
    %69 = arith.divf %67, %68 : vector<8x128xf32>
    %70 = vector.extract_strided_slice %53 {offsets = [0, 256], sizes = [8, 128], strides = [1, 1]} : vector<8x384xf32> to vector<8x128xf32>
    %71 = vector.extract_strided_slice %51 {offsets = [0, 256], sizes = [8, 128], strides = [1, 1]} : vector<8x384xf32> to vector<8x128xf32>
    %72 = arith.addf %71, %14 : vector<8x128xf32>
    %73 = arith.mulf %61, %72 : vector<8x128xf32>
    %74 = arith.addf %70, %73 : vector<8x128xf32>
    %75 = math.tanh %74 : vector<8x128xf32>
    %cst_23 = arith.constant 1.000000e+00 : f32
    %76 = vector.broadcast %cst_23 : f32 to vector<8x128xf32>
    %77 = arith.subf %76, %69 : vector<8x128xf32>
    %78 = arith.mulf %77, %75 : vector<8x128xf32>
    %79 = arith.mulf %69, %46 : vector<8x128xf32>
    %80 = arith.addf %78, %79 : vector<8x128xf32>
    %c1 = arith.constant 1 : index
    %c0_24 = arith.constant 0 : index
    %c0_25 = arith.constant 0 : index
    %81 = vector.load %arg8[%c1, %c0_24, %c0_25] : memref<8x8x128xf32, #tpu.memory_space<vmem>>, vector<1x8x128xf32>
    %82 = vector.shape_cast %81 : vector<1x8x128xf32> to vector<8x128xf32>
    %83 = vector.shape_cast %80 : vector<8x128xf32> to vector<1x8x128xf32>
    tpu.vector_store %arg8[%c1, %c0_24, %c0_25], %83 {strides = array<i32>} : memref<8x8x128xf32, #tpu.memory_space<vmem>>, vector<1x8x128xf32>,
    %84 = arith.truncf %80 : vector<8x128xf32> to vector<8x128xbf16>
    %cst_26 = arith.constant dense<0.000000e+00> : vector<8x384xf32>
    %85 = tpu.matmul %84, %11, %cst_26 {dimension_numbers = #tpu.dot_dimension_numbers<[1], [0], [0], [1], [0, 0, 1, 1], [], []>} : vector<8x128xbf16>, vector<128x384xbf16>, vector<8x384xf32> -> vector<8x384xf32>
    %86 = vector.extract_strided_slice %10 {offsets = [2, 0, 0], sizes = [1, 8, 384], strides = [1, 1, 1]} : vector<8x8x384xf32> to vector<1x8x384xf32>
    %87 = vector.shape_cast %86 : vector<1x8x384xf32> to vector<8x384xf32>
    %88 = vector.extract_strided_slice %87 {offsets = [0, 0], sizes = [8, 128], strides = [1, 1]} : vector<8x384xf32> to vector<8x128xf32>
    %89 = vector.extract_strided_slice %85 {offsets = [0, 0], sizes = [8, 128], strides = [1, 1]} : vector<8x384xf32> to vector<8x128xf32>
    %90 = arith.addf %88, %89 : vector<8x128xf32>
    %91 = arith.negf %90 : vector<8x128xf32>
    %92 = math.exp %91 : vector<8x128xf32>
    %cst_27 = arith.constant 1.000000e+00 : f32
    %93 = vector.broadcast %cst_27 : f32 to vector<8x128xf32>
    %94 = arith.addf %93, %92 : vector<8x128xf32>
    %95 = arith.divf %93, %94 : vector<8x128xf32>
    %96 = vector.extract_strided_slice %87 {offsets = [0, 128], sizes = [8, 128], strides = [1, 1]} : vector<8x384xf32> to vector<8x128xf32>
    %97 = vector.extract_strided_slice %85 {offsets = [0, 128], sizes = [8, 128], strides = [1, 1]} : vector<8x384xf32> to vector<8x128xf32>
    %98 = arith.addf %96, %97 : vector<8x128xf32>
    %99 = arith.negf %98 : vector<8x128xf32>
    %100 = math.exp %99 : vector<8x128xf32>
    %cst_28 = arith.constant 1.000000e+00 : f32
    %101 = vector.broadcast %cst_28 : f32 to vector<8x128xf32>
    %102 = arith.addf %101, %100 : vector<8x128xf32>
    %103 = arith.divf %101, %102 : vector<8x128xf32>
    %104 = vector.extract_strided_slice %87 {offsets = [0, 256], sizes = [8, 128], strides = [1, 1]} : vector<8x384xf32> to vector<8x128xf32>
    %105 = vector.extract_strided_slice %85 {offsets = [0, 256], sizes = [8, 128], strides = [1, 1]} : vector<8x384xf32> to vector<8x128xf32>
    %106 = arith.addf %105, %14 : vector<8x128xf32>
    %107 = arith.mulf %95, %106 : vector<8x128xf32>
    %108 = arith.addf %104, %107 : vector<8x128xf32>
    %109 = math.tanh %108 : vector<8x128xf32>
    %cst_29 = arith.constant 1.000000e+00 : f32
    %110 = vector.broadcast %cst_29 : f32 to vector<8x128xf32>
    %111 = arith.subf %110, %103 : vector<8x128xf32>
    %112 = arith.mulf %111, %109 : vector<8x128xf32>
    %113 = arith.mulf %103, %80 : vector<8x128xf32>
    %114 = arith.addf %112, %113 : vector<8x128xf32>
    %c2 = arith.constant 2 : index
    %c0_30 = arith.constant 0 : index
    %c0_31 = arith.constant 0 : index
    %115 = vector.load %arg8[%c2, %c0_30, %c0_31] : memref<8x8x128xf32, #tpu.memory_space<vmem>>, vector<1x8x128xf32>
    %116 = vector.shape_cast %115 : vector<1x8x128xf32> to vector<8x128xf32>
    %117 = vector.shape_cast %114 : vector<8x128xf32> to vector<1x8x128xf32>
    tpu.vector_store %arg8[%c2, %c0_30, %c0_31], %117 {strides = array<i32>} : memref<8x8x128xf32, #tpu.memory_space<vmem>>, vector<1x8x128xf32>,
    %118 = arith.truncf %114 : vector<8x128xf32> to vector<8x128xbf16>
    %cst_32 = arith.constant dense<0.000000e+00> : vector<8x384xf32>
    %119 = tpu.matmul %118, %11, %cst_32 {dimension_numbers = #tpu.dot_dimension_numbers<[1], [0], [0], [1], [0, 0, 1, 1], [], []>} : vector<8x128xbf16>, vector<128x384xbf16>, vector<8x384xf32> -> vector<8x384xf32>
    %120 = vector.extract_strided_slice %10 {offsets = [3, 0, 0], sizes = [1, 8, 384], strides = [1, 1, 1]} : vector<8x8x384xf32> to vector<1x8x384xf32>
    %121 = vector.shape_cast %120 : vector<1x8x384xf32> to vector<8x384xf32>
    %122 = vector.extract_strided_slice %121 {offsets = [0, 0], sizes = [8, 128], strides = [1, 1]} : vector<8x384xf32> to vector<8x128xf32>
    %123 = vector.extract_strided_slice %119 {offsets = [0, 0], sizes = [8, 128], strides = [1, 1]} : vector<8x384xf32> to vector<8x128xf32>
    %124 = arith.addf %122, %123 : vector<8x128xf32>
    %125 = arith.negf %124 : vector<8x128xf32>
    %126 = math.exp %125 : vector<8x128xf32>
    %cst_33 = arith.constant 1.000000e+00 : f32
    %127 = vector.broadcast %cst_33 : f32 to vector<8x128xf32>
    %128 = arith.addf %127, %126 : vector<8x128xf32>
    %129 = arith.divf %127, %128 : vector<8x128xf32>
    %130 = vector.extract_strided_slice %121 {offsets = [0, 128], sizes = [8, 128], strides = [1, 1]} : vector<8x384xf32> to vector<8x128xf32>
    %131 = vector.extract_strided_slice %119 {offsets = [0, 128], sizes = [8, 128], strides = [1, 1]} : vector<8x384xf32> to vector<8x128xf32>
    %132 = arith.addf %130, %131 : vector<8x128xf32>
    %133 = arith.negf %132 : vector<8x128xf32>
    %134 = math.exp %133 : vector<8x128xf32>
    %cst_34 = arith.constant 1.000000e+00 : f32
    %135 = vector.broadcast %cst_34 : f32 to vector<8x128xf32>
    %136 = arith.addf %135, %134 : vector<8x128xf32>
    %137 = arith.divf %135, %136 : vector<8x128xf32>
    %138 = vector.extract_strided_slice %121 {offsets = [0, 256], sizes = [8, 128], strides = [1, 1]} : vector<8x384xf32> to vector<8x128xf32>
    %139 = vector.extract_strided_slice %119 {offsets = [0, 256], sizes = [8, 128], strides = [1, 1]} : vector<8x384xf32> to vector<8x128xf32>
    %140 = arith.addf %139, %14 : vector<8x128xf32>
    %141 = arith.mulf %129, %140 : vector<8x128xf32>
    %142 = arith.addf %138, %141 : vector<8x128xf32>
    %143 = math.tanh %142 : vector<8x128xf32>
    %cst_35 = arith.constant 1.000000e+00 : f32
    %144 = vector.broadcast %cst_35 : f32 to vector<8x128xf32>
    %145 = arith.subf %144, %137 : vector<8x128xf32>
    %146 = arith.mulf %145, %143 : vector<8x128xf32>
    %147 = arith.mulf %137, %114 : vector<8x128xf32>
    %148 = arith.addf %146, %147 : vector<8x128xf32>
    %c3 = arith.constant 3 : index
    %c0_36 = arith.constant 0 : index
    %c0_37 = arith.constant 0 : index
    %149 = vector.load %arg8[%c3, %c0_36, %c0_37] : memref<8x8x128xf32, #tpu.memory_space<vmem>>, vector<1x8x128xf32>
    %150 = vector.shape_cast %149 : vector<1x8x128xf32> to vector<8x128xf32>
    %151 = vector.shape_cast %148 : vector<8x128xf32> to vector<1x8x128xf32>
    tpu.vector_store %arg8[%c3, %c0_36, %c0_37], %151 {strides = array<i32>} : memref<8x8x128xf32, #tpu.memory_space<vmem>>, vector<1x8x128xf32>,
    %152 = arith.truncf %148 : vector<8x128xf32> to vector<8x128xbf16>
    %cst_38 = arith.constant dense<0.000000e+00> : vector<8x384xf32>
    %153 = tpu.matmul %152, %11, %cst_38 {dimension_numbers = #tpu.dot_dimension_numbers<[1], [0], [0], [1], [0, 0, 1, 1], [], []>} : vector<8x128xbf16>, vector<128x384xbf16>, vector<8x384xf32> -> vector<8x384xf32>
    %154 = vector.extract_strided_slice %10 {offsets = [4, 0, 0], sizes = [1, 8, 384], strides = [1, 1, 1]} : vector<8x8x384xf32> to vector<1x8x384xf32>
    %155 = vector.shape_cast %154 : vector<1x8x384xf32> to vector<8x384xf32>
    %156 = vector.extract_strided_slice %155 {offsets = [0, 0], sizes = [8, 128], strides = [1, 1]} : vector<8x384xf32> to vector<8x128xf32>
    %157 = vector.extract_strided_slice %153 {offsets = [0, 0], sizes = [8, 128], strides = [1, 1]} : vector<8x384xf32> to vector<8x128xf32>
    %158 = arith.addf %156, %157 : vector<8x128xf32>
    %159 = arith.negf %158 : vector<8x128xf32>
    %160 = math.exp %159 : vector<8x128xf32>
    %cst_39 = arith.constant 1.000000e+00 : f32
    %161 = vector.broadcast %cst_39 : f32 to vector<8x128xf32>
    %162 = arith.addf %161, %160 : vector<8x128xf32>
    %163 = arith.divf %161, %162 : vector<8x128xf32>
    %164 = vector.extract_strided_slice %155 {offsets = [0, 128], sizes = [8, 128], strides = [1, 1]} : vector<8x384xf32> to vector<8x128xf32>
    %165 = vector.extract_strided_slice %153 {offsets = [0, 128], sizes = [8, 128], strides = [1, 1]} : vector<8x384xf32> to vector<8x128xf32>
    %166 = arith.addf %164, %165 : vector<8x128xf32>
    %167 = arith.negf %166 : vector<8x128xf32>
    %168 = math.exp %167 : vector<8x128xf32>
    %cst_40 = arith.constant 1.000000e+00 : f32
    %169 = vector.broadcast %cst_40 : f32 to vector<8x128xf32>
    %170 = arith.addf %169, %168 : vector<8x128xf32>
    %171 = arith.divf %169, %170 : vector<8x128xf32>
    %172 = vector.extract_strided_slice %155 {offsets = [0, 256], sizes = [8, 128], strides = [1, 1]} : vector<8x384xf32> to vector<8x128xf32>
    %173 = vector.extract_strided_slice %153 {offsets = [0, 256], sizes = [8, 128], strides = [1, 1]} : vector<8x384xf32> to vector<8x128xf32>
    %174 = arith.addf %173, %14 : vector<8x128xf32>
    %175 = arith.mulf %163, %174 : vector<8x128xf32>
    %176 = arith.addf %172, %175 : vector<8x128xf32>
    %177 = math.tanh %176 : vector<8x128xf32>
    %cst_41 = arith.constant 1.000000e+00 : f32
    %178 = vector.broadcast %cst_41 : f32 to vector<8x128xf32>
    %179 = arith.subf %178, %171 : vector<8x128xf32>
    %180 = arith.mulf %179, %177 : vector<8x128xf32>
    %181 = arith.mulf %171, %148 : vector<8x128xf32>
    %182 = arith.addf %180, %181 : vector<8x128xf32>
    %c4 = arith.constant 4 : index
    %c0_42 = arith.constant 0 : index
    %c0_43 = arith.constant 0 : index
    %183 = vector.load %arg8[%c4, %c0_42, %c0_43] : memref<8x8x128xf32, #tpu.memory_space<vmem>>, vector<1x8x128xf32>
    %184 = vector.shape_cast %183 : vector<1x8x128xf32> to vector<8x128xf32>
    %185 = vector.shape_cast %182 : vector<8x128xf32> to vector<1x8x128xf32>
    tpu.vector_store %arg8[%c4, %c0_42, %c0_43], %185 {strides = array<i32>} : memref<8x8x128xf32, #tpu.memory_space<vmem>>, vector<1x8x128xf32>,
    %186 = arith.truncf %182 : vector<8x128xf32> to vector<8x128xbf16>
    %cst_44 = arith.constant dense<0.000000e+00> : vector<8x384xf32>
    %187 = tpu.matmul %186, %11, %cst_44 {dimension_numbers = #tpu.dot_dimension_numbers<[1], [0], [0], [1], [0, 0, 1, 1], [], []>} : vector<8x128xbf16>, vector<128x384xbf16>, vector<8x384xf32> -> vector<8x384xf32>
    %188 = vector.extract_strided_slice %10 {offsets = [5, 0, 0], sizes = [1, 8, 384], strides = [1, 1, 1]} : vector<8x8x384xf32> to vector<1x8x384xf32>
    %189 = vector.shape_cast %188 : vector<1x8x384xf32> to vector<8x384xf32>
    %190 = vector.extract_strided_slice %189 {offsets = [0, 0], sizes = [8, 128], strides = [1, 1]} : vector<8x384xf32> to vector<8x128xf32>
    %191 = vector.extract_strided_slice %187 {offsets = [0, 0], sizes = [8, 128], strides = [1, 1]} : vector<8x384xf32> to vector<8x128xf32>
    %192 = arith.addf %190, %191 : vector<8x128xf32>
    %193 = arith.negf %192 : vector<8x128xf32>
    %194 = math.exp %193 : vector<8x128xf32>
    %cst_45 = arith.constant 1.000000e+00 : f32
    %195 = vector.broadcast %cst_45 : f32 to vector<8x128xf32>
    %196 = arith.addf %195, %194 : vector<8x128xf32>
    %197 = arith.divf %195, %196 : vector<8x128xf32>
    %198 = vector.extract_strided_slice %189 {offsets = [0, 128], sizes = [8, 128], strides = [1, 1]} : vector<8x384xf32> to vector<8x128xf32>
    %199 = vector.extract_strided_slice %187 {offsets = [0, 128], sizes = [8, 128], strides = [1, 1]} : vector<8x384xf32> to vector<8x128xf32>
    %200 = arith.addf %198, %199 : vector<8x128xf32>
    %201 = arith.negf %200 : vector<8x128xf32>
    %202 = math.exp %201 : vector<8x128xf32>
    %cst_46 = arith.constant 1.000000e+00 : f32
    %203 = vector.broadcast %cst_46 : f32 to vector<8x128xf32>
    %204 = arith.addf %203, %202 : vector<8x128xf32>
    %205 = arith.divf %203, %204 : vector<8x128xf32>
    %206 = vector.extract_strided_slice %189 {offsets = [0, 256], sizes = [8, 128], strides = [1, 1]} : vector<8x384xf32> to vector<8x128xf32>
    %207 = vector.extract_strided_slice %187 {offsets = [0, 256], sizes = [8, 128], strides = [1, 1]} : vector<8x384xf32> to vector<8x128xf32>
    %208 = arith.addf %207, %14 : vector<8x128xf32>
    %209 = arith.mulf %197, %208 : vector<8x128xf32>
    %210 = arith.addf %206, %209 : vector<8x128xf32>
    %211 = math.tanh %210 : vector<8x128xf32>
    %cst_47 = arith.constant 1.000000e+00 : f32
    %212 = vector.broadcast %cst_47 : f32 to vector<8x128xf32>
    %213 = arith.subf %212, %205 : vector<8x128xf32>
    %214 = arith.mulf %213, %211 : vector<8x128xf32>
    %215 = arith.mulf %205, %182 : vector<8x128xf32>
    %216 = arith.addf %214, %215 : vector<8x128xf32>
    %c5 = arith.constant 5 : index
    %c0_48 = arith.constant 0 : index
    %c0_49 = arith.constant 0 : index
    %217 = vector.load %arg8[%c5, %c0_48, %c0_49] : memref<8x8x128xf32, #tpu.memory_space<vmem>>, vector<1x8x128xf32>
    %218 = vector.shape_cast %217 : vector<1x8x128xf32> to vector<8x128xf32>
    %219 = vector.shape_cast %216 : vector<8x128xf32> to vector<1x8x128xf32>
    tpu.vector_store %arg8[%c5, %c0_48, %c0_49], %219 {strides = array<i32>} : memref<8x8x128xf32, #tpu.memory_space<vmem>>, vector<1x8x128xf32>,
    %220 = arith.truncf %216 : vector<8x128xf32> to vector<8x128xbf16>
    %cst_50 = arith.constant dense<0.000000e+00> : vector<8x384xf32>
    %221 = tpu.matmul %220, %11, %cst_50 {dimension_numbers = #tpu.dot_dimension_numbers<[1], [0], [0], [1], [0, 0, 1, 1], [], []>} : vector<8x128xbf16>, vector<128x384xbf16>, vector<8x384xf32> -> vector<8x384xf32>
    %222 = vector.extract_strided_slice %10 {offsets = [6, 0, 0], sizes = [1, 8, 384], strides = [1, 1, 1]} : vector<8x8x384xf32> to vector<1x8x384xf32>
    %223 = vector.shape_cast %222 : vector<1x8x384xf32> to vector<8x384xf32>
    %224 = vector.extract_strided_slice %223 {offsets = [0, 0], sizes = [8, 128], strides = [1, 1]} : vector<8x384xf32> to vector<8x128xf32>
    %225 = vector.extract_strided_slice %221 {offsets = [0, 0], sizes = [8, 128], strides = [1, 1]} : vector<8x384xf32> to vector<8x128xf32>
    %226 = arith.addf %224, %225 : vector<8x128xf32>
    %227 = arith.negf %226 : vector<8x128xf32>
    %228 = math.exp %227 : vector<8x128xf32>
    %cst_51 = arith.constant 1.000000e+00 : f32
    %229 = vector.broadcast %cst_51 : f32 to vector<8x128xf32>
    %230 = arith.addf %229, %228 : vector<8x128xf32>
    %231 = arith.divf %229, %230 : vector<8x128xf32>
    %232 = vector.extract_strided_slice %223 {offsets = [0, 128], sizes = [8, 128], strides = [1, 1]} : vector<8x384xf32> to vector<8x128xf32>
    %233 = vector.extract_strided_slice %221 {offsets = [0, 128], sizes = [8, 128], strides = [1, 1]} : vector<8x384xf32> to vector<8x128xf32>
    %234 = arith.addf %232, %233 : vector<8x128xf32>
    %235 = arith.negf %234 : vector<8x128xf32>
    %236 = math.exp %235 : vector<8x128xf32>
    %cst_52 = arith.constant 1.000000e+00 : f32
    %237 = vector.broadcast %cst_52 : f32 to vector<8x128xf32>
    %238 = arith.addf %237, %236 : vector<8x128xf32>
    %239 = arith.divf %237, %238 : vector<8x128xf32>
    %240 = vector.extract_strided_slice %223 {offsets = [0, 256], sizes = [8, 128], strides = [1, 1]} : vector<8x384xf32> to vector<8x128xf32>
    %241 = vector.extract_strided_slice %221 {offsets = [0, 256], sizes = [8, 128], strides = [1, 1]} : vector<8x384xf32> to vector<8x128xf32>
    %242 = arith.addf %241, %14 : vector<8x128xf32>
    %243 = arith.mulf %231, %242 : vector<8x128xf32>
    %244 = arith.addf %240, %243 : vector<8x128xf32>
    %245 = math.tanh %244 : vector<8x128xf32>
    %cst_53 = arith.constant 1.000000e+00 : f32
    %246 = vector.broadcast %cst_53 : f32 to vector<8x128xf32>
    %247 = arith.subf %246, %239 : vector<8x128xf32>
    %248 = arith.mulf %247, %245 : vector<8x128xf32>
    %249 = arith.mulf %239, %216 : vector<8x128xf32>
    %250 = arith.addf %248, %249 : vector<8x128xf32>
    %c6 = arith.constant 6 : index
    %c0_54 = arith.constant 0 : index
    %c0_55 = arith.constant 0 : index
    %251 = vector.load %arg8[%c6, %c0_54, %c0_55] : memref<8x8x128xf32, #tpu.memory_space<vmem>>, vector<1x8x128xf32>
    %252 = vector.shape_cast %251 : vector<1x8x128xf32> to vector<8x128xf32>
    %253 = vector.shape_cast %250 : vector<8x128xf32> to vector<1x8x128xf32>
    tpu.vector_store %arg8[%c6, %c0_54, %c0_55], %253 {strides = array<i32>} : memref<8x8x128xf32, #tpu.memory_space<vmem>>, vector<1x8x128xf32>,
    %254 = arith.truncf %250 : vector<8x128xf32> to vector<8x128xbf16>
    %cst_56 = arith.constant dense<0.000000e+00> : vector<8x384xf32>
    %255 = tpu.matmul %254, %11, %cst_56 {dimension_numbers = #tpu.dot_dimension_numbers<[1], [0], [0], [1], [0, 0, 1, 1], [], []>} : vector<8x128xbf16>, vector<128x384xbf16>, vector<8x384xf32> -> vector<8x384xf32>
    %256 = vector.extract_strided_slice %10 {offsets = [7, 0, 0], sizes = [1, 8, 384], strides = [1, 1, 1]} : vector<8x8x384xf32> to vector<1x8x384xf32>
    %257 = vector.shape_cast %256 : vector<1x8x384xf32> to vector<8x384xf32>
    %258 = vector.extract_strided_slice %257 {offsets = [0, 0], sizes = [8, 128], strides = [1, 1]} : vector<8x384xf32> to vector<8x128xf32>
    %259 = vector.extract_strided_slice %255 {offsets = [0, 0], sizes = [8, 128], strides = [1, 1]} : vector<8x384xf32> to vector<8x128xf32>
    %260 = arith.addf %258, %259 : vector<8x128xf32>
    %261 = arith.negf %260 : vector<8x128xf32>
    %262 = math.exp %261 : vector<8x128xf32>
    %cst_57 = arith.constant 1.000000e+00 : f32
    %263 = vector.broadcast %cst_57 : f32 to vector<8x128xf32>
    %264 = arith.addf %263, %262 : vector<8x128xf32>
    %265 = arith.divf %263, %264 : vector<8x128xf32>
    %266 = vector.extract_strided_slice %257 {offsets = [0, 128], sizes = [8, 128], strides = [1, 1]} : vector<8x384xf32> to vector<8x128xf32>
    %267 = vector.extract_strided_slice %255 {offsets = [0, 128], sizes = [8, 128], strides = [1, 1]} : vector<8x384xf32> to vector<8x128xf32>
    %268 = arith.addf %266, %267 : vector<8x128xf32>
    %269 = arith.negf %268 : vector<8x128xf32>
    %270 = math.exp %269 : vector<8x128xf32>
    %cst_58 = arith.constant 1.000000e+00 : f32
    %271 = vector.broadcast %cst_58 : f32 to vector<8x128xf32>
    %272 = arith.addf %271, %270 : vector<8x128xf32>
    %273 = arith.divf %271, %272 : vector<8x128xf32>
    %274 = vector.extract_strided_slice %257 {offsets = [0, 256], sizes = [8, 128], strides = [1, 1]} : vector<8x384xf32> to vector<8x128xf32>
    %275 = vector.extract_strided_slice %255 {offsets = [0, 256], sizes = [8, 128], strides = [1, 1]} : vector<8x384xf32> to vector<8x128xf32>
    %276 = arith.addf %275, %14 : vector<8x128xf32>
    %277 = arith.mulf %265, %276 : vector<8x128xf32>
    %278 = arith.addf %274, %277 : vector<8x128xf32>
    %279 = math.tanh %278 : vector<8x128xf32>
    %cst_59 = arith.constant 1.000000e+00 : f32
    %280 = vector.broadcast %cst_59 : f32 to vector<8x128xf32>
    %281 = arith.subf %280, %273 : vector<8x128xf32>
    %282 = arith.mulf %281, %279 : vector<8x128xf32>
    %283 = arith.mulf %273, %250 : vector<8x128xf32>
    %284 = arith.addf %282, %283 : vector<8x128xf32>
    %c7 = arith.constant 7 : index
    %c0_60 = arith.constant 0 : index
    %c0_61 = arith.constant 0 : index
    %285 = vector.load %arg8[%c7, %c0_60, %c0_61] : memref<8x8x128xf32, #tpu.memory_space<vmem>>, vector<1x8x128xf32>
    %286 = vector.shape_cast %285 : vector<1x8x128xf32> to vector<8x128xf32>
    %287 = vector.shape_cast %284 : vector<8x128xf32> to vector<1x8x128xf32>
    tpu.vector_store %arg8[%c7, %c0_60, %c0_61], %287 {strides = array<i32>} : memref<8x8x128xf32, #tpu.memory_space<vmem>>, vector<1x8x128xf32>,
    %c0_62 = arith.constant 0 : index
    %c0_63 = arith.constant 0 : index
    %288 = vector.load %arg7[%c0_62, %c0_63] : memref<8x128xf32, #tpu.memory_space<vmem>>, vector<8x128xf32>
    tpu.vector_store %arg7[%c0_62, %c0_63], %284 {strides = array<i32>} : memref<8x128xf32, #tpu.memory_space<vmem>>, vector<8x128xf32>,
    %c0_64 = arith.constant 0 : index
    %c0_65 = arith.constant 0 : index
    %c0_66 = arith.constant 0 : index
    %289 = vector.load %arg8[%c0_64, %c0_65, %c0_66] : memref<8x8x128xf32, #tpu.memory_space<vmem>>, vector<8x8x128xf32>
    %290 = arith.truncf %289 : vector<8x8x128xf32> to vector<8x8x128xbf16>
    %c0_67 = arith.constant 0 : index
    %c0_68 = arith.constant 0 : index
    %c0_69 = arith.constant 0 : index
    %291 = vector.load %arg6[%c0_67, %c0_68, %c0_69] : memref<8x8x128xbf16, #tpu.memory_space<vmem>>, vector<8x8x128xbf16>
    tpu.vector_store %arg6[%c0_67, %c0_68, %c0_69], %290 {strides = array<i32>} : memref<8x8x128xbf16, #tpu.memory_space<vmem>>, vector<8x8x128xbf16>,
    return
  }
  func.func @transform_0(%arg0: i32) -> (i32, i32, i32) {
    %c0_i32 = arith.constant 0 : i32
    %c0_i32_0 = arith.constant 0 : i32
    %c0_i32_1 = arith.constant 0 : i32
    return %arg0, %c0_i32, %c0_i32_0 : i32, i32, i32
  }
  func.func @transform_1(%arg0: i32) -> (i32, i32) {
    %c0_i32 = arith.constant 0 : i32
    %c0_i32_0 = arith.constant 0 : i32
    %c0_i32_1 = arith.constant 0 : i32
    return %c0_i32, %c0_i32_0 : i32, i32
  }
  func.func @transform_2(%arg0: i32) -> (i32, i32) {
    %c0_i32 = arith.constant 0 : i32
    %c0_i32_0 = arith.constant 0 : i32
    %c0_i32_1 = arith.constant 0 : i32
    return %c0_i32, %c0_i32_0 : i32, i32
  }
  func.func @transform_3(%arg0: i32) -> (i32, i32) {
    %c0_i32 = arith.constant 0 : i32
    %c0_i32_0 = arith.constant 0 : i32
    %c0_i32_1 = arith.constant 0 : i32
    return %c0_i32, %c0_i32_0 : i32, i32
  }
  func.func @transform_4(%arg0: i32) -> (i32, i32) {
    %c0_i32 = arith.constant 0 : i32
    %c0_i32_0 = arith.constant 0 : i32
    %c0_i32_1 = arith.constant 0 : i32
    return %c0_i32, %c0_i32_0 : i32, i32
  }
  func.func @transform_5(%arg0: i32) -> (i32, i32, i32) {
    %c0_i32 = arith.constant 0 : i32
    %c0_i32_0 = arith.constant 0 : i32
    %c0_i32_1 = arith.constant 0 : i32
    return %arg0, %c0_i32, %c0_i32_0 : i32, i32, i32
  }
}

module attributes {stable_mosaic.version = 11 : i64} {
  func.func @_gru_tile_kernel(%arg0: i32, %arg1: memref<8x8x128xbf16, #tpu.memory_space<vmem>>, %arg2: memref<128x384xbf16, #tpu.memory_space<vmem>>, %arg3: memref<128x384xbf16, #tpu.memory_space<vmem>>, %arg4: memref<1x384xf32, #tpu.memory_space<vmem>>, %arg5: memref<1x128xf32, #tpu.memory_space<vmem>>, %arg6: memref<128x128xbf16, #tpu.memory_space<vmem>>, %arg7: memref<1x128xf32, #tpu.memory_space<vmem>>, %arg8: memref<8x8x128xf32, #tpu.memory_space<vmem>>, %arg9: memref<8x128xf32, #tpu.memory_space<vmem>>, %arg10: memref<8x8x128xf32, #tpu.memory_space<vmem>>) attributes {dimension_semantics = [#tpu.dimension_semantics<arbitrary>], iteration_bounds = array<i64: 1>, scalar_prefetch = 0 : i64, scratch_operands = 2 : i64, tpu.core_type = #tpu.core_type<tc>, window_params = [{transform_indices = @transform_0, window_bounds = array<i64: 8, 8, 128>}, {pipeline_mode = #tpu.pipeline_mode<synchronous>, transform_indices = @transform_1, window_bounds = array<i64: 128, 384>}, {pipeline_mode = #tpu.pipeline_mode<synchronous>, transform_indices = @transform_2, window_bounds = array<i64: 128, 384>}, {pipeline_mode = #tpu.pipeline_mode<synchronous>, transform_indices = @transform_3, window_bounds = array<i64: 1, 384>}, {pipeline_mode = #tpu.pipeline_mode<synchronous>, transform_indices = @transform_4, window_bounds = array<i64: 1, 128>}, {pipeline_mode = #tpu.pipeline_mode<synchronous>, transform_indices = @transform_5, window_bounds = array<i64: 128, 128>}, {pipeline_mode = #tpu.pipeline_mode<synchronous>, transform_indices = @transform_6, window_bounds = array<i64: 1, 128>}, {transform_indices = @transform_7, window_bounds = array<i64: 8, 8, 128>}]} {
    %c0_i32 = arith.constant 0 : i32
    %0 = arith.cmpi eq, %arg0, %c0_i32 : i32
    %1 = arith.extui %0 : i1 to i32
    %c0_i32_0 = arith.constant 0 : i32
    %2 = arith.cmpi ne, %1, %c0_i32_0 : i32
    scf.if %2 {
      %cst_75 = arith.constant 0.000000e+00 : f32
      %299 = vector.broadcast %cst_75 : f32 to vector<8x128xf32>
      %c0_76 = arith.constant 0 : index
      %c0_77 = arith.constant 0 : index
      %300 = vector.load %arg9[%c0_76, %c0_77] : memref<8x128xf32, #tpu.memory_space<vmem>>, vector<8x128xf32>
      tpu.vector_store %arg9[%c0_76, %c0_77], %299 {strides = array<i32>} : memref<8x128xf32, #tpu.memory_space<vmem>>, vector<8x128xf32>,
    } else {
    }
    %c0 = arith.constant 0 : index
    %c0_1 = arith.constant 0 : index
    %c0_2 = arith.constant 0 : index
    %3 = vector.load %arg1[%c0, %c0_1, %c0_2] : memref<8x8x128xbf16, #tpu.memory_space<vmem>>, vector<8x8x128xbf16>
    %4 = vector.shape_cast %3 : vector<8x8x128xbf16> to vector<64x128xbf16>
    %c0_3 = arith.constant 0 : index
    %c0_4 = arith.constant 0 : index
    %5 = vector.load %arg2[%c0_3, %c0_4] : memref<128x384xbf16, #tpu.memory_space<vmem>>, vector<128x384xbf16>
    %cst = arith.constant dense<0.000000e+00> : vector<64x384xf32>
    %6 = tpu.matmul %4, %5, %cst {dimension_numbers = #tpu.dot_dimension_numbers<[1], [0], [0], [1], [0, 0, 1, 1], [], []>} : vector<64x128xbf16>, vector<128x384xbf16>, vector<64x384xf32> -> vector<64x384xf32>
    %c0_5 = arith.constant 0 : index
    %c0_6 = arith.constant 0 : index
    %7 = vector.load %arg4[%c0_5, %c0_6] : memref<1x384xf32, #tpu.memory_space<vmem>>, vector<1x384xf32>
    %8 = vector.broadcast %7 : vector<1x384xf32> to vector<64x384xf32>
    %9 = arith.addf %6, %8 : vector<64x384xf32>
    %10 = vector.shape_cast %9 : vector<64x384xf32> to vector<8x8x384xf32>
    %c0_7 = arith.constant 0 : index
    %c0_8 = arith.constant 0 : index
    %11 = vector.load %arg3[%c0_7, %c0_8] : memref<128x384xbf16, #tpu.memory_space<vmem>>, vector<128x384xbf16>
    %c0_9 = arith.constant 0 : index
    %c0_10 = arith.constant 0 : index
    %12 = vector.load %arg5[%c0_9, %c0_10] : memref<1x128xf32, #tpu.memory_space<vmem>>, vector<1x128xf32>
    %13 = vector.shape_cast %12 : vector<1x128xf32> to vector<1x128xf32>
    %14 = vector.broadcast %13 : vector<1x128xf32> to vector<8x128xf32>
    %c0_11 = arith.constant 0 : index
    %c0_12 = arith.constant 0 : index
    %15 = vector.load %arg9[%c0_11, %c0_12] : memref<8x128xf32, #tpu.memory_space<vmem>>, vector<8x128xf32>
    %16 = arith.truncf %15 : vector<8x128xf32> to vector<8x128xbf16>
    %cst_13 = arith.constant dense<0.000000e+00> : vector<8x384xf32>
    %17 = tpu.matmul %16, %11, %cst_13 {dimension_numbers = #tpu.dot_dimension_numbers<[1], [0], [0], [1], [0, 0, 1, 1], [], []>} : vector<8x128xbf16>, vector<128x384xbf16>, vector<8x384xf32> -> vector<8x384xf32>
    %18 = vector.extract_strided_slice %10 {offsets = [0, 0, 0], sizes = [1, 8, 384], strides = [1, 1, 1]} : vector<8x8x384xf32> to vector<1x8x384xf32>
    %19 = vector.shape_cast %18 : vector<1x8x384xf32> to vector<8x384xf32>
    %20 = vector.extract_strided_slice %19 {offsets = [0, 0], sizes = [8, 128], strides = [1, 1]} : vector<8x384xf32> to vector<8x128xf32>
    %21 = vector.extract_strided_slice %17 {offsets = [0, 0], sizes = [8, 128], strides = [1, 1]} : vector<8x384xf32> to vector<8x128xf32>
    %22 = arith.addf %20, %21 : vector<8x128xf32>
    %23 = arith.negf %22 : vector<8x128xf32>
    %24 = math.exp %23 : vector<8x128xf32>
    %cst_14 = arith.constant 1.000000e+00 : f32
    %25 = vector.broadcast %cst_14 : f32 to vector<8x128xf32>
    %26 = arith.addf %25, %24 : vector<8x128xf32>
    %27 = arith.divf %25, %26 : vector<8x128xf32>
    %28 = vector.extract_strided_slice %19 {offsets = [0, 128], sizes = [8, 128], strides = [1, 1]} : vector<8x384xf32> to vector<8x128xf32>
    %29 = vector.extract_strided_slice %17 {offsets = [0, 128], sizes = [8, 128], strides = [1, 1]} : vector<8x384xf32> to vector<8x128xf32>
    %30 = arith.addf %28, %29 : vector<8x128xf32>
    %31 = arith.negf %30 : vector<8x128xf32>
    %32 = math.exp %31 : vector<8x128xf32>
    %cst_15 = arith.constant 1.000000e+00 : f32
    %33 = vector.broadcast %cst_15 : f32 to vector<8x128xf32>
    %34 = arith.addf %33, %32 : vector<8x128xf32>
    %35 = arith.divf %33, %34 : vector<8x128xf32>
    %36 = vector.extract_strided_slice %19 {offsets = [0, 256], sizes = [8, 128], strides = [1, 1]} : vector<8x384xf32> to vector<8x128xf32>
    %37 = vector.extract_strided_slice %17 {offsets = [0, 256], sizes = [8, 128], strides = [1, 1]} : vector<8x384xf32> to vector<8x128xf32>
    %38 = arith.addf %37, %14 : vector<8x128xf32>
    %39 = arith.mulf %27, %38 : vector<8x128xf32>
    %40 = arith.addf %36, %39 : vector<8x128xf32>
    %41 = math.tanh %40 : vector<8x128xf32>
    %cst_16 = arith.constant 1.000000e+00 : f32
    %42 = vector.broadcast %cst_16 : f32 to vector<8x128xf32>
    %43 = arith.subf %42, %35 : vector<8x128xf32>
    %44 = arith.mulf %43, %41 : vector<8x128xf32>
    %45 = arith.mulf %35, %15 : vector<8x128xf32>
    %46 = arith.addf %44, %45 : vector<8x128xf32>
    %c0_17 = arith.constant 0 : index
    %c0_18 = arith.constant 0 : index
    %c0_19 = arith.constant 0 : index
    %47 = vector.load %arg10[%c0_17, %c0_18, %c0_19] : memref<8x8x128xf32, #tpu.memory_space<vmem>>, vector<1x8x128xf32>
    %48 = vector.shape_cast %47 : vector<1x8x128xf32> to vector<8x128xf32>
    %49 = vector.shape_cast %46 : vector<8x128xf32> to vector<1x8x128xf32>
    tpu.vector_store %arg10[%c0_17, %c0_18, %c0_19], %49 {strides = array<i32>} : memref<8x8x128xf32, #tpu.memory_space<vmem>>, vector<1x8x128xf32>,
    %50 = arith.truncf %46 : vector<8x128xf32> to vector<8x128xbf16>
    %cst_20 = arith.constant dense<0.000000e+00> : vector<8x384xf32>
    %51 = tpu.matmul %50, %11, %cst_20 {dimension_numbers = #tpu.dot_dimension_numbers<[1], [0], [0], [1], [0, 0, 1, 1], [], []>} : vector<8x128xbf16>, vector<128x384xbf16>, vector<8x384xf32> -> vector<8x384xf32>
    %52 = vector.extract_strided_slice %10 {offsets = [1, 0, 0], sizes = [1, 8, 384], strides = [1, 1, 1]} : vector<8x8x384xf32> to vector<1x8x384xf32>
    %53 = vector.shape_cast %52 : vector<1x8x384xf32> to vector<8x384xf32>
    %54 = vector.extract_strided_slice %53 {offsets = [0, 0], sizes = [8, 128], strides = [1, 1]} : vector<8x384xf32> to vector<8x128xf32>
    %55 = vector.extract_strided_slice %51 {offsets = [0, 0], sizes = [8, 128], strides = [1, 1]} : vector<8x384xf32> to vector<8x128xf32>
    %56 = arith.addf %54, %55 : vector<8x128xf32>
    %57 = arith.negf %56 : vector<8x128xf32>
    %58 = math.exp %57 : vector<8x128xf32>
    %cst_21 = arith.constant 1.000000e+00 : f32
    %59 = vector.broadcast %cst_21 : f32 to vector<8x128xf32>
    %60 = arith.addf %59, %58 : vector<8x128xf32>
    %61 = arith.divf %59, %60 : vector<8x128xf32>
    %62 = vector.extract_strided_slice %53 {offsets = [0, 128], sizes = [8, 128], strides = [1, 1]} : vector<8x384xf32> to vector<8x128xf32>
    %63 = vector.extract_strided_slice %51 {offsets = [0, 128], sizes = [8, 128], strides = [1, 1]} : vector<8x384xf32> to vector<8x128xf32>
    %64 = arith.addf %62, %63 : vector<8x128xf32>
    %65 = arith.negf %64 : vector<8x128xf32>
    %66 = math.exp %65 : vector<8x128xf32>
    %cst_22 = arith.constant 1.000000e+00 : f32
    %67 = vector.broadcast %cst_22 : f32 to vector<8x128xf32>
    %68 = arith.addf %67, %66 : vector<8x128xf32>
    %69 = arith.divf %67, %68 : vector<8x128xf32>
    %70 = vector.extract_strided_slice %53 {offsets = [0, 256], sizes = [8, 128], strides = [1, 1]} : vector<8x384xf32> to vector<8x128xf32>
    %71 = vector.extract_strided_slice %51 {offsets = [0, 256], sizes = [8, 128], strides = [1, 1]} : vector<8x384xf32> to vector<8x128xf32>
    %72 = arith.addf %71, %14 : vector<8x128xf32>
    %73 = arith.mulf %61, %72 : vector<8x128xf32>
    %74 = arith.addf %70, %73 : vector<8x128xf32>
    %75 = math.tanh %74 : vector<8x128xf32>
    %cst_23 = arith.constant 1.000000e+00 : f32
    %76 = vector.broadcast %cst_23 : f32 to vector<8x128xf32>
    %77 = arith.subf %76, %69 : vector<8x128xf32>
    %78 = arith.mulf %77, %75 : vector<8x128xf32>
    %79 = arith.mulf %69, %46 : vector<8x128xf32>
    %80 = arith.addf %78, %79 : vector<8x128xf32>
    %c1 = arith.constant 1 : index
    %c0_24 = arith.constant 0 : index
    %c0_25 = arith.constant 0 : index
    %81 = vector.load %arg10[%c1, %c0_24, %c0_25] : memref<8x8x128xf32, #tpu.memory_space<vmem>>, vector<1x8x128xf32>
    %82 = vector.shape_cast %81 : vector<1x8x128xf32> to vector<8x128xf32>
    %83 = vector.shape_cast %80 : vector<8x128xf32> to vector<1x8x128xf32>
    tpu.vector_store %arg10[%c1, %c0_24, %c0_25], %83 {strides = array<i32>} : memref<8x8x128xf32, #tpu.memory_space<vmem>>, vector<1x8x128xf32>,
    %84 = arith.truncf %80 : vector<8x128xf32> to vector<8x128xbf16>
    %cst_26 = arith.constant dense<0.000000e+00> : vector<8x384xf32>
    %85 = tpu.matmul %84, %11, %cst_26 {dimension_numbers = #tpu.dot_dimension_numbers<[1], [0], [0], [1], [0, 0, 1, 1], [], []>} : vector<8x128xbf16>, vector<128x384xbf16>, vector<8x384xf32> -> vector<8x384xf32>
    %86 = vector.extract_strided_slice %10 {offsets = [2, 0, 0], sizes = [1, 8, 384], strides = [1, 1, 1]} : vector<8x8x384xf32> to vector<1x8x384xf32>
    %87 = vector.shape_cast %86 : vector<1x8x384xf32> to vector<8x384xf32>
    %88 = vector.extract_strided_slice %87 {offsets = [0, 0], sizes = [8, 128], strides = [1, 1]} : vector<8x384xf32> to vector<8x128xf32>
    %89 = vector.extract_strided_slice %85 {offsets = [0, 0], sizes = [8, 128], strides = [1, 1]} : vector<8x384xf32> to vector<8x128xf32>
    %90 = arith.addf %88, %89 : vector<8x128xf32>
    %91 = arith.negf %90 : vector<8x128xf32>
    %92 = math.exp %91 : vector<8x128xf32>
    %cst_27 = arith.constant 1.000000e+00 : f32
    %93 = vector.broadcast %cst_27 : f32 to vector<8x128xf32>
    %94 = arith.addf %93, %92 : vector<8x128xf32>
    %95 = arith.divf %93, %94 : vector<8x128xf32>
    %96 = vector.extract_strided_slice %87 {offsets = [0, 128], sizes = [8, 128], strides = [1, 1]} : vector<8x384xf32> to vector<8x128xf32>
    %97 = vector.extract_strided_slice %85 {offsets = [0, 128], sizes = [8, 128], strides = [1, 1]} : vector<8x384xf32> to vector<8x128xf32>
    %98 = arith.addf %96, %97 : vector<8x128xf32>
    %99 = arith.negf %98 : vector<8x128xf32>
    %100 = math.exp %99 : vector<8x128xf32>
    %cst_28 = arith.constant 1.000000e+00 : f32
    %101 = vector.broadcast %cst_28 : f32 to vector<8x128xf32>
    %102 = arith.addf %101, %100 : vector<8x128xf32>
    %103 = arith.divf %101, %102 : vector<8x128xf32>
    %104 = vector.extract_strided_slice %87 {offsets = [0, 256], sizes = [8, 128], strides = [1, 1]} : vector<8x384xf32> to vector<8x128xf32>
    %105 = vector.extract_strided_slice %85 {offsets = [0, 256], sizes = [8, 128], strides = [1, 1]} : vector<8x384xf32> to vector<8x128xf32>
    %106 = arith.addf %105, %14 : vector<8x128xf32>
    %107 = arith.mulf %95, %106 : vector<8x128xf32>
    %108 = arith.addf %104, %107 : vector<8x128xf32>
    %109 = math.tanh %108 : vector<8x128xf32>
    %cst_29 = arith.constant 1.000000e+00 : f32
    %110 = vector.broadcast %cst_29 : f32 to vector<8x128xf32>
    %111 = arith.subf %110, %103 : vector<8x128xf32>
    %112 = arith.mulf %111, %109 : vector<8x128xf32>
    %113 = arith.mulf %103, %80 : vector<8x128xf32>
    %114 = arith.addf %112, %113 : vector<8x128xf32>
    %c2 = arith.constant 2 : index
    %c0_30 = arith.constant 0 : index
    %c0_31 = arith.constant 0 : index
    %115 = vector.load %arg10[%c2, %c0_30, %c0_31] : memref<8x8x128xf32, #tpu.memory_space<vmem>>, vector<1x8x128xf32>
    %116 = vector.shape_cast %115 : vector<1x8x128xf32> to vector<8x128xf32>
    %117 = vector.shape_cast %114 : vector<8x128xf32> to vector<1x8x128xf32>
    tpu.vector_store %arg10[%c2, %c0_30, %c0_31], %117 {strides = array<i32>} : memref<8x8x128xf32, #tpu.memory_space<vmem>>, vector<1x8x128xf32>,
    %118 = arith.truncf %114 : vector<8x128xf32> to vector<8x128xbf16>
    %cst_32 = arith.constant dense<0.000000e+00> : vector<8x384xf32>
    %119 = tpu.matmul %118, %11, %cst_32 {dimension_numbers = #tpu.dot_dimension_numbers<[1], [0], [0], [1], [0, 0, 1, 1], [], []>} : vector<8x128xbf16>, vector<128x384xbf16>, vector<8x384xf32> -> vector<8x384xf32>
    %120 = vector.extract_strided_slice %10 {offsets = [3, 0, 0], sizes = [1, 8, 384], strides = [1, 1, 1]} : vector<8x8x384xf32> to vector<1x8x384xf32>
    %121 = vector.shape_cast %120 : vector<1x8x384xf32> to vector<8x384xf32>
    %122 = vector.extract_strided_slice %121 {offsets = [0, 0], sizes = [8, 128], strides = [1, 1]} : vector<8x384xf32> to vector<8x128xf32>
    %123 = vector.extract_strided_slice %119 {offsets = [0, 0], sizes = [8, 128], strides = [1, 1]} : vector<8x384xf32> to vector<8x128xf32>
    %124 = arith.addf %122, %123 : vector<8x128xf32>
    %125 = arith.negf %124 : vector<8x128xf32>
    %126 = math.exp %125 : vector<8x128xf32>
    %cst_33 = arith.constant 1.000000e+00 : f32
    %127 = vector.broadcast %cst_33 : f32 to vector<8x128xf32>
    %128 = arith.addf %127, %126 : vector<8x128xf32>
    %129 = arith.divf %127, %128 : vector<8x128xf32>
    %130 = vector.extract_strided_slice %121 {offsets = [0, 128], sizes = [8, 128], strides = [1, 1]} : vector<8x384xf32> to vector<8x128xf32>
    %131 = vector.extract_strided_slice %119 {offsets = [0, 128], sizes = [8, 128], strides = [1, 1]} : vector<8x384xf32> to vector<8x128xf32>
    %132 = arith.addf %130, %131 : vector<8x128xf32>
    %133 = arith.negf %132 : vector<8x128xf32>
    %134 = math.exp %133 : vector<8x128xf32>
    %cst_34 = arith.constant 1.000000e+00 : f32
    %135 = vector.broadcast %cst_34 : f32 to vector<8x128xf32>
    %136 = arith.addf %135, %134 : vector<8x128xf32>
    %137 = arith.divf %135, %136 : vector<8x128xf32>
    %138 = vector.extract_strided_slice %121 {offsets = [0, 256], sizes = [8, 128], strides = [1, 1]} : vector<8x384xf32> to vector<8x128xf32>
    %139 = vector.extract_strided_slice %119 {offsets = [0, 256], sizes = [8, 128], strides = [1, 1]} : vector<8x384xf32> to vector<8x128xf32>
    %140 = arith.addf %139, %14 : vector<8x128xf32>
    %141 = arith.mulf %129, %140 : vector<8x128xf32>
    %142 = arith.addf %138, %141 : vector<8x128xf32>
    %143 = math.tanh %142 : vector<8x128xf32>
    %cst_35 = arith.constant 1.000000e+00 : f32
    %144 = vector.broadcast %cst_35 : f32 to vector<8x128xf32>
    %145 = arith.subf %144, %137 : vector<8x128xf32>
    %146 = arith.mulf %145, %143 : vector<8x128xf32>
    %147 = arith.mulf %137, %114 : vector<8x128xf32>
    %148 = arith.addf %146, %147 : vector<8x128xf32>
    %c3 = arith.constant 3 : index
    %c0_36 = arith.constant 0 : index
    %c0_37 = arith.constant 0 : index
    %149 = vector.load %arg10[%c3, %c0_36, %c0_37] : memref<8x8x128xf32, #tpu.memory_space<vmem>>, vector<1x8x128xf32>
    %150 = vector.shape_cast %149 : vector<1x8x128xf32> to vector<8x128xf32>
    %151 = vector.shape_cast %148 : vector<8x128xf32> to vector<1x8x128xf32>
    tpu.vector_store %arg10[%c3, %c0_36, %c0_37], %151 {strides = array<i32>} : memref<8x8x128xf32, #tpu.memory_space<vmem>>, vector<1x8x128xf32>,
    %152 = arith.truncf %148 : vector<8x128xf32> to vector<8x128xbf16>
    %cst_38 = arith.constant dense<0.000000e+00> : vector<8x384xf32>
    %153 = tpu.matmul %152, %11, %cst_38 {dimension_numbers = #tpu.dot_dimension_numbers<[1], [0], [0], [1], [0, 0, 1, 1], [], []>} : vector<8x128xbf16>, vector<128x384xbf16>, vector<8x384xf32> -> vector<8x384xf32>
    %154 = vector.extract_strided_slice %10 {offsets = [4, 0, 0], sizes = [1, 8, 384], strides = [1, 1, 1]} : vector<8x8x384xf32> to vector<1x8x384xf32>
    %155 = vector.shape_cast %154 : vector<1x8x384xf32> to vector<8x384xf32>
    %156 = vector.extract_strided_slice %155 {offsets = [0, 0], sizes = [8, 128], strides = [1, 1]} : vector<8x384xf32> to vector<8x128xf32>
    %157 = vector.extract_strided_slice %153 {offsets = [0, 0], sizes = [8, 128], strides = [1, 1]} : vector<8x384xf32> to vector<8x128xf32>
    %158 = arith.addf %156, %157 : vector<8x128xf32>
    %159 = arith.negf %158 : vector<8x128xf32>
    %160 = math.exp %159 : vector<8x128xf32>
    %cst_39 = arith.constant 1.000000e+00 : f32
    %161 = vector.broadcast %cst_39 : f32 to vector<8x128xf32>
    %162 = arith.addf %161, %160 : vector<8x128xf32>
    %163 = arith.divf %161, %162 : vector<8x128xf32>
    %164 = vector.extract_strided_slice %155 {offsets = [0, 128], sizes = [8, 128], strides = [1, 1]} : vector<8x384xf32> to vector<8x128xf32>
    %165 = vector.extract_strided_slice %153 {offsets = [0, 128], sizes = [8, 128], strides = [1, 1]} : vector<8x384xf32> to vector<8x128xf32>
    %166 = arith.addf %164, %165 : vector<8x128xf32>
    %167 = arith.negf %166 : vector<8x128xf32>
    %168 = math.exp %167 : vector<8x128xf32>
    %cst_40 = arith.constant 1.000000e+00 : f32
    %169 = vector.broadcast %cst_40 : f32 to vector<8x128xf32>
    %170 = arith.addf %169, %168 : vector<8x128xf32>
    %171 = arith.divf %169, %170 : vector<8x128xf32>
    %172 = vector.extract_strided_slice %155 {offsets = [0, 256], sizes = [8, 128], strides = [1, 1]} : vector<8x384xf32> to vector<8x128xf32>
    %173 = vector.extract_strided_slice %153 {offsets = [0, 256], sizes = [8, 128], strides = [1, 1]} : vector<8x384xf32> to vector<8x128xf32>
    %174 = arith.addf %173, %14 : vector<8x128xf32>
    %175 = arith.mulf %163, %174 : vector<8x128xf32>
    %176 = arith.addf %172, %175 : vector<8x128xf32>
    %177 = math.tanh %176 : vector<8x128xf32>
    %cst_41 = arith.constant 1.000000e+00 : f32
    %178 = vector.broadcast %cst_41 : f32 to vector<8x128xf32>
    %179 = arith.subf %178, %171 : vector<8x128xf32>
    %180 = arith.mulf %179, %177 : vector<8x128xf32>
    %181 = arith.mulf %171, %148 : vector<8x128xf32>
    %182 = arith.addf %180, %181 : vector<8x128xf32>
    %c4 = arith.constant 4 : index
    %c0_42 = arith.constant 0 : index
    %c0_43 = arith.constant 0 : index
    %183 = vector.load %arg10[%c4, %c0_42, %c0_43] : memref<8x8x128xf32, #tpu.memory_space<vmem>>, vector<1x8x128xf32>
    %184 = vector.shape_cast %183 : vector<1x8x128xf32> to vector<8x128xf32>
    %185 = vector.shape_cast %182 : vector<8x128xf32> to vector<1x8x128xf32>
    tpu.vector_store %arg10[%c4, %c0_42, %c0_43], %185 {strides = array<i32>} : memref<8x8x128xf32, #tpu.memory_space<vmem>>, vector<1x8x128xf32>,
    %186 = arith.truncf %182 : vector<8x128xf32> to vector<8x128xbf16>
    %cst_44 = arith.constant dense<0.000000e+00> : vector<8x384xf32>
    %187 = tpu.matmul %186, %11, %cst_44 {dimension_numbers = #tpu.dot_dimension_numbers<[1], [0], [0], [1], [0, 0, 1, 1], [], []>} : vector<8x128xbf16>, vector<128x384xbf16>, vector<8x384xf32> -> vector<8x384xf32>
    %188 = vector.extract_strided_slice %10 {offsets = [5, 0, 0], sizes = [1, 8, 384], strides = [1, 1, 1]} : vector<8x8x384xf32> to vector<1x8x384xf32>
    %189 = vector.shape_cast %188 : vector<1x8x384xf32> to vector<8x384xf32>
    %190 = vector.extract_strided_slice %189 {offsets = [0, 0], sizes = [8, 128], strides = [1, 1]} : vector<8x384xf32> to vector<8x128xf32>
    %191 = vector.extract_strided_slice %187 {offsets = [0, 0], sizes = [8, 128], strides = [1, 1]} : vector<8x384xf32> to vector<8x128xf32>
    %192 = arith.addf %190, %191 : vector<8x128xf32>
    %193 = arith.negf %192 : vector<8x128xf32>
    %194 = math.exp %193 : vector<8x128xf32>
    %cst_45 = arith.constant 1.000000e+00 : f32
    %195 = vector.broadcast %cst_45 : f32 to vector<8x128xf32>
    %196 = arith.addf %195, %194 : vector<8x128xf32>
    %197 = arith.divf %195, %196 : vector<8x128xf32>
    %198 = vector.extract_strided_slice %189 {offsets = [0, 128], sizes = [8, 128], strides = [1, 1]} : vector<8x384xf32> to vector<8x128xf32>
    %199 = vector.extract_strided_slice %187 {offsets = [0, 128], sizes = [8, 128], strides = [1, 1]} : vector<8x384xf32> to vector<8x128xf32>
    %200 = arith.addf %198, %199 : vector<8x128xf32>
    %201 = arith.negf %200 : vector<8x128xf32>
    %202 = math.exp %201 : vector<8x128xf32>
    %cst_46 = arith.constant 1.000000e+00 : f32
    %203 = vector.broadcast %cst_46 : f32 to vector<8x128xf32>
    %204 = arith.addf %203, %202 : vector<8x128xf32>
    %205 = arith.divf %203, %204 : vector<8x128xf32>
    %206 = vector.extract_strided_slice %189 {offsets = [0, 256], sizes = [8, 128], strides = [1, 1]} : vector<8x384xf32> to vector<8x128xf32>
    %207 = vector.extract_strided_slice %187 {offsets = [0, 256], sizes = [8, 128], strides = [1, 1]} : vector<8x384xf32> to vector<8x128xf32>
    %208 = arith.addf %207, %14 : vector<8x128xf32>
    %209 = arith.mulf %197, %208 : vector<8x128xf32>
    %210 = arith.addf %206, %209 : vector<8x128xf32>
    %211 = math.tanh %210 : vector<8x128xf32>
    %cst_47 = arith.constant 1.000000e+00 : f32
    %212 = vector.broadcast %cst_47 : f32 to vector<8x128xf32>
    %213 = arith.subf %212, %205 : vector<8x128xf32>
    %214 = arith.mulf %213, %211 : vector<8x128xf32>
    %215 = arith.mulf %205, %182 : vector<8x128xf32>
    %216 = arith.addf %214, %215 : vector<8x128xf32>
    %c5 = arith.constant 5 : index
    %c0_48 = arith.constant 0 : index
    %c0_49 = arith.constant 0 : index
    %217 = vector.load %arg10[%c5, %c0_48, %c0_49] : memref<8x8x128xf32, #tpu.memory_space<vmem>>, vector<1x8x128xf32>
    %218 = vector.shape_cast %217 : vector<1x8x128xf32> to vector<8x128xf32>
    %219 = vector.shape_cast %216 : vector<8x128xf32> to vector<1x8x128xf32>
    tpu.vector_store %arg10[%c5, %c0_48, %c0_49], %219 {strides = array<i32>} : memref<8x8x128xf32, #tpu.memory_space<vmem>>, vector<1x8x128xf32>,
    %220 = arith.truncf %216 : vector<8x128xf32> to vector<8x128xbf16>
    %cst_50 = arith.constant dense<0.000000e+00> : vector<8x384xf32>
    %221 = tpu.matmul %220, %11, %cst_50 {dimension_numbers = #tpu.dot_dimension_numbers<[1], [0], [0], [1], [0, 0, 1, 1], [], []>} : vector<8x128xbf16>, vector<128x384xbf16>, vector<8x384xf32> -> vector<8x384xf32>
    %222 = vector.extract_strided_slice %10 {offsets = [6, 0, 0], sizes = [1, 8, 384], strides = [1, 1, 1]} : vector<8x8x384xf32> to vector<1x8x384xf32>
    %223 = vector.shape_cast %222 : vector<1x8x384xf32> to vector<8x384xf32>
    %224 = vector.extract_strided_slice %223 {offsets = [0, 0], sizes = [8, 128], strides = [1, 1]} : vector<8x384xf32> to vector<8x128xf32>
    %225 = vector.extract_strided_slice %221 {offsets = [0, 0], sizes = [8, 128], strides = [1, 1]} : vector<8x384xf32> to vector<8x128xf32>
    %226 = arith.addf %224, %225 : vector<8x128xf32>
    %227 = arith.negf %226 : vector<8x128xf32>
    %228 = math.exp %227 : vector<8x128xf32>
    %cst_51 = arith.constant 1.000000e+00 : f32
    %229 = vector.broadcast %cst_51 : f32 to vector<8x128xf32>
    %230 = arith.addf %229, %228 : vector<8x128xf32>
    %231 = arith.divf %229, %230 : vector<8x128xf32>
    %232 = vector.extract_strided_slice %223 {offsets = [0, 128], sizes = [8, 128], strides = [1, 1]} : vector<8x384xf32> to vector<8x128xf32>
    %233 = vector.extract_strided_slice %221 {offsets = [0, 128], sizes = [8, 128], strides = [1, 1]} : vector<8x384xf32> to vector<8x128xf32>
    %234 = arith.addf %232, %233 : vector<8x128xf32>
    %235 = arith.negf %234 : vector<8x128xf32>
    %236 = math.exp %235 : vector<8x128xf32>
    %cst_52 = arith.constant 1.000000e+00 : f32
    %237 = vector.broadcast %cst_52 : f32 to vector<8x128xf32>
    %238 = arith.addf %237, %236 : vector<8x128xf32>
    %239 = arith.divf %237, %238 : vector<8x128xf32>
    %240 = vector.extract_strided_slice %223 {offsets = [0, 256], sizes = [8, 128], strides = [1, 1]} : vector<8x384xf32> to vector<8x128xf32>
    %241 = vector.extract_strided_slice %221 {offsets = [0, 256], sizes = [8, 128], strides = [1, 1]} : vector<8x384xf32> to vector<8x128xf32>
    %242 = arith.addf %241, %14 : vector<8x128xf32>
    %243 = arith.mulf %231, %242 : vector<8x128xf32>
    %244 = arith.addf %240, %243 : vector<8x128xf32>
    %245 = math.tanh %244 : vector<8x128xf32>
    %cst_53 = arith.constant 1.000000e+00 : f32
    %246 = vector.broadcast %cst_53 : f32 to vector<8x128xf32>
    %247 = arith.subf %246, %239 : vector<8x128xf32>
    %248 = arith.mulf %247, %245 : vector<8x128xf32>
    %249 = arith.mulf %239, %216 : vector<8x128xf32>
    %250 = arith.addf %248, %249 : vector<8x128xf32>
    %c6 = arith.constant 6 : index
    %c0_54 = arith.constant 0 : index
    %c0_55 = arith.constant 0 : index
    %251 = vector.load %arg10[%c6, %c0_54, %c0_55] : memref<8x8x128xf32, #tpu.memory_space<vmem>>, vector<1x8x128xf32>
    %252 = vector.shape_cast %251 : vector<1x8x128xf32> to vector<8x128xf32>
    %253 = vector.shape_cast %250 : vector<8x128xf32> to vector<1x8x128xf32>
    tpu.vector_store %arg10[%c6, %c0_54, %c0_55], %253 {strides = array<i32>} : memref<8x8x128xf32, #tpu.memory_space<vmem>>, vector<1x8x128xf32>,
    %254 = arith.truncf %250 : vector<8x128xf32> to vector<8x128xbf16>
    %cst_56 = arith.constant dense<0.000000e+00> : vector<8x384xf32>
    %255 = tpu.matmul %254, %11, %cst_56 {dimension_numbers = #tpu.dot_dimension_numbers<[1], [0], [0], [1], [0, 0, 1, 1], [], []>} : vector<8x128xbf16>, vector<128x384xbf16>, vector<8x384xf32> -> vector<8x384xf32>
    %256 = vector.extract_strided_slice %10 {offsets = [7, 0, 0], sizes = [1, 8, 384], strides = [1, 1, 1]} : vector<8x8x384xf32> to vector<1x8x384xf32>
    %257 = vector.shape_cast %256 : vector<1x8x384xf32> to vector<8x384xf32>
    %258 = vector.extract_strided_slice %257 {offsets = [0, 0], sizes = [8, 128], strides = [1, 1]} : vector<8x384xf32> to vector<8x128xf32>
    %259 = vector.extract_strided_slice %255 {offsets = [0, 0], sizes = [8, 128], strides = [1, 1]} : vector<8x384xf32> to vector<8x128xf32>
    %260 = arith.addf %258, %259 : vector<8x128xf32>
    %261 = arith.negf %260 : vector<8x128xf32>
    %262 = math.exp %261 : vector<8x128xf32>
    %cst_57 = arith.constant 1.000000e+00 : f32
    %263 = vector.broadcast %cst_57 : f32 to vector<8x128xf32>
    %264 = arith.addf %263, %262 : vector<8x128xf32>
    %265 = arith.divf %263, %264 : vector<8x128xf32>
    %266 = vector.extract_strided_slice %257 {offsets = [0, 128], sizes = [8, 128], strides = [1, 1]} : vector<8x384xf32> to vector<8x128xf32>
    %267 = vector.extract_strided_slice %255 {offsets = [0, 128], sizes = [8, 128], strides = [1, 1]} : vector<8x384xf32> to vector<8x128xf32>
    %268 = arith.addf %266, %267 : vector<8x128xf32>
    %269 = arith.negf %268 : vector<8x128xf32>
    %270 = math.exp %269 : vector<8x128xf32>
    %cst_58 = arith.constant 1.000000e+00 : f32
    %271 = vector.broadcast %cst_58 : f32 to vector<8x128xf32>
    %272 = arith.addf %271, %270 : vector<8x128xf32>
    %273 = arith.divf %271, %272 : vector<8x128xf32>
    %274 = vector.extract_strided_slice %257 {offsets = [0, 256], sizes = [8, 128], strides = [1, 1]} : vector<8x384xf32> to vector<8x128xf32>
    %275 = vector.extract_strided_slice %255 {offsets = [0, 256], sizes = [8, 128], strides = [1, 1]} : vector<8x384xf32> to vector<8x128xf32>
    %276 = arith.addf %275, %14 : vector<8x128xf32>
    %277 = arith.mulf %265, %276 : vector<8x128xf32>
    %278 = arith.addf %274, %277 : vector<8x128xf32>
    %279 = math.tanh %278 : vector<8x128xf32>
    %cst_59 = arith.constant 1.000000e+00 : f32
    %280 = vector.broadcast %cst_59 : f32 to vector<8x128xf32>
    %281 = arith.subf %280, %273 : vector<8x128xf32>
    %282 = arith.mulf %281, %279 : vector<8x128xf32>
    %283 = arith.mulf %273, %250 : vector<8x128xf32>
    %284 = arith.addf %282, %283 : vector<8x128xf32>
    %c7 = arith.constant 7 : index
    %c0_60 = arith.constant 0 : index
    %c0_61 = arith.constant 0 : index
    %285 = vector.load %arg10[%c7, %c0_60, %c0_61] : memref<8x8x128xf32, #tpu.memory_space<vmem>>, vector<1x8x128xf32>
    %286 = vector.shape_cast %285 : vector<1x8x128xf32> to vector<8x128xf32>
    %287 = vector.shape_cast %284 : vector<8x128xf32> to vector<1x8x128xf32>
    tpu.vector_store %arg10[%c7, %c0_60, %c0_61], %287 {strides = array<i32>} : memref<8x8x128xf32, #tpu.memory_space<vmem>>, vector<1x8x128xf32>,
    %c0_62 = arith.constant 0 : index
    %c0_63 = arith.constant 0 : index
    %288 = vector.load %arg9[%c0_62, %c0_63] : memref<8x128xf32, #tpu.memory_space<vmem>>, vector<8x128xf32>
    tpu.vector_store %arg9[%c0_62, %c0_63], %284 {strides = array<i32>} : memref<8x128xf32, #tpu.memory_space<vmem>>, vector<8x128xf32>,
    %c0_64 = arith.constant 0 : index
    %c0_65 = arith.constant 0 : index
    %c0_66 = arith.constant 0 : index
    %289 = vector.load %arg10[%c0_64, %c0_65, %c0_66] : memref<8x8x128xf32, #tpu.memory_space<vmem>>, vector<8x8x128xf32>
    %290 = vector.shape_cast %289 : vector<8x8x128xf32> to vector<64x128xf32>
    %291 = arith.truncf %290 : vector<64x128xf32> to vector<64x128xbf16>
    %c0_67 = arith.constant 0 : index
    %c0_68 = arith.constant 0 : index
    %292 = vector.load %arg6[%c0_67, %c0_68] : memref<128x128xbf16, #tpu.memory_space<vmem>>, vector<128x128xbf16>
    %cst_69 = arith.constant dense<0.000000e+00> : vector<64x128xf32>
    %293 = tpu.matmul %291, %292, %cst_69 {dimension_numbers = #tpu.dot_dimension_numbers<[1], [0], [0], [1], [0, 0, 1, 1], [], []>} : vector<64x128xbf16>, vector<128x128xbf16>, vector<64x128xf32> -> vector<64x128xf32>
    %c0_70 = arith.constant 0 : index
    %c0_71 = arith.constant 0 : index
    %294 = vector.load %arg7[%c0_70, %c0_71] : memref<1x128xf32, #tpu.memory_space<vmem>>, vector<1x128xf32>
    %295 = vector.broadcast %294 : vector<1x128xf32> to vector<64x128xf32>
    %296 = arith.addf %293, %295 : vector<64x128xf32>
    %297 = vector.shape_cast %296 : vector<64x128xf32> to vector<8x8x128xf32>
    %c0_72 = arith.constant 0 : index
    %c0_73 = arith.constant 0 : index
    %c0_74 = arith.constant 0 : index
    %298 = vector.load %arg8[%c0_72, %c0_73, %c0_74] : memref<8x8x128xf32, #tpu.memory_space<vmem>>, vector<8x8x128xf32>
    tpu.vector_store %arg8[%c0_72, %c0_73, %c0_74], %297 {strides = array<i32>} : memref<8x8x128xf32, #tpu.memory_space<vmem>>, vector<8x8x128xf32>,
    return
  }
  func.func @transform_0(%arg0: i32) -> (i32, i32, i32) {
    %c0_i32 = arith.constant 0 : i32
    %c0_i32_0 = arith.constant 0 : i32
    %c0_i32_1 = arith.constant 0 : i32
    return %arg0, %c0_i32, %c0_i32_0 : i32, i32, i32
  }
  func.func @transform_1(%arg0: i32) -> (i32, i32) {
    %c0_i32 = arith.constant 0 : i32
    %c0_i32_0 = arith.constant 0 : i32
    %c0_i32_1 = arith.constant 0 : i32
    return %c0_i32, %c0_i32_0 : i32, i32
  }
  func.func @transform_2(%arg0: i32) -> (i32, i32) {
    %c0_i32 = arith.constant 0 : i32
    %c0_i32_0 = arith.constant 0 : i32
    %c0_i32_1 = arith.constant 0 : i32
    return %c0_i32, %c0_i32_0 : i32, i32
  }
  func.func @transform_3(%arg0: i32) -> (i32, i32) {
    %c0_i32 = arith.constant 0 : i32
    %c0_i32_0 = arith.constant 0 : i32
    %c0_i32_1 = arith.constant 0 : i32
    return %c0_i32, %c0_i32_0 : i32, i32
  }
  func.func @transform_4(%arg0: i32) -> (i32, i32) {
    %c0_i32 = arith.constant 0 : i32
    %c0_i32_0 = arith.constant 0 : i32
    %c0_i32_1 = arith.constant 0 : i32
    return %c0_i32, %c0_i32_0 : i32, i32
  }
  func.func @transform_5(%arg0: i32) -> (i32, i32) {
    %c0_i32 = arith.constant 0 : i32
    %c0_i32_0 = arith.constant 0 : i32
    %c0_i32_1 = arith.constant 0 : i32
    return %c0_i32, %c0_i32_0 : i32, i32
  }
  func.func @transform_6(%arg0: i32) -> (i32, i32) {
    %c0_i32 = arith.constant 0 : i32
    %c0_i32_0 = arith.constant 0 : i32
    %c0_i32_1 = arith.constant 0 : i32
    return %c0_i32, %c0_i32_0 : i32, i32
  }
  func.func @transform_7(%arg0: i32) -> (i32, i32, i32) {
    %c0_i32 = arith.constant 0 : i32
    %c0_i32_0 = arith.constant 0 : i32
    %c0_i32_1 = arith.constant 0 : i32
    return %arg0, %c0_i32, %c0_i32_0 : i32, i32, i32
  }
}

</mosaic_0001>

<llo_original>
// kernel: simple_gru_forward.2
$region0: #{simple_gru_forward.2}
  #allocation0 [shape = 'u32[]', space=smem, size = 0x4, offset = 0x4, fixed_abs, tag = 'smem constant byte address 0x4 - core index']
  #allocation1 [shape = 'u32[72,128]{1,0:T(1,128)}', space=vmem, size = 0x9000, scoped, tag = 'internal scratch']
  #allocation2 [shape = 'f32[8,128]{1,0:T(8,128)}', space=vmem, size = 0x1000, scoped, tag = 'scratch operand']
  #allocation3 [shape = 'f32[8,8,128]{2,1,0:T(8,128)}', space=vmem, size = 0x8000, scoped, tag = 'scratch operand']
  %s0 = inlined_call_operand.vmem [shape: bf16[8,8,16], index: 0, kind: input, shape index: {}]
  %s1 = inlined_call_operand.hbm [shape: bf16[16,384], index: 1, kind: input, shape index: {}]
  %s2 = inlined_call_operand.hbm [shape: bf16[128,384], index: 2, kind: input, shape index: {}]
  %s3 = inlined_call_operand.vmem [shape: f32[1,384], index: 3, kind: input, shape index: {}]
  %s4 = inlined_call_operand.hbm [shape: f32[1,128], index: 4, kind: input, shape index: {}]
  %s5 = inlined_call_operand.vmem [shape: bf16[8,8,128], index: 5, kind: output, shape index: {}]
  %s6 = sld [smem:[#allocation0]]
  $region46: #{simple_gru_forward.2} parent=0
    _
  %s8 = ssub.s32 1, %s6
  %s9 = scalar_select 0, %s8, %s6
  $region1: #{simple_gru_forward.2} parent=0
    #allocation4 [shape = 'u8[12288]{0}', space=vmem, size = 0x3000, scoped, tag = 'input window, operand 1, single buffered']
    #allocation5 [shape = 's32[1]{0}', space=sflag, size = 0x4, scoped, tag = 'scoped memory for simple_gru_forward.2']
    #allocation6 [shape = 'u8[98304]{0}', space=vmem, size = 0x18000, scoped, tag = 'input window, operand 2, single buffered']
    #allocation7 [shape = 's32[1]{0}', space=sflag, size = 0x4, scoped, tag = 'scoped memory for simple_gru_forward.2']
    #allocation8 [shape = 'u8[512]{0}', space=vmem, size = 0x400, scoped, tag = 'input window, operand 4, single buffered']
    %10 = vsyncpa [#allocation5], 0
    %11 = vsyncpa [#allocation7], 0
    // Predicated region
    $region2: #{simple_gru_forward.2} parent=1 // pred_check
      _
    $region3: #{simple_gru_forward.2} parent=1 // pred_check_branch
      %13 = sbr.rel (0) target = $region5
    $region4: #{simple_gru_forward.2} parent=1 // pred_region
      _
    $region5: #{simple_gru_forward.2} parent=1 // pred_fallthru
      _
    // Predicated region
    $region6: #{simple_gru_forward.2} parent=1 // pred_check
      _
    $region7: #{simple_gru_forward.2} parent=1 // pred_check_branch
      %15 = sbr.rel (0) target = $region9
    $region8: #{simple_gru_forward.2} parent=1 // pred_region
      %17 = vsyncadd [#allocation5], 0
      %s18 = sshll.u32 %s1, 4
      %s19 = int_to_ptr.hbm [resolvable:$true] %s18
      %s20 = sshll.u32 [#allocation4], 4
      %s21 = int_to_ptr.vmem [resolvable:$true] %s20
      %26 = dma.hbm_to_vmem [thread:$0]  %s19, 384, %s21, [#allocation5], 192, 192, 12
    $region9: #{simple_gru_forward.2} parent=1 // pred_fallthru
      _
    // Predicated region
    $region10: #{simple_gru_forward.2} parent=1 // pred_check
      _
    $region11: #{simple_gru_forward.2} parent=1 // pred_check_branch
      %28 = sbr.rel (0) target = $region13
    $region12: #{simple_gru_forward.2} parent=1 // pred_region
      %30 = vsyncadd [#allocation7], 0
      %s31 = sshll.u32 %s2, 4
      %s32 = int_to_ptr.hbm [resolvable:$true] %s31
      %s33 = sshll.u32 [#allocation6], 4
      %s34 = int_to_ptr.vmem [resolvable:$true] %s33
      %39 = dma.hbm_to_vmem [thread:$0]  %s32, 3072, %s34, [#allocation7], 192, 192, 12
    $region13: #{simple_gru_forward.2} parent=1 // pred_fallthru
      _
    // Predicated region
    $region14: #{simple_gru_forward.2} parent=1 // pred_check
      _
    $region15: #{simple_gru_forward.2} parent=1 // pred_check_branch
      %41 = sbr.rel (0) target = $region17
    $region16: #{simple_gru_forward.2} parent=1 // pred_region
      _
    $region17: #{simple_gru_forward.2} parent=1 // pred_fallthru
      _
    // Predicated region
    $region18: #{simple_gru_forward.2} parent=1 // pred_check
      _
    $region19: #{simple_gru_forward.2} parent=1 // pred_check_branch
      %43 = sbr.rel (0) target = $region21
    $region20: #{simple_gru_forward.2} parent=1 // pred_region
      %45 = vsyncadd [#allocation7], 0
      %s47 = sshll.u32 %s4, 4
      %s48 = int_to_ptr.hbm [resolvable:$true] %s47
      %s49 = sshll.u32 [#allocation8], 4
      %s50 = int_to_ptr.vmem [resolvable:$true] %s49
      %52 = dma.hbm_to_vmem [thread:$0]  %s48, 16, %s50, [#allocation7]
    $region21: #{simple_gru_forward.2} parent=1 // pred_fallthru
      _
    // Predicated region
    $region22: #{simple_gru_forward.2} parent=1 // pred_check
      _
    $region23: #{simple_gru_forward.2} parent=1 // pred_check_branch
      %54 = sbr.rel (0) target = $region25
    $region24: #{simple_gru_forward.2} parent=1 // pred_region
      %56 = dma.done [#allocation5], 384
    $region25: #{simple_gru_forward.2} parent=1 // pred_fallthru
      _
    // Predicated region
    $region26: #{simple_gru_forward.2} parent=1 // pred_check
      _
    $region27: #{simple_gru_forward.2} parent=1 // pred_check_branch
      %58 = sbr.rel (0) target = $region29
    $region28: #{simple_gru_forward.2} parent=1 // pred_region
      %60 = dma.done [#allocation7], 3072
    $region29: #{simple_gru_forward.2} parent=1 // pred_fallthru
      _
    // Predicated region
    $region30: #{simple_gru_forward.2} parent=1 // pred_check
      _
    $region31: #{simple_gru_forward.2} parent=1 // pred_check_branch
      %62 = sbr.rel (0) target = $region33
    $region32: #{simple_gru_forward.2} parent=1 // pred_region
      %64 = dma.done [#allocation7], 16
    $region33: #{simple_gru_forward.2} parent=1 // pred_fallthru
      _
    %p66 = scmp.eq.s32.totalorder 0, 0
    // Predicated region
    $region34: #{simple_gru_forward.2} parent=1 // pred_check
      %p67 = pneg %p66
    $region35: #{simple_gru_forward.2} parent=1 // pred_check_branch
      %69 = sbr.rel (%p67) target = $region37
    $region36: #{simple_gru_forward.2} parent=1 // pred_region
      %70 = vst [vmem:[#allocation2] sm:$0xff] 0.0
    $region37: #{simple_gru_forward.2} parent=1 // pred_fallthru
      _
    %v71 = vld [vmem:[%s0] sm:$0xf]
    %v72 = vld [vmem:[%s0 + $0x4] sm:$0xf]
    %v73 = vld [vmem:[%s0 + $0x8] sm:$0xf]
    %v74 = vld [vmem:[%s0 + $0xc] sm:$0xf]
    %v75 = vld [vmem:[%s0 + $0x10] sm:$0xf]
    %v76 = vld [vmem:[%s0 + $0x14] sm:$0xf]
    %v77 = vld [vmem:[%s0 + $0x18] sm:$0xf]
    %v78 = vld [vmem:[%s0 + $0x1c] sm:$0xf]
    %v79 = vld [vmem:[#allocation4] sm:$0xff]
    %v80 = vld [vmem:[#allocation4 + $0x8] sm:$0xf]
    %v81 = vld [vmem:[#allocation4 + $0xc] sm:$0xff]
    %v82 = vld [vmem:[#allocation4 + $0x14] sm:$0xf]
    %v83 = vld [vmem:[%s3] sm:$0x7]
    %v85 = vperm.slane %v83, 0
    %v86 = vperm.slane %v83, 1
    %v87 = vperm.slane %v83, 2
    %v99 = vunpack.c.l.b16 %v71
    %v100 = vunpack.c.l.b16 %v72
    %v101 = vunpack.c.l.b16 %v73
    %v102 = vunpack.c.l.b16 %v74
    %v103 = vunpack.c.l.b16 %v75
    %v104 = vunpack.c.l.b16 %v76
    %v105 = vunpack.c.l.b16 %v77
    %v106 = vunpack.c.l.b16 %v78
    %v107 = vpack.c.b16 %v100, %v99
    %v108 = vpack.c.b16 %v102, %v101
    %v109 = vpack.c.b16 %v104, %v103
    %v110 = vpack.c.b16 %v106, %v105
    %v115 = vunpack.c.l.b16 %v79
    %v116 = vunpack.c.h.b16 %v79
    %v117 = vunpack.c.l.b16 %v80
    %v118 = vunpack.c.l.b16 %v81
    %v119 = vunpack.c.h.b16 %v81
    %v120 = vunpack.c.l.b16 %v82
    %v121 = vpack.c.b16 %v118, %v115
    %v122 = vpack.c.b16 %v119, %v116
    %v123 = vpack.c.b16 %v120, %v117
    %vm127 = vcmask 130048
    %v129 = vsel %vm127, %v107, 0
    %v132 = vsel %vm127, %v108, 0
    %v135 = vsel %vm127, %v109, 0
    %v138 = vsel %vm127, %v110, 0
    %140 = vmatpush.bf16.msra.mxu0 0
    %141 = vmatpush.bf16.msra.mxu0 0
    %142 = vmatpush.bf16.msra.mxu0 0
    %143 = vmatpush.bf16.msra.mxu0 0
    %144 = vmatpush.bf16.msra.mxu0 0
    %145 = vmatpush.bf16.msra.mxu0 0
    %146 = vmatpush.bf16.msra.mxu0 0
    %147 = vmatpush.bf16.msra.mxu0 %v121
    %148 = vmatmul.bf16.gmra.mxu0 %v129
    %v149 = vpop.f32.mrf.mxu0
    %v150 = vadd.f32 %v85, %v149
    %v151 = vpop.f32.mrf.mxu0
    %v152 = vadd.f32 %v85, %v151
    %153 = vmatmul.bf16.gmra.mxu0 %v132
    %v154 = vpop.f32.mrf.mxu0
    %v155 = vadd.f32 %v85, %v154
    %v156 = vpop.f32.mrf.mxu0
    %v157 = vadd.f32 %v85, %v156
    %158 = vmatmul.bf16.gmra.mxu0 %v135
    %v159 = vpop.f32.mrf.mxu0
    %v160 = vadd.f32 %v85, %v159
    %v161 = vpop.f32.mrf.mxu0
    %v162 = vadd.f32 %v85, %v161
    %163 = vmatmul.bf16.gmra.mxu0 %v138
    %v164 = vpop.f32.mrf.mxu0
    %v165 = vadd.f32 %v85, %v164
    %v166 = vpop.f32.mrf.mxu0
    %v167 = vadd.f32 %v85, %v166
    %168 = vdwg.mxu0
    %169 = vmatpush.bf16.msra.mxu0 0
    %170 = vmatpush.bf16.msra.mxu0 0
    %171 = vmatpush.bf16.msra.mxu0 0
    %172 = vmatpush.bf16.msra.mxu0 0
    %173 = vmatpush.bf16.msra.mxu0 0
    %174 = vmatpush.bf16.msra.mxu0 0
    %175 = vmatpush.bf16.msra.mxu0 0
    %176 = vmatpush.bf16.msra.mxu0 %v122
    %177 = vmatmul.bf16.gmra.mxu0 %v129
    %v178 = vpop.f32.mrf.mxu0
    %v179 = vadd.f32 %v86, %v178
    %v180 = vpop.f32.mrf.mxu0
    %v181 = vadd.f32 %v86, %v180
    %182 = vmatmul.bf16.gmra.mxu0 %v132
    %v183 = vpop.f32.mrf.mxu0
    %v184 = vadd.f32 %v86, %v183
    %v185 = vpop.f32.mrf.mxu0
    %v186 = vadd.f32 %v86, %v185
    %187 = vmatmul.bf16.gmra.mxu0 %v135
    %v188 = vpop.f32.mrf.mxu0
    %v189 = vadd.f32 %v86, %v188
    %v190 = vpop.f32.mrf.mxu0
    %v191 = vadd.f32 %v86, %v190
    %192 = vmatmul.bf16.gmra.mxu0 %v138
    %v193 = vpop.f32.mrf.mxu0
    %v194 = vadd.f32 %v86, %v193
    %v195 = vpop.f32.mrf.mxu0
    %v196 = vadd.f32 %v86, %v195
    %197 = vdwg.mxu0
    %198 = vmatpush.bf16.msra.mxu0 0
    %199 = vmatpush.bf16.msra.mxu0 0
    %200 = vmatpush.bf16.msra.mxu0 0
    %201 = vmatpush.bf16.msra.mxu0 0
    %202 = vmatpush.bf16.msra.mxu0 0
    %203 = vmatpush.bf16.msra.mxu0 0
    %204 = vmatpush.bf16.msra.mxu0 0
    %205 = vmatpush.bf16.msra.mxu0 %v123
    %206 = vmatmul.bf16.gmra.mxu0 %v129
    %v207 = vpop.f32.mrf.mxu0
    %v208 = vadd.f32 %v87, %v207
    %v209 = vpop.f32.mrf.mxu0
    %v210 = vadd.f32 %v87, %v209
    %211 = vmatmul.bf16.gmra.mxu0 %v132
    %v212 = vpop.f32.mrf.mxu0
    %v213 = vadd.f32 %v87, %v212
    %v214 = vpop.f32.mrf.mxu0
    %v215 = vadd.f32 %v87, %v214
    %216 = vmatmul.bf16.gmra.mxu0 %v135
    %v217 = vpop.f32.mrf.mxu0
    %v218 = vadd.f32 %v87, %v217
    %v219 = vpop.f32.mrf.mxu0
    %v220 = vadd.f32 %v87, %v219
    %221 = vmatmul.bf16.gmra.mxu0 %v138
    %v222 = vpop.f32.mrf.mxu0
    %v223 = vadd.f32 %v87, %v222
    %v224 = vpop.f32.mrf.mxu0
    %v225 = vadd.f32 %v87, %v224
    %226 = vdwg.mxu0
    %v227 = vld [vmem:[#allocation6] sm:$0xff]
    %v228 = vld [vmem:[#allocation6 + $0x8] sm:$0xf]
    %v229 = vld [vmem:[#allocation6 + $0xc] sm:$0xff]
    %v230 = vld [vmem:[#allocation6 + $0x14] sm:$0xf]
    %v231 = vld [vmem:[#allocation6 + $0x18] sm:$0xff]
    %v232 = vld [vmem:[#allocation6 + $0x20] sm:$0xf]
    %v233 = vld [vmem:[#allocation6 + $0x24] sm:$0xff]
    %v234 = vld [vmem:[#allocation6 + $0x2c] sm:$0xf]
    %v235 = vld [vmem:[#allocation6 + $0x30] sm:$0xff]
    %v236 = vld [vmem:[#allocation6 + $0x38] sm:$0xf]
    %v237 = vld [vmem:[#allocation6 + $0x3c] sm:$0xff]
    %v238 = vld [vmem:[#allocation6 + $0x44] sm:$0xf]
    %v239 = vld [vmem:[#allocation6 + $0x48] sm:$0xff]
    %v240 = vld [vmem:[#allocation6 + $0x50] sm:$0xf]
    %v241 = vld [vmem:[#allocation6 + $0x54] sm:$0xff]
    %v242 = vld [vmem:[#allocation6 + $0x5c] sm:$0xf]
    %v243 = vld [vmem:[#allocation6 + $0x60] sm:$0xff]
    %v244 = vld [vmem:[#allocation6 + $0x68] sm:$0xf]
    %v245 = vld [vmem:[#allocation6 + $0x6c] sm:$0xff]
    %v246 = vld [vmem:[#allocation6 + $0x74] sm:$0xf]
    %v247 = vld [vmem:[#allocation6 + $0x78] sm:$0xff]
    %v248 = vld [vmem:[#allocation6 + $0x80] sm:$0xf]
    %v249 = vld [vmem:[#allocation6 + $0x84] sm:$0xff]
    %v250 = vld [vmem:[#allocation6 + $0x8c] sm:$0xf]
    %v251 = vld [vmem:[#allocation6 + $0x90] sm:$0xff]
    %v252 = vld [vmem:[#allocation6 + $0x98] sm:$0xf]
    %v253 = vld [vmem:[#allocation6 + $0x9c] sm:$0xff]
    %v254 = vld [vmem:[#allocation6 + $0xa4] sm:$0xf]
    %v255 = vld [vmem:[#allocation6 + $0xa8] sm:$0xff]
    %v256 = vld [vmem:[#allocation6 + $0xb0] sm:$0xf]
    %v257 = vld [vmem:[#allocation6 + $0xb4] sm:$0xff]
    %v258 = vld [vmem:[#allocation6 + $0xbc] sm:$0xf]
    %v259 = vld [vmem:[#allocation8] sm:$0x1]
    %v261 = vperm.slane %v259, 0
    %v263 = vld [vmem:[#allocation2] sm:$0xff]
    %v264 = vpack.c.bf16 %v263, %v263
    %v297 = vunpack.c.l.b16 %v227
    %v298 = vunpack.c.h.b16 %v227
    %v299 = vunpack.c.l.b16 %v228
    %v300 = vunpack.c.l.b16 %v229
    %v301 = vunpack.c.h.b16 %v229
    %v302 = vunpack.c.l.b16 %v230
    %v303 = vunpack.c.l.b16 %v231
    %v304 = vunpack.c.h.b16 %v231
    %v305 = vunpack.c.l.b16 %v232
    %v306 = vunpack.c.l.b16 %v233
    %v307 = vunpack.c.h.b16 %v233
    %v308 = vunpack.c.l.b16 %v234
    %v309 = vunpack.c.l.b16 %v235
    %v310 = vunpack.c.h.b16 %v235
    %v311 = vunpack.c.l.b16 %v236
    %v312 = vunpack.c.l.b16 %v237
    %v313 = vunpack.c.h.b16 %v237
    %v314 = vunpack.c.l.b16 %v238
    %v315 = vunpack.c.l.b16 %v239
    %v316 = vunpack.c.h.b16 %v239
    %v317 = vunpack.c.l.b16 %v240
    %v318 = vunpack.c.l.b16 %v241
    %v319 = vunpack.c.h.b16 %v241
    %v320 = vunpack.c.l.b16 %v242
    %v321 = vunpack.c.l.b16 %v243
    %v322 = vunpack.c.h.b16 %v243
    %v323 = vunpack.c.l.b16 %v244
    %v324 = vunpack.c.l.b16 %v245
    %v325 = vunpack.c.h.b16 %v245
    %v326 = vunpack.c.l.b16 %v246
    %v327 = vunpack.c.l.b16 %v247
    %v328 = vunpack.c.h.b16 %v247
    %v329 = vunpack.c.l.b16 %v248
    %v330 = vunpack.c.l.b16 %v249
    %v331 = vunpack.c.h.b16 %v249
    %v332 = vunpack.c.l.b16 %v250
    %v333 = vunpack.c.l.b16 %v251
    %v334 = vunpack.c.h.b16 %v251
    %v335 = vunpack.c.l.b16 %v252
    %v336 = vunpack.c.l.b16 %v253
    %v337 = vunpack.c.h.b16 %v253
    %v338 = vunpack.c.l.b16 %v254
    %v339 = vunpack.c.l.b16 %v255
    %v340 = vunpack.c.h.b16 %v255
    %v341 = vunpack.c.l.b16 %v256
    %v342 = vunpack.c.l.b16 %v257
    %v343 = vunpack.c.h.b16 %v257
    %v344 = vunpack.c.l.b16 %v258
    %v345 = vpack.c.b16 %v300, %v297
    %v346 = vpack.c.b16 %v301, %v298
    %v347 = vpack.c.b16 %v302, %v299
    %v348 = vpack.c.b16 %v306, %v303
    %v349 = vpack.c.b16 %v307, %v304
    %v350 = vpack.c.b16 %v308, %v305
    %v351 = vpack.c.b16 %v312, %v309
    %v352 = vpack.c.b16 %v313, %v310
    %v353 = vpack.c.b16 %v314, %v311
    %v354 = vpack.c.b16 %v318, %v315
    %v355 = vpack.c.b16 %v319, %v316
    %v356 = vpack.c.b16 %v320, %v317
    %v357 = vpack.c.b16 %v324, %v321
    %v358 = vpack.c.b16 %v325, %v322
    %v359 = vpack.c.b16 %v326, %v323
    %v360 = vpack.c.b16 %v330, %v327
    %v361 = vpack.c.b16 %v331, %v328
    %v362 = vpack.c.b16 %v332, %v329
    %v363 = vpack.c.b16 %v336, %v333
    %v364 = vpack.c.b16 %v337, %v334
    %v365 = vpack.c.b16 %v338, %v335
    %v366 = vpack.c.b16 %v342, %v339
    %v367 = vpack.c.b16 %v343, %v340
    %v368 = vpack.c.b16 %v344, %v341
    %393 = vmatpush.bf16.msra.mxu0 %v366
    %394 = vmatpush.bf16.msra.mxu0 %v363
    %395 = vmatpush.bf16.msra.mxu0 %v360
    %396 = vmatpush.bf16.msra.mxu0 %v357
    %397 = vmatpush.bf16.msra.mxu0 %v354
    %398 = vmatpush.bf16.msra.mxu0 %v351
    %399 = vmatpush.bf16.msra.mxu0 %v348
    %400 = vmatpush.bf16.msra.mxu0 %v345
    %401 = vmatmul.bf16.gmra.mxu0 %v264
    %v402 = vpop.f32.mrf.mxu0
    %v403 = vadd.f32 0.0, %v402
    %v404 = vpop.f32.mrf.mxu0
    %405 = vdwg.mxu0
    %406 = vmatpush.bf16.msra.mxu0 %v367
    %407 = vmatpush.bf16.msra.mxu0 %v364
    %408 = vmatpush.bf16.msra.mxu0 %v361
    %409 = vmatpush.bf16.msra.mxu0 %v358
    %410 = vmatpush.bf16.msra.mxu0 %v355
    %411 = vmatpush.bf16.msra.mxu0 %v352
    %412 = vmatpush.bf16.msra.mxu0 %v349
    %413 = vmatpush.bf16.msra.mxu0 %v346
    %414 = vmatmul.bf16.gmra.mxu0 %v264
    %v415 = vpop.f32.mrf.mxu0
    %v416 = vadd.f32 0.0, %v415
    %v417 = vpop.f32.mrf.mxu0
    %418 = vdwg.mxu0
    %419 = vmatpush.bf16.msra.mxu0 %v368
    %420 = vmatpush.bf16.msra.mxu0 %v365
    %421 = vmatpush.bf16.msra.mxu0 %v362
    %422 = vmatpush.bf16.msra.mxu0 %v359
    %423 = vmatpush.bf16.msra.mxu0 %v356
    %424 = vmatpush.bf16.msra.mxu0 %v353
    %425 = vmatpush.bf16.msra.mxu0 %v350
    %426 = vmatpush.bf16.msra.mxu0 %v347
    %427 = vmatmul.bf16.gmra.mxu0 %v264
    %v428 = vpop.f32.mrf.mxu0
    %v429 = vadd.f32 0.0, %v428
    %v430 = vpop.f32.mrf.mxu0
    %431 = vdwg.mxu0
    %v432 = vadd.f32 %v150, %v403
    %v433 = vxor.u32 %v432, 2147483648
    %v434 = vmul.f32 %v433, 1.442695
    %v435 = vpow.pop %v434
    %v436 = vadd.f32 %v435, 1.0
    %v437 = vrcp.pop %v436
    %v438 = vmul.f32 %v436, %v437
    %v439 = vsub.f32 1.0, %v438
    %v440 = vmul.f32 %v437, %v439
    %v441 = vadd.f32 %v437, %v440
    %vm442 = vweird.f32 %v436
    %vm443 = vweird.f32 %v437
    %vm444 = vmor %vm442, %vm443
    %v445 = vsel %vm444, %v437, %v441
    %v446 = vand.u32 2147483647, %v436
    %vm447 = vcmp.eq.f32.partialorder %v446, 8.507059e+37
    %v448 = vand.u32 %v436, 2147483648
    %v449 = vor.u32 1.1754944e-38, %v448
    %v450 = vsel %vm447, %v449, %v445
    %v451 = vmul.f32 1.0, %v450
    %v452 = vadd.f32 %v179, %v416
    %v453 = vxor.u32 %v452, 2147483648
    %v454 = vmul.f32 %v453, 1.442695
    %v455 = vpow.pop %v454
    %v456 = vadd.f32 %v455, 1.0
    %v457 = vrcp.pop %v456
    %v458 = vmul.f32 %v456, %v457
    %v459 = vsub.f32 1.0, %v458
    %v460 = vmul.f32 %v457, %v459
    %v461 = vadd.f32 %v457, %v460
    %vm462 = vweird.f32 %v456
    %vm463 = vweird.f32 %v457
    %vm464 = vmor %vm462, %vm463
    %v465 = vsel %vm464, %v457, %v461
    %v466 = vand.u32 2147483647, %v456
    %vm467 = vcmp.eq.f32.partialorder %v466, 8.507059e+37
    %v468 = vand.u32 %v456, 2147483648
    %v469 = vor.u32 1.1754944e-38, %v468
    %v470 = vsel %vm467, %v469, %v465
    %v471 = vmul.f32 1.0, %v470
    %v472 = vadd.f32 %v429, %v261
    %v473 = vmul.f32 %v451, %v472
    %v474 = vadd.f32 %v208, %v473
    %v475 = vtanh.pop %v474
    %v476 = vsub.f32 1.0, %v471
    %v477 = vmul.f32 %v476, %v475
    %v478 = vmul.f32 %v471, %v263
    %v479 = vadd.f32 %v477, %v478
    %480 = vst [vmem:[#allocation3] sm:$0xff] %v479
    %v481 = vpack.c.bf16 %v479, %v479
    %482 = vmatpush.bf16.msra.mxu0 %v366
    %483 = vmatpush.bf16.msra.mxu0 %v363
    %484 = vmatpush.bf16.msra.mxu0 %v360
    %485 = vmatpush.bf16.msra.mxu0 %v357
    %486 = vmatpush.bf16.msra.mxu0 %v354
    %487 = vmatpush.bf16.msra.mxu0 %v351
    %488 = vmatpush.bf16.msra.mxu0 %v348
    %489 = vmatpush.bf16.msra.mxu0 %v345
    %490 = vmatmul.bf16.gmra.mxu0 %v481
    %v491 = vpop.f32.mrf.mxu0
    %v492 = vadd.f32 0.0, %v491
    %v493 = vpop.f32.mrf.mxu0
    %494 = vdwg.mxu0
    %495 = vmatpush.bf16.msra.mxu0 %v367
    %496 = vmatpush.bf16.msra.mxu0 %v364
    %497 = vmatpush.bf16.msra.mxu0 %v361
    %498 = vmatpush.bf16.msra.mxu0 %v358
    %499 = vmatpush.bf16.msra.mxu0 %v355
    %500 = vmatpush.bf16.msra.mxu0 %v352
    %501 = vmatpush.bf16.msra.mxu0 %v349
    %502 = vmatpush.bf16.msra.mxu0 %v346
    %503 = vmatmul.bf16.gmra.mxu0 %v481
    %v504 = vpop.f32.mrf.mxu0
    %v505 = vadd.f32 0.0, %v504
    %v506 = vpop.f32.mrf.mxu0
    %507 = vdwg.mxu0
    %508 = vmatpush.bf16.msra.mxu0 %v368
    %509 = vmatpush.bf16.msra.mxu0 %v365
    %510 = vmatpush.bf16.msra.mxu0 %v362
    %511 = vmatpush.bf16.msra.mxu0 %v359
    %512 = vmatpush.bf16.msra.mxu0 %v356
    %513 = vmatpush.bf16.msra.mxu0 %v353
    %514 = vmatpush.bf16.msra.mxu0 %v350
    %515 = vmatpush.bf16.msra.mxu0 %v347
    %516 = vmatmul.bf16.gmra.mxu0 %v481
    %v517 = vpop.f32.mrf.mxu0
    %v518 = vadd.f32 0.0, %v517
    %v519 = vpop.f32.mrf.mxu0
    %520 = vdwg.mxu0
    %v521 = vadd.f32 %v152, %v492
    %v522 = vxor.u32 %v521, 2147483648
    %v523 = vmul.f32 %v522, 1.442695
    %v524 = vpow.pop %v523
    %v525 = vadd.f32 %v524, 1.0
    %v526 = vrcp.pop %v525
    %v527 = vmul.f32 %v525, %v526
    %v528 = vsub.f32 1.0, %v527
    %v529 = vmul.f32 %v526, %v528
    %v530 = vadd.f32 %v526, %v529
    %vm531 = vweird.f32 %v525
    %vm532 = vweird.f32 %v526
    %vm533 = vmor %vm531, %vm532
    %v534 = vsel %vm533, %v526, %v530
    %v535 = vand.u32 2147483647, %v525
    %vm536 = vcmp.eq.f32.partialorder %v535, 8.507059e+37
    %v537 = vand.u32 %v525, 2147483648
    %v538 = vor.u32 1.1754944e-38, %v537
    %v539 = vsel %vm536, %v538, %v534
    %v540 = vmul.f32 1.0, %v539
    %v541 = vadd.f32 %v181, %v505
    %v542 = vxor.u32 %v541, 2147483648
    %v543 = vmul.f32 %v542, 1.442695
    %v544 = vpow.pop %v543
    %v545 = vadd.f32 %v544, 1.0
    %v546 = vrcp.pop %v545
    %v547 = vmul.f32 %v545, %v546
    %v548 = vsub.f32 1.0, %v547
    %v549 = vmul.f32 %v546, %v548
    %v550 = vadd.f32 %v546, %v549
    %vm551 = vweird.f32 %v545
    %vm552 = vweird.f32 %v546
    %vm553 = vmor %vm551, %vm552
    %v554 = vsel %vm553, %v546, %v550
    %v555 = vand.u32 2147483647, %v545
    %vm556 = vcmp.eq.f32.partialorder %v555, 8.507059e+37
    %v557 = vand.u32 %v545, 2147483648
    %v558 = vor.u32 1.1754944e-38, %v557
    %v559 = vsel %vm556, %v558, %v554
    %v560 = vmul.f32 1.0, %v559
    %v561 = vadd.f32 %v518, %v261
    %v562 = vmul.f32 %v540, %v561
    %v563 = vadd.f32 %v210, %v562
    %v564 = vtanh.pop %v563
    %v565 = vsub.f32 1.0, %v560
    %v566 = vmul.f32 %v565, %v564
    %v567 = vmul.f32 %v560, %v479
    %v568 = vadd.f32 %v566, %v567
    %s569 = scalar_lea.vmem [#allocation3], 8
    %570 = vst [vmem:[%s569] sm:$0xff] %v568
    %v571 = vpack.c.bf16 %v568, %v568
    %572 = vmatpush.bf16.msra.mxu0 %v366
    %573 = vmatpush.bf16.msra.mxu0 %v363
    %574 = vmatpush.bf16.msra.mxu0 %v360
    %575 = vmatpush.bf16.msra.mxu0 %v357
    %576 = vmatpush.bf16.msra.mxu0 %v354
    %577 = vmatpush.bf16.msra.mxu0 %v351
    %578 = vmatpush.bf16.msra.mxu0 %v348
    %579 = vmatpush.bf16.msra.mxu0 %v345
    %580 = vmatmul.bf16.gmra.mxu0 %v571
    %v581 = vpop.f32.mrf.mxu0
    %v582 = vadd.f32 0.0, %v581
    %v583 = vpop.f32.mrf.mxu0
    %584 = vdwg.mxu0
    %585 = vmatpush.bf16.msra.mxu0 %v367
    %586 = vmatpush.bf16.msra.mxu0 %v364
    %587 = vmatpush.bf16.msra.mxu0 %v361
    %588 = vmatpush.bf16.msra.mxu0 %v358
    %589 = vmatpush.bf16.msra.mxu0 %v355
    %590 = vmatpush.bf16.msra.mxu0 %v352
    %591 = vmatpush.bf16.msra.mxu0 %v349
    %592 = vmatpush.bf16.msra.mxu0 %v346
    %593 = vmatmul.bf16.gmra.mxu0 %v571
    %v594 = vpop.f32.mrf.mxu0
    %v595 = vadd.f32 0.0, %v594
    %v596 = vpop.f32.mrf.mxu0
    %597 = vdwg.mxu0
    %598 = vmatpush.bf16.msra.mxu0 %v368
    %599 = vmatpush.bf16.msra.mxu0 %v365
    %600 = vmatpush.bf16.msra.mxu0 %v362
    %601 = vmatpush.bf16.msra.mxu0 %v359
    %602 = vmatpush.bf16.msra.mxu0 %v356
    %603 = vmatpush.bf16.msra.mxu0 %v353
    %604 = vmatpush.bf16.msra.mxu0 %v350
    %605 = vmatpush.bf16.msra.mxu0 %v347
    %606 = vmatmul.bf16.gmra.mxu0 %v571
    %v607 = vpop.f32.mrf.mxu0
    %v608 = vadd.f32 0.0, %v607
    %v609 = vpop.f32.mrf.mxu0
    %610 = vdwg.mxu0
    %v611 = vadd.f32 %v155, %v582
    %v612 = vxor.u32 %v611, 2147483648
    %v613 = vmul.f32 %v612, 1.442695
    %v614 = vpow.pop %v613
    %v615 = vadd.f32 %v614, 1.0
    %v616 = vrcp.pop %v615
    %v617 = vmul.f32 %v615, %v616
    %v618 = vsub.f32 1.0, %v617
    %v619 = vmul.f32 %v616, %v618
    %v620 = vadd.f32 %v616, %v619
    %vm621 = vweird.f32 %v615
    %vm622 = vweird.f32 %v616
    %vm623 = vmor %vm621, %vm622
    %v624 = vsel %vm623, %v616, %v620
    %v625 = vand.u32 2147483647, %v615
    %vm626 = vcmp.eq.f32.partialorder %v625, 8.507059e+37
    %v627 = vand.u32 %v615, 2147483648
    %v628 = vor.u32 1.1754944e-38, %v627
    %v629 = vsel %vm626, %v628, %v624
    %v630 = vmul.f32 1.0, %v629
    %v631 = vadd.f32 %v184, %v595
    %v632 = vxor.u32 %v631, 2147483648
    %v633 = vmul.f32 %v632, 1.442695
    %v634 = vpow.pop %v633
    %v635 = vadd.f32 %v634, 1.0
    %v636 = vrcp.pop %v635
    %v637 = vmul.f32 %v635, %v636
    %v638 = vsub.f32 1.0, %v637
    %v639 = vmul.f32 %v636, %v638
    %v640 = vadd.f32 %v636, %v639
    %vm641 = vweird.f32 %v635
    %vm642 = vweird.f32 %v636
    %vm643 = vmor %vm641, %vm642
    %v644 = vsel %vm643, %v636, %v640
    %v645 = vand.u32 2147483647, %v635
    %vm646 = vcmp.eq.f32.partialorder %v645, 8.507059e+37
    %v647 = vand.u32 %v635, 2147483648
    %v648 = vor.u32 1.1754944e-38, %v647
    %v649 = vsel %vm646, %v648, %v644
    %v650 = vmul.f32 1.0, %v649
    %v651 = vadd.f32 %v608, %v261
    %v652 = vmul.f32 %v630, %v651
    %v653 = vadd.f32 %v213, %v652
    %v654 = vtanh.pop %v653
    %v655 = vsub.f32 1.0, %v650
    %v656 = vmul.f32 %v655, %v654
    %v657 = vmul.f32 %v650, %v568
    %v658 = vadd.f32 %v656, %v657
    %s659 = scalar_lea.vmem [#allocation3], 16
    %660 = vst [vmem:[%s659] sm:$0xff] %v658
    %v661 = vpack.c.bf16 %v658, %v658
    %662 = vmatpush.bf16.msra.mxu0 %v366
    %663 = vmatpush.bf16.msra.mxu0 %v363
    %664 = vmatpush.bf16.msra.mxu0 %v360
    %665 = vmatpush.bf16.msra.mxu0 %v357
    %666 = vmatpush.bf16.msra.mxu0 %v354
    %667 = vmatpush.bf16.msra.mxu0 %v351
    %668 = vmatpush.bf16.msra.mxu0 %v348
    %669 = vmatpush.bf16.msra.mxu0 %v345
    %670 = vmatmul.bf16.gmra.mxu0 %v661
    %v671 = vpop.f32.mrf.mxu0
    %v672 = vadd.f32 0.0, %v671
    %v673 = vpop.f32.mrf.mxu0
    %674 = vdwg.mxu0
    %675 = vmatpush.bf16.msra.mxu0 %v367
    %676 = vmatpush.bf16.msra.mxu0 %v364
    %677 = vmatpush.bf16.msra.mxu0 %v361
    %678 = vmatpush.bf16.msra.mxu0 %v358
    %679 = vmatpush.bf16.msra.mxu0 %v355
    %680 = vmatpush.bf16.msra.mxu0 %v352
    %681 = vmatpush.bf16.msra.mxu0 %v349
    %682 = vmatpush.bf16.msra.mxu0 %v346
    %683 = vmatmul.bf16.gmra.mxu0 %v661
    %v684 = vpop.f32.mrf.mxu0
    %v685 = vadd.f32 0.0, %v684
    %v686 = vpop.f32.mrf.mxu0
    %687 = vdwg.mxu0
    %688 = vmatpush.bf16.msra.mxu0 %v368
    %689 = vmatpush.bf16.msra.mxu0 %v365
    %690 = vmatpush.bf16.msra.mxu0 %v362
    %691 = vmatpush.bf16.msra.mxu0 %v359
    %692 = vmatpush.bf16.msra.mxu0 %v356
    %693 = vmatpush.bf16.msra.mxu0 %v353
    %694 = vmatpush.bf16.msra.mxu0 %v350
    %695 = vmatpush.bf16.msra.mxu0 %v347
    %696 = vmatmul.bf16.gmra.mxu0 %v661
    %v697 = vpop.f32.mrf.mxu0
    %v698 = vadd.f32 0.0, %v697
    %v699 = vpop.f32.mrf.mxu0
    %700 = vdwg.mxu0
    %v701 = vadd.f32 %v157, %v672
    %v702 = vxor.u32 %v701, 2147483648
    %v703 = vmul.f32 %v702, 1.442695
    %v704 = vpow.pop %v703
    %v705 = vadd.f32 %v704, 1.0
    %v706 = vrcp.pop %v705
    %v707 = vmul.f32 %v705, %v706
    %v708 = vsub.f32 1.0, %v707
    %v709 = vmul.f32 %v706, %v708
    %v710 = vadd.f32 %v706, %v709
    %vm711 = vweird.f32 %v705
    %vm712 = vweird.f32 %v706
    %vm713 = vmor %vm711, %vm712
    %v714 = vsel %vm713, %v706, %v710
    %v715 = vand.u32 2147483647, %v705
    %vm716 = vcmp.eq.f32.partialorder %v715, 8.507059e+37
    %v717 = vand.u32 %v705, 2147483648
    %v718 = vor.u32 1.1754944e-38, %v717
    %v719 = vsel %vm716, %v718, %v714
    %v720 = vmul.f32 1.0, %v719
    %v721 = vadd.f32 %v186, %v685
    %v722 = vxor.u32 %v721, 2147483648
    %v723 = vmul.f32 %v722, 1.442695
    %v724 = vpow.pop %v723
    %v725 = vadd.f32 %v724, 1.0
    %v726 = vrcp.pop %v725
    %v727 = vmul.f32 %v725, %v726
    %v728 = vsub.f32 1.0, %v727
    %v729 = vmul.f32 %v726, %v728
    %v730 = vadd.f32 %v726, %v729
    %vm731 = vweird.f32 %v725
    %vm732 = vweird.f32 %v726
    %vm733 = vmor %vm731, %vm732
    %v734 = vsel %vm733, %v726, %v730
    %v735 = vand.u32 2147483647, %v725
    %vm736 = vcmp.eq.f32.partialorder %v735, 8.507059e+37
    %v737 = vand.u32 %v725, 2147483648
    %v738 = vor.u32 1.1754944e-38, %v737
    %v739 = vsel %vm736, %v738, %v734
    %v740 = vmul.f32 1.0, %v739
    %v741 = vadd.f32 %v698, %v261
    %v742 = vmul.f32 %v720, %v741
    %v743 = vadd.f32 %v215, %v742
    %v744 = vtanh.pop %v743
    %v745 = vsub.f32 1.0, %v740
    %v746 = vmul.f32 %v745, %v744
    %v747 = vmul.f32 %v740, %v658
    %v748 = vadd.f32 %v746, %v747
    %s749 = scalar_lea.vmem [#allocation3], 24
    %750 = vst [vmem:[%s749] sm:$0xff] %v748
    %v751 = vpack.c.bf16 %v748, %v748
    %752 = vmatpush.bf16.msra.mxu0 %v366
    %753 = vmatpush.bf16.msra.mxu0 %v363
    %754 = vmatpush.bf16.msra.mxu0 %v360
    %755 = vmatpush.bf16.msra.mxu0 %v357
    %756 = vmatpush.bf16.msra.mxu0 %v354
    %757 = vmatpush.bf16.msra.mxu0 %v351
    %758 = vmatpush.bf16.msra.mxu0 %v348
    %759 = vmatpush.bf16.msra.mxu0 %v345
    %760 = vmatmul.bf16.gmra.mxu0 %v751
    %v761 = vpop.f32.mrf.mxu0
    %v762 = vadd.f32 0.0, %v761
    %v763 = vpop.f32.mrf.mxu0
    %764 = vdwg.mxu0
    %765 = vmatpush.bf16.msra.mxu0 %v367
    %766 = vmatpush.bf16.msra.mxu0 %v364
    %767 = vmatpush.bf16.msra.mxu0 %v361
    %768 = vmatpush.bf16.msra.mxu0 %v358
    %769 = vmatpush.bf16.msra.mxu0 %v355
    %770 = vmatpush.bf16.msra.mxu0 %v352
    %771 = vmatpush.bf16.msra.mxu0 %v349
    %772 = vmatpush.bf16.msra.mxu0 %v346
    %773 = vmatmul.bf16.gmra.mxu0 %v751
    %v774 = vpop.f32.mrf.mxu0
    %v775 = vadd.f32 0.0, %v774
    %v776 = vpop.f32.mrf.mxu0
    %777 = vdwg.mxu0
    %778 = vmatpush.bf16.msra.mxu0 %v368
    %779 = vmatpush.bf16.msra.mxu0 %v365
    %780 = vmatpush.bf16.msra.mxu0 %v362
    %781 = vmatpush.bf16.msra.mxu0 %v359
    %782 = vmatpush.bf16.msra.mxu0 %v356
    %783 = vmatpush.bf16.msra.mxu0 %v353
    %784 = vmatpush.bf16.msra.mxu0 %v350
    %785 = vmatpush.bf16.msra.mxu0 %v347
    %786 = vmatmul.bf16.gmra.mxu0 %v751
    %v787 = vpop.f32.mrf.mxu0
    %v788 = vadd.f32 0.0, %v787
    %v789 = vpop.f32.mrf.mxu0
    %790 = vdwg.mxu0
    %v791 = vadd.f32 %v160, %v762
    %v792 = vxor.u32 %v791, 2147483648
    %v793 = vmul.f32 %v792, 1.442695
    %v794 = vpow.pop %v793
    %v795 = vadd.f32 %v794, 1.0
    %v796 = vrcp.pop %v795
    %v797 = vmul.f32 %v795, %v796
    %v798 = vsub.f32 1.0, %v797
    %v799 = vmul.f32 %v796, %v798
    %v800 = vadd.f32 %v796, %v799
    %vm801 = vweird.f32 %v795
    %vm802 = vweird.f32 %v796
    %vm803 = vmor %vm801, %vm802
    %v804 = vsel %vm803, %v796, %v800
    %v805 = vand.u32 2147483647, %v795
    %vm806 = vcmp.eq.f32.partialorder %v805, 8.507059e+37
    %v807 = vand.u32 %v795, 2147483648
    %v808 = vor.u32 1.1754944e-38, %v807
    %v809 = vsel %vm806, %v808, %v804
    %v810 = vmul.f32 1.0, %v809
    %v811 = vadd.f32 %v189, %v775
    %v812 = vxor.u32 %v811, 2147483648
    %v813 = vmul.f32 %v812, 1.442695
    %v814 = vpow.pop %v813
    %v815 = vadd.f32 %v814, 1.0
    %v816 = vrcp.pop %v815
    %v817 = vmul.f32 %v815, %v816
    %v818 = vsub.f32 1.0, %v817
    %v819 = vmul.f32 %v816, %v818
    %v820 = vadd.f32 %v816, %v819
    %vm821 = vweird.f32 %v815
    %vm822 = vweird.f32 %v816
    %vm823 = vmor %vm821, %vm822
    %v824 = vsel %vm823, %v816, %v820
    %v825 = vand.u32 2147483647, %v815
    %vm826 = vcmp.eq.f32.partialorder %v825, 8.507059e+37
    %v827 = vand.u32 %v815, 2147483648
    %v828 = vor.u32 1.1754944e-38, %v827
    %v829 = vsel %vm826, %v828, %v824
    %v830 = vmul.f32 1.0, %v829
    %v831 = vadd.f32 %v788, %v261
    %v832 = vmul.f32 %v810, %v831
    %v833 = vadd.f32 %v218, %v832
    %v834 = vtanh.pop %v833
    %v835 = vsub.f32 1.0, %v830
    %v836 = vmul.f32 %v835, %v834
    %v837 = vmul.f32 %v830, %v748
    %v838 = vadd.f32 %v836, %v837
    %s839 = scalar_lea.vmem [#allocation3], 32
    %840 = vst [vmem:[%s839] sm:$0xff] %v838
    %v841 = vpack.c.bf16 %v838, %v838
    %842 = vmatpush.bf16.msra.mxu0 %v366
    %843 = vmatpush.bf16.msra.mxu0 %v363
    %844 = vmatpush.bf16.msra.mxu0 %v360
    %845 = vmatpush.bf16.msra.mxu0 %v357
    %846 = vmatpush.bf16.msra.mxu0 %v354
    %847 = vmatpush.bf16.msra.mxu0 %v351
    %848 = vmatpush.bf16.msra.mxu0 %v348
    %849 = vmatpush.bf16.msra.mxu0 %v345
    %850 = vmatmul.bf16.gmra.mxu0 %v841
    %v851 = vpop.f32.mrf.mxu0
    %v852 = vadd.f32 0.0, %v851
    %v853 = vpop.f32.mrf.mxu0
    %854 = vdwg.mxu0
    %855 = vmatpush.bf16.msra.mxu0 %v367
    %856 = vmatpush.bf16.msra.mxu0 %v364
    %857 = vmatpush.bf16.msra.mxu0 %v361
    %858 = vmatpush.bf16.msra.mxu0 %v358
    %859 = vmatpush.bf16.msra.mxu0 %v355
    %860 = vmatpush.bf16.msra.mxu0 %v352
    %861 = vmatpush.bf16.msra.mxu0 %v349
    %862 = vmatpush.bf16.msra.mxu0 %v346
    %863 = vmatmul.bf16.gmra.mxu0 %v841
    %v864 = vpop.f32.mrf.mxu0
    %v865 = vadd.f32 0.0, %v864
    %v866 = vpop.f32.mrf.mxu0
    %867 = vdwg.mxu0
    %868 = vmatpush.bf16.msra.mxu0 %v368
    %869 = vmatpush.bf16.msra.mxu0 %v365
    %870 = vmatpush.bf16.msra.mxu0 %v362
    %871 = vmatpush.bf16.msra.mxu0 %v359
    %872 = vmatpush.bf16.msra.mxu0 %v356
    %873 = vmatpush.bf16.msra.mxu0 %v353
    %874 = vmatpush.bf16.msra.mxu0 %v350
    %875 = vmatpush.bf16.msra.mxu0 %v347
    %876 = vmatmul.bf16.gmra.mxu0 %v841
    %v877 = vpop.f32.mrf.mxu0
    %v878 = vadd.f32 0.0, %v877
    %v879 = vpop.f32.mrf.mxu0
    %880 = vdwg.mxu0
    %v881 = vadd.f32 %v162, %v852
    %v882 = vxor.u32 %v881, 2147483648
    %v883 = vmul.f32 %v882, 1.442695
    %v884 = vpow.pop %v883
    %v885 = vadd.f32 %v884, 1.0
    %v886 = vrcp.pop %v885
    %v887 = vmul.f32 %v885, %v886
    %v888 = vsub.f32 1.0, %v887
    %v889 = vmul.f32 %v886, %v888
    %v890 = vadd.f32 %v886, %v889
    %vm891 = vweird.f32 %v885
    %vm892 = vweird.f32 %v886
    %vm893 = vmor %vm891, %vm892
    %v894 = vsel %vm893, %v886, %v890
    %v895 = vand.u32 2147483647, %v885
    %vm896 = vcmp.eq.f32.partialorder %v895, 8.507059e+37
    %v897 = vand.u32 %v885, 2147483648
    %v898 = vor.u32 1.1754944e-38, %v897
    %v899 = vsel %vm896, %v898, %v894
    %v900 = vmul.f32 1.0, %v899
    %v901 = vadd.f32 %v191, %v865
    %v902 = vxor.u32 %v901, 2147483648
    %v903 = vmul.f32 %v902, 1.442695
    %v904 = vpow.pop %v903
    %v905 = vadd.f32 %v904, 1.0
    %v906 = vrcp.pop %v905
    %v907 = vmul.f32 %v905, %v906
    %v908 = vsub.f32 1.0, %v907
    %v909 = vmul.f32 %v906, %v908
    %v910 = vadd.f32 %v906, %v909
    %vm911 = vweird.f32 %v905
    %vm912 = vweird.f32 %v906
    %vm913 = vmor %vm911, %vm912
    %v914 = vsel %vm913, %v906, %v910
    %v915 = vand.u32 2147483647, %v905
    %vm916 = vcmp.eq.f32.partialorder %v915, 8.507059e+37
    %v917 = vand.u32 %v905, 2147483648
    %v918 = vor.u32 1.1754944e-38, %v917
    %v919 = vsel %vm916, %v918, %v914
    %v920 = vmul.f32 1.0, %v919
    %v921 = vadd.f32 %v878, %v261
    %v922 = vmul.f32 %v900, %v921
    %v923 = vadd.f32 %v220, %v922
    %v924 = vtanh.pop %v923
    %v925 = vsub.f32 1.0, %v920
    %v926 = vmul.f32 %v925, %v924
    %v927 = vmul.f32 %v920, %v838
    %v928 = vadd.f32 %v926, %v927
    %s929 = scalar_lea.vmem [#allocation3], 40
    %930 = vst [vmem:[%s929] sm:$0xff] %v928
    %v931 = vpack.c.bf16 %v928, %v928
    %932 = vmatpush.bf16.msra.mxu0 %v366
    %933 = vmatpush.bf16.msra.mxu0 %v363
    %934 = vmatpush.bf16.msra.mxu0 %v360
    %935 = vmatpush.bf16.msra.mxu0 %v357
    %936 = vmatpush.bf16.msra.mxu0 %v354
    %937 = vmatpush.bf16.msra.mxu0 %v351
    %938 = vmatpush.bf16.msra.mxu0 %v348
    %939 = vmatpush.bf16.msra.mxu0 %v345
    %940 = vmatmul.bf16.gmra.mxu0 %v931
    %v941 = vpop.f32.mrf.mxu0
    %v942 = vadd.f32 0.0, %v941
    %v943 = vpop.f32.mrf.mxu0
    %944 = vdwg.mxu0
    %945 = vmatpush.bf16.msra.mxu0 %v367
    %946 = vmatpush.bf16.msra.mxu0 %v364
    %947 = vmatpush.bf16.msra.mxu0 %v361
    %948 = vmatpush.bf16.msra.mxu0 %v358
    %949 = vmatpush.bf16.msra.mxu0 %v355
    %950 = vmatpush.bf16.msra.mxu0 %v352
    %951 = vmatpush.bf16.msra.mxu0 %v349
    %952 = vmatpush.bf16.msra.mxu0 %v346
    %953 = vmatmul.bf16.gmra.mxu0 %v931
    %v954 = vpop.f32.mrf.mxu0
    %v955 = vadd.f32 0.0, %v954
    %v956 = vpop.f32.mrf.mxu0
    %957 = vdwg.mxu0
    %958 = vmatpush.bf16.msra.mxu0 %v368
    %959 = vmatpush.bf16.msra.mxu0 %v365
    %960 = vmatpush.bf16.msra.mxu0 %v362
    %961 = vmatpush.bf16.msra.mxu0 %v359
    %962 = vmatpush.bf16.msra.mxu0 %v356
    %963 = vmatpush.bf16.msra.mxu0 %v353
    %964 = vmatpush.bf16.msra.mxu0 %v350
    %965 = vmatpush.bf16.msra.mxu0 %v347
    %966 = vmatmul.bf16.gmra.mxu0 %v931
    %v967 = vpop.f32.mrf.mxu0
    %v968 = vadd.f32 0.0, %v967
    %v969 = vpop.f32.mrf.mxu0
    %970 = vdwg.mxu0
    %v971 = vadd.f32 %v165, %v942
    %v972 = vxor.u32 %v971, 2147483648
    %v973 = vmul.f32 %v972, 1.442695
    %v974 = vpow.pop %v973
    %v975 = vadd.f32 %v974, 1.0
    %v976 = vrcp.pop %v975
    %v977 = vmul.f32 %v975, %v976
    %v978 = vsub.f32 1.0, %v977
    %v979 = vmul.f32 %v976, %v978
    %v980 = vadd.f32 %v976, %v979
    %vm981 = vweird.f32 %v975
    %vm982 = vweird.f32 %v976
    %vm983 = vmor %vm981, %vm982
    %v984 = vsel %vm983, %v976, %v980
    %v985 = vand.u32 2147483647, %v975
    %vm986 = vcmp.eq.f32.partialorder %v985, 8.507059e+37
    %v987 = vand.u32 %v975, 2147483648
    %v988 = vor.u32 1.1754944e-38, %v987
    %v989 = vsel %vm986, %v988, %v984
    %v990 = vmul.f32 1.0, %v989
    %v991 = vadd.f32 %v194, %v955
    %v992 = vxor.u32 %v991, 2147483648
    %v993 = vmul.f32 %v992, 1.442695
    %v994 = vpow.pop %v993
    %v995 = vadd.f32 %v994, 1.0
    %v996 = vrcp.pop %v995
    %v997 = vmul.f32 %v995, %v996
    %v998 = vsub.f32 1.0, %v997
    %v999 = vmul.f32 %v996, %v998
    %v1000 = vadd.f32 %v996, %v999
    %vm1001 = vweird.f32 %v995
    %vm1002 = vweird.f32 %v996
    %vm1003 = vmor %vm1001, %vm1002
    %v1004 = vsel %vm1003, %v996, %v1000
    %v1005 = vand.u32 2147483647, %v995
    %vm1006 = vcmp.eq.f32.partialorder %v1005, 8.507059e+37
    %v1007 = vand.u32 %v995, 2147483648
    %v1008 = vor.u32 1.1754944e-38, %v1007
    %v1009 = vsel %vm1006, %v1008, %v1004
    %v1010 = vmul.f32 1.0, %v1009
    %v1011 = vadd.f32 %v968, %v261
    %v1012 = vmul.f32 %v990, %v1011
    %v1013 = vadd.f32 %v223, %v1012
    %v1014 = vtanh.pop %v1013
    %v1015 = vsub.f32 1.0, %v1010
    %v1016 = vmul.f32 %v1015, %v1014
    %v1017 = vmul.f32 %v1010, %v928
    %v1018 = vadd.f32 %v1016, %v1017
    %s1019 = scalar_lea.vmem [#allocation3], 48
    %1020 = vst [vmem:[%s1019] sm:$0xff] %v1018
    %v1021 = vpack.c.bf16 %v1018, %v1018
    %1022 = vmatpush.bf16.msra.mxu0 %v366
    %1023 = vmatpush.bf16.msra.mxu0 %v363
    %1024 = vmatpush.bf16.msra.mxu0 %v360
    %1025 = vmatpush.bf16.msra.mxu0 %v357
    %1026 = vmatpush.bf16.msra.mxu0 %v354
    %1027 = vmatpush.bf16.msra.mxu0 %v351
    %1028 = vmatpush.bf16.msra.mxu0 %v348
    %1029 = vmatpush.bf16.msra.mxu0 %v345
    %1030 = vmatmul.bf16.gmra.mxu0 %v1021
    %v1031 = vpop.f32.mrf.mxu0
    %v1032 = vadd.f32 0.0, %v1031
    %v1033 = vpop.f32.mrf.mxu0
    %1034 = vdwg.mxu0
    %1035 = vmatpush.bf16.msra.mxu0 %v367
    %1036 = vmatpush.bf16.msra.mxu0 %v364
    %1037 = vmatpush.bf16.msra.mxu0 %v361
    %1038 = vmatpush.bf16.msra.mxu0 %v358
    %1039 = vmatpush.bf16.msra.mxu0 %v355
    %1040 = vmatpush.bf16.msra.mxu0 %v352
    %1041 = vmatpush.bf16.msra.mxu0 %v349
    %1042 = vmatpush.bf16.msra.mxu0 %v346
    %1043 = vmatmul.bf16.gmra.mxu0 %v1021
    %v1044 = vpop.f32.mrf.mxu0
    %v1045 = vadd.f32 0.0, %v1044
    %v1046 = vpop.f32.mrf.mxu0
    %1047 = vdwg.mxu0
    %1048 = vmatpush.bf16.msra.mxu0 %v368
    %1049 = vmatpush.bf16.msra.mxu0 %v365
    %1050 = vmatpush.bf16.msra.mxu0 %v362
    %1051 = vmatpush.bf16.msra.mxu0 %v359
    %1052 = vmatpush.bf16.msra.mxu0 %v356
    %1053 = vmatpush.bf16.msra.mxu0 %v353
    %1054 = vmatpush.bf16.msra.mxu0 %v350
    %1055 = vmatpush.bf16.msra.mxu0 %v347
    %1056 = vmatmul.bf16.gmra.mxu0 %v1021
    %v1057 = vpop.f32.mrf.mxu0
    %v1058 = vadd.f32 0.0, %v1057
    %v1059 = vpop.f32.mrf.mxu0
    %1060 = vdwg.mxu0
    %v1061 = vadd.f32 %v167, %v1032
    %v1062 = vxor.u32 %v1061, 2147483648
    %v1063 = vmul.f32 %v1062, 1.442695
    %v1064 = vpow.pop %v1063
    %v1065 = vadd.f32 %v1064, 1.0
    %v1066 = vrcp.pop %v1065
    %v1067 = vmul.f32 %v1065, %v1066
    %v1068 = vsub.f32 1.0, %v1067
    %v1069 = vmul.f32 %v1066, %v1068
    %v1070 = vadd.f32 %v1066, %v1069
    %vm1071 = vweird.f32 %v1065
    %vm1072 = vweird.f32 %v1066
    %vm1073 = vmor %vm1071, %vm1072
    %v1074 = vsel %vm1073, %v1066, %v1070
    %v1075 = vand.u32 2147483647, %v1065
    %vm1076 = vcmp.eq.f32.partialorder %v1075, 8.507059e+37
    %v1077 = vand.u32 %v1065, 2147483648
    %v1078 = vor.u32 1.1754944e-38, %v1077
    %v1079 = vsel %vm1076, %v1078, %v1074
    %v1080 = vmul.f32 1.0, %v1079
    %v1081 = vadd.f32 %v196, %v1045
    %v1082 = vxor.u32 %v1081, 2147483648
    %v1083 = vmul.f32 %v1082, 1.442695
    %v1084 = vpow.pop %v1083
    %v1085 = vadd.f32 %v1084, 1.0
    %v1086 = vrcp.pop %v1085
    %v1087 = vmul.f32 %v1085, %v1086
    %v1088 = vsub.f32 1.0, %v1087
    %v1089 = vmul.f32 %v1086, %v1088
    %v1090 = vadd.f32 %v1086, %v1089
    %vm1091 = vweird.f32 %v1085
    %vm1092 = vweird.f32 %v1086
    %vm1093 = vmor %vm1091, %vm1092
    %v1094 = vsel %vm1093, %v1086, %v1090
    %v1095 = vand.u32 2147483647, %v1085
    %vm1096 = vcmp.eq.f32.partialorder %v1095, 8.507059e+37
    %v1097 = vand.u32 %v1085, 2147483648
    %v1098 = vor.u32 1.1754944e-38, %v1097
    %v1099 = vsel %vm1096, %v1098, %v1094
    %v1100 = vmul.f32 1.0, %v1099
    %v1101 = vadd.f32 %v1058, %v261
    %v1102 = vmul.f32 %v1080, %v1101
    %v1103 = vadd.f32 %v225, %v1102
    %v1104 = vtanh.pop %v1103
    %v1105 = vsub.f32 1.0, %v1100
    %v1106 = vmul.f32 %v1105, %v1104
    %v1107 = vmul.f32 %v1100, %v1018
    %v1108 = vadd.f32 %v1106, %v1107
    %s1109 = scalar_lea.vmem [#allocation3], 56
    %1110 = vst [vmem:[%s1109] sm:$0xff] %v1108
    %1111 = vst [vmem:[#allocation2] sm:$0xff] %v1108
    %v1112 = vld [vmem:[#allocation3] sm:$0xff]
    %v1113 = vld [vmem:[#allocation3 + $0x8] sm:$0xff]
    %v1114 = vld [vmem:[#allocation3 + $0x10] sm:$0xff]
    %v1115 = vld [vmem:[#allocation3 + $0x18] sm:$0xff]
    %v1116 = vld [vmem:[#allocation3 + $0x20] sm:$0xff]
    %v1117 = vld [vmem:[#allocation3 + $0x28] sm:$0xff]
    %v1118 = vld [vmem:[#allocation3 + $0x30] sm:$0xff]
    %v1119 = vld [vmem:[#allocation3 + $0x38] sm:$0xff]
    %v1120 = vpack.c.bf16 %v1112, %v1112
    %v1121 = vpack.c.bf16 %v1113, %v1113
    %v1122 = vpack.c.bf16 %v1114, %v1114
    %v1123 = vpack.c.bf16 %v1115, %v1115
    %v1124 = vpack.c.bf16 %v1116, %v1116
    %v1125 = vpack.c.bf16 %v1117, %v1117
    %v1126 = vpack.c.bf16 %v1118, %v1118
    %v1127 = vpack.c.bf16 %v1119, %v1119
    %1128 = vst [vmem:[%s5] sm:$0xf] %v1120
    %1129 = vst [vmem:[%s5 + $0x4] sm:$0xf] %v1121
    %1130 = vst [vmem:[%s5 + $0x8] sm:$0xf] %v1122
    %1131 = vst [vmem:[%s5 + $0xc] sm:$0xf] %v1123
    %1132 = vst [vmem:[%s5 + $0x10] sm:$0xf] %v1124
    %1133 = vst [vmem:[%s5 + $0x14] sm:$0xf] %v1125
    %1134 = vst [vmem:[%s5 + $0x18] sm:$0xf] %v1126
    %1135 = vst [vmem:[%s5 + $0x1c] sm:$0xf] %v1127
    // Predicated region
    $region38: #{simple_gru_forward.2} parent=1 // pred_check
      _
    $region39: #{simple_gru_forward.2} parent=1 // pred_check_branch
      %1137 = sbr.rel (0) target = $region41
    $region40: #{simple_gru_forward.2} parent=1 // pred_region
      _
    $region41: #{simple_gru_forward.2} parent=1 // pred_fallthru
      _
    // Predicated region
    $region42: #{simple_gru_forward.2} parent=1 // pred_check
      _
    $region43: #{simple_gru_forward.2} parent=1 // pred_check_branch
      %1139 = sbr.rel (0) target = $region45
    $region44: #{simple_gru_forward.2} parent=1 // pred_region
      _
    $region45: #{simple_gru_forward.2} parent=1 // pred_fallthru
      _
    %1140 = vsyncpa [#allocation5], 1
    %1141 = vsyncpa [#allocation7], 1

// kernel: simple_gru_forward.3
$region0: #{simple_gru_forward.3}
  #allocation0 [shape = 'u32[]', space=smem, size = 0x4, offset = 0x4, fixed_abs, tag = 'smem constant byte address 0x4 - core index']
  #allocation1 [shape = 'u32[72,128]{1,0:T(1,128)}', space=vmem, size = 0x9000, scoped, tag = 'internal scratch']
  #allocation2 [shape = 'f32[8,128]{1,0:T(8,128)}', space=vmem, size = 0x1000, scoped, tag = 'scratch operand']
  #allocation3 [shape = 'f32[8,8,128]{2,1,0:T(8,128)}', space=vmem, size = 0x8000, scoped, tag = 'scratch operand']
  %s0 = inlined_call_operand.vmem [shape: bf16[8,8,128], index: 0, kind: input, shape index: {}]
  %s1 = inlined_call_operand.hbm [shape: bf16[128,384], index: 1, kind: input, shape index: {}]
  %s2 = inlined_call_operand.hbm [shape: bf16[128,384], index: 2, kind: input, shape index: {}]
  %s3 = inlined_call_operand.vmem [shape: f32[1,384], index: 3, kind: input, shape index: {}]
  %s4 = inlined_call_operand.vmem [shape: f32[1,128], index: 4, kind: input, shape index: {}]
  %s5 = inlined_call_operand.vmem [shape: bf16[128,128], index: 5, kind: input, shape index: {}]
  %s6 = inlined_call_operand.hbm [shape: f32[1,128], index: 6, kind: input, shape index: {}]
  %s7 = inlined_call_operand.vmem [shape: f32[8,8,128], index: 7, kind: output, shape index: {}]
  %s8 = sld [smem:[#allocation0]]
  $region54: #{simple_gru_forward.3} parent=0
    _
  %s10 = ssub.s32 1, %s8
  %s11 = scalar_select 0, %s10, %s8
  $region1: #{simple_gru_forward.3} parent=0
    #allocation4 [shape = 'u8[98304]{0}', space=vmem, size = 0x18000, scoped, tag = 'input window, operand 1, single buffered']
    #allocation5 [shape = 's32[1]{0}', space=sflag, size = 0x4, scoped, tag = 'scoped memory for simple_gru_forward.3']
    #allocation6 [shape = 'u8[98304]{0}', space=vmem, size = 0x18000, scoped, tag = 'input window, operand 2, single buffered']
    #allocation7 [shape = 's32[1]{0}', space=sflag, size = 0x4, scoped, tag = 'scoped memory for simple_gru_forward.3']
    #allocation8 [shape = 'u8[512]{0}', space=vmem, size = 0x400, scoped, tag = 'input window, operand 6, single buffered']
    %12 = vsyncpa [#allocation5], 0
    %13 = vsyncpa [#allocation7], 0
    // Predicated region
    $region2: #{simple_gru_forward.3} parent=1 // pred_check
      _
    $region3: #{simple_gru_forward.3} parent=1 // pred_check_branch
      %15 = sbr.rel (0) target = $region5
    $region4: #{simple_gru_forward.3} parent=1 // pred_region
      _
    $region5: #{simple_gru_forward.3} parent=1 // pred_fallthru
      _
    // Predicated region
    $region6: #{simple_gru_forward.3} parent=1 // pred_check
      _
    $region7: #{simple_gru_forward.3} parent=1 // pred_check_branch
      %17 = sbr.rel (0) target = $region9
    $region8: #{simple_gru_forward.3} parent=1 // pred_region
      %19 = vsyncadd [#allocation5], 0
      %s20 = sshll.u32 %s1, 4
      %s21 = int_to_ptr.hbm [resolvable:$true] %s20
      %s22 = sshll.u32 [#allocation4], 4
      %s23 = int_to_ptr.vmem [resolvable:$true] %s22
      %28 = dma.hbm_to_vmem [thread:$0]  %s21, 3072, %s23, [#allocation5], 192, 192, 12
    $region9: #{simple_gru_forward.3} parent=1 // pred_fallthru
      _
    // Predicated region
    $region10: #{simple_gru_forward.3} parent=1 // pred_check
      _
    $region11: #{simple_gru_forward.3} parent=1 // pred_check_branch
      %30 = sbr.rel (0) target = $region13
    $region12: #{simple_gru_forward.3} parent=1 // pred_region
      %32 = vsyncadd [#allocation7], 0
      %s33 = sshll.u32 %s2, 4
      %s34 = int_to_ptr.hbm [resolvable:$true] %s33
      %s35 = sshll.u32 [#allocation6], 4
      %s36 = int_to_ptr.vmem [resolvable:$true] %s35
      %41 = dma.hbm_to_vmem [thread:$0]  %s34, 3072, %s36, [#allocation7], 192, 192, 12
    $region13: #{simple_gru_forward.3} parent=1 // pred_fallthru
      _
    // Predicated region
    $region14: #{simple_gru_forward.3} parent=1 // pred_check
      _
    $region15: #{simple_gru_forward.3} parent=1 // pred_check_branch
      %43 = sbr.rel (0) target = $region17
    $region16: #{simple_gru_forward.3} parent=1 // pred_region
      _
    $region17: #{simple_gru_forward.3} parent=1 // pred_fallthru
      _
    // Predicated region
    $region18: #{simple_gru_forward.3} parent=1 // pred_check
      _
    $region19: #{simple_gru_forward.3} parent=1 // pred_check_branch
      %45 = sbr.rel (0) target = $region21
    $region20: #{simple_gru_forward.3} parent=1 // pred_region
      _
    $region21: #{simple_gru_forward.3} parent=1 // pred_fallthru
      _
    // Predicated region
    $region22: #{simple_gru_forward.3} parent=1 // pred_check
      _
    $region23: #{simple_gru_forward.3} parent=1 // pred_check_branch
      %47 = sbr.rel (0) target = $region25
    $region24: #{simple_gru_forward.3} parent=1 // pred_region
      _
    $region25: #{simple_gru_forward.3} parent=1 // pred_fallthru
      _
    // Predicated region
    $region26: #{simple_gru_forward.3} parent=1 // pred_check
      _
    $region27: #{simple_gru_forward.3} parent=1 // pred_check_branch
      %49 = sbr.rel (0) target = $region29
    $region28: #{simple_gru_forward.3} parent=1 // pred_region
      %51 = vsyncadd [#allocation7], 0
      %s53 = sshll.u32 %s6, 4
      %s54 = int_to_ptr.hbm [resolvable:$true] %s53
      %s55 = sshll.u32 [#allocation8], 4
      %s56 = int_to_ptr.vmem [resolvable:$true] %s55
      %58 = dma.hbm_to_vmem [thread:$0]  %s54, 16, %s56, [#allocation7]
    $region29: #{simple_gru_forward.3} parent=1 // pred_fallthru
      _
    // Predicated region
    $region30: #{simple_gru_forward.3} parent=1 // pred_check
      _
    $region31: #{simple_gru_forward.3} parent=1 // pred_check_branch
      %60 = sbr.rel (0) target = $region33
    $region32: #{simple_gru_forward.3} parent=1 // pred_region
      %62 = dma.done [#allocation5], 3072
    $region33: #{simple_gru_forward.3} parent=1 // pred_fallthru
      _
    // Predicated region
    $region34: #{simple_gru_forward.3} parent=1 // pred_check
      _
    $region35: #{simple_gru_forward.3} parent=1 // pred_check_branch
      %64 = sbr.rel (0) target = $region37
    $region36: #{simple_gru_forward.3} parent=1 // pred_region
      %66 = dma.done [#allocation7], 3072
    $region37: #{simple_gru_forward.3} parent=1 // pred_fallthru
      _
    // Predicated region
    $region38: #{simple_gru_forward.3} parent=1 // pred_check
      _
    $region39: #{simple_gru_forward.3} parent=1 // pred_check_branch
      %68 = sbr.rel (0) target = $region41
    $region40: #{simple_gru_forward.3} parent=1 // pred_region
      %70 = dma.done [#allocation7], 16
    $region41: #{simple_gru_forward.3} parent=1 // pred_fallthru
      _
    %p71 = scmp.eq.s32.totalorder 0, 0
    // Predicated region
    $region42: #{simple_gru_forward.3} parent=1 // pred_check
      %p72 = pneg %p71
    $region43: #{simple_gru_forward.3} parent=1 // pred_check_branch
      %74 = sbr.rel (%p72) target = $region45
    $region44: #{simple_gru_forward.3} parent=1 // pred_region
      %75 = vst [vmem:[#allocation2] sm:$0xff] 0.0
    $region45: #{simple_gru_forward.3} parent=1 // pred_fallthru
      _
    %v76 = vld [vmem:[%s0] sm:$0xf]
    %v77 = vld [vmem:[%s0 + $0x4] sm:$0xf]
    %v78 = vld [vmem:[%s0 + $0x8] sm:$0xf]
    %v79 = vld [vmem:[%s0 + $0xc] sm:$0xf]
    %v80 = vld [vmem:[%s0 + $0x10] sm:$0xf]
    %v81 = vld [vmem:[%s0 + $0x14] sm:$0xf]
    %v82 = vld [vmem:[%s0 + $0x18] sm:$0xf]
    %v83 = vld [vmem:[%s0 + $0x1c] sm:$0xf]
    %v84 = vld [vmem:[#allocation4] sm:$0xff]
    %v85 = vld [vmem:[#allocation4 + $0x8] sm:$0xf]
    %v86 = vld [vmem:[#allocation4 + $0xc] sm:$0xff]
    %v87 = vld [vmem:[#allocation4 + $0x14] sm:$0xf]
    %v88 = vld [vmem:[#allocation4 + $0x18] sm:$0xff]
    %v89 = vld [vmem:[#allocation4 + $0x20] sm:$0xf]
    %v90 = vld [vmem:[#allocation4 + $0x24] sm:$0xff]
    %v91 = vld [vmem:[#allocation4 + $0x2c] sm:$0xf]
    %v92 = vld [vmem:[#allocation4 + $0x30] sm:$0xff]
    %v93 = vld [vmem:[#allocation4 + $0x38] sm:$0xf]
    %v94 = vld [vmem:[#allocation4 + $0x3c] sm:$0xff]
    %v95 = vld [vmem:[#allocation4 + $0x44] sm:$0xf]
    %v96 = vld [vmem:[#allocation4 + $0x48] sm:$0xff]
    %v97 = vld [vmem:[#allocation4 + $0x50] sm:$0xf]
    %v98 = vld [vmem:[#allocation4 + $0x54] sm:$0xff]
    %v99 = vld [vmem:[#allocation4 + $0x5c] sm:$0xf]
    %v100 = vld [vmem:[#allocation4 + $0x60] sm:$0xff]
    %v101 = vld [vmem:[#allocation4 + $0x68] sm:$0xf]
    %v102 = vld [vmem:[#allocation4 + $0x6c] sm:$0xff]
    %v103 = vld [vmem:[#allocation4 + $0x74] sm:$0xf]
    %v104 = vld [vmem:[#allocation4 + $0x78] sm:$0xff]
    %v105 = vld [vmem:[#allocation4 + $0x80] sm:$0xf]
    %v106 = vld [vmem:[#allocation4 + $0x84] sm:$0xff]
    %v107 = vld [vmem:[#allocation4 + $0x8c] sm:$0xf]
    %v108 = vld [vmem:[#allocation4 + $0x90] sm:$0xff]
    %v109 = vld [vmem:[#allocation4 + $0x98] sm:$0xf]
    %v110 = vld [vmem:[#allocation4 + $0x9c] sm:$0xff]
    %v111 = vld [vmem:[#allocation4 + $0xa4] sm:$0xf]
    %v112 = vld [vmem:[#allocation4 + $0xa8] sm:$0xff]
    %v113 = vld [vmem:[#allocation4 + $0xb0] sm:$0xf]
    %v114 = vld [vmem:[#allocation4 + $0xb4] sm:$0xff]
    %v115 = vld [vmem:[#allocation4 + $0xbc] sm:$0xf]
    %v116 = vld [vmem:[%s3] sm:$0x7]
    %v118 = vperm.slane %v116, 0
    %v119 = vperm.slane %v116, 1
    %v120 = vperm.slane %v116, 2
    %v132 = vunpack.c.l.b16 %v76
    %v133 = vunpack.c.l.b16 %v77
    %v134 = vunpack.c.l.b16 %v78
    %v135 = vunpack.c.l.b16 %v79
    %v136 = vunpack.c.l.b16 %v80
    %v137 = vunpack.c.l.b16 %v81
    %v138 = vunpack.c.l.b16 %v82
    %v139 = vunpack.c.l.b16 %v83
    %v140 = vpack.c.b16 %v133, %v132
    %v141 = vpack.c.b16 %v135, %v134
    %v142 = vpack.c.b16 %v137, %v136
    %v143 = vpack.c.b16 %v139, %v138
    %v180 = vunpack.c.l.b16 %v84
    %v181 = vunpack.c.h.b16 %v84
    %v182 = vunpack.c.l.b16 %v85
    %v183 = vunpack.c.l.b16 %v86
    %v184 = vunpack.c.h.b16 %v86
    %v185 = vunpack.c.l.b16 %v87
    %v186 = vunpack.c.l.b16 %v88
    %v187 = vunpack.c.h.b16 %v88
    %v188 = vunpack.c.l.b16 %v89
    %v189 = vunpack.c.l.b16 %v90
    %v190 = vunpack.c.h.b16 %v90
    %v191 = vunpack.c.l.b16 %v91
    %v192 = vunpack.c.l.b16 %v92
    %v193 = vunpack.c.h.b16 %v92
    %v194 = vunpack.c.l.b16 %v93
    %v195 = vunpack.c.l.b16 %v94
    %v196 = vunpack.c.h.b16 %v94
    %v197 = vunpack.c.l.b16 %v95
    %v198 = vunpack.c.l.b16 %v96
    %v199 = vunpack.c.h.b16 %v96
    %v200 = vunpack.c.l.b16 %v97
    %v201 = vunpack.c.l.b16 %v98
    %v202 = vunpack.c.h.b16 %v98
    %v203 = vunpack.c.l.b16 %v99
    %v204 = vunpack.c.l.b16 %v100
    %v205 = vunpack.c.h.b16 %v100
    %v206 = vunpack.c.l.b16 %v101
    %v207 = vunpack.c.l.b16 %v102
    %v208 = vunpack.c.h.b16 %v102
    %v209 = vunpack.c.l.b16 %v103
    %v210 = vunpack.c.l.b16 %v104
    %v211 = vunpack.c.h.b16 %v104
    %v212 = vunpack.c.l.b16 %v105
    %v213 = vunpack.c.l.b16 %v106
    %v214 = vunpack.c.h.b16 %v106
    %v215 = vunpack.c.l.b16 %v107
    %v216 = vunpack.c.l.b16 %v108
    %v217 = vunpack.c.h.b16 %v108
    %v218 = vunpack.c.l.b16 %v109
    %v219 = vunpack.c.l.b16 %v110
    %v220 = vunpack.c.h.b16 %v110
    %v221 = vunpack.c.l.b16 %v111
    %v222 = vunpack.c.l.b16 %v112
    %v223 = vunpack.c.h.b16 %v112
    %v224 = vunpack.c.l.b16 %v113
    %v225 = vunpack.c.l.b16 %v114
    %v226 = vunpack.c.h.b16 %v114
    %v227 = vunpack.c.l.b16 %v115
    %v228 = vpack.c.b16 %v183, %v180
    %v229 = vpack.c.b16 %v184, %v181
    %v230 = vpack.c.b16 %v185, %v182
    %v231 = vpack.c.b16 %v189, %v186
    %v232 = vpack.c.b16 %v190, %v187
    %v233 = vpack.c.b16 %v191, %v188
    %v234 = vpack.c.b16 %v195, %v192
    %v235 = vpack.c.b16 %v196, %v193
    %v236 = vpack.c.b16 %v197, %v194
    %v237 = vpack.c.b16 %v201, %v198
    %v238 = vpack.c.b16 %v202, %v199
    %v239 = vpack.c.b16 %v203, %v200
    %v240 = vpack.c.b16 %v207, %v204
    %v241 = vpack.c.b16 %v208, %v205
    %v242 = vpack.c.b16 %v209, %v206
    %v243 = vpack.c.b16 %v213, %v210
    %v244 = vpack.c.b16 %v214, %v211
    %v245 = vpack.c.b16 %v215, %v212
    %v246 = vpack.c.b16 %v219, %v216
    %v247 = vpack.c.b16 %v220, %v217
    %v248 = vpack.c.b16 %v221, %v218
    %v249 = vpack.c.b16 %v225, %v222
    %v250 = vpack.c.b16 %v226, %v223
    %v251 = vpack.c.b16 %v227, %v224
    %276 = vmatpush.bf16.msra.mxu0 %v249
    %277 = vmatpush.bf16.msra.mxu0 %v246
    %278 = vmatpush.bf16.msra.mxu0 %v243
    %279 = vmatpush.bf16.msra.mxu0 %v240
    %280 = vmatpush.bf16.msra.mxu0 %v237
    %281 = vmatpush.bf16.msra.mxu0 %v234
    %282 = vmatpush.bf16.msra.mxu0 %v231
    %283 = vmatpush.bf16.msra.mxu0 %v228
    %284 = vmatmul.bf16.gmra.mxu0 %v140
    %v285 = vpop.f32.mrf.mxu0
    %v286 = vadd.f32 %v118, %v285
    %v287 = vpop.f32.mrf.mxu0
    %v288 = vadd.f32 %v118, %v287
    %289 = vmatmul.bf16.gmra.mxu0 %v141
    %v290 = vpop.f32.mrf.mxu0
    %v291 = vadd.f32 %v118, %v290
    %v292 = vpop.f32.mrf.mxu0
    %v293 = vadd.f32 %v118, %v292
    %294 = vmatmul.bf16.gmra.mxu0 %v142
    %v295 = vpop.f32.mrf.mxu0
    %v296 = vadd.f32 %v118, %v295
    %v297 = vpop.f32.mrf.mxu0
    %v298 = vadd.f32 %v118, %v297
    %299 = vmatmul.bf16.gmra.mxu0 %v143
    %v300 = vpop.f32.mrf.mxu0
    %v301 = vadd.f32 %v118, %v300
    %v302 = vpop.f32.mrf.mxu0
    %v303 = vadd.f32 %v118, %v302
    %304 = vdwg.mxu0
    %305 = vmatpush.bf16.msra.mxu0 %v250
    %306 = vmatpush.bf16.msra.mxu0 %v247
    %307 = vmatpush.bf16.msra.mxu0 %v244
    %308 = vmatpush.bf16.msra.mxu0 %v241
    %309 = vmatpush.bf16.msra.mxu0 %v238
    %310 = vmatpush.bf16.msra.mxu0 %v235
    %311 = vmatpush.bf16.msra.mxu0 %v232
    %312 = vmatpush.bf16.msra.mxu0 %v229
    %313 = vmatmul.bf16.gmra.mxu0 %v140
    %v314 = vpop.f32.mrf.mxu0
    %v315 = vadd.f32 %v119, %v314
    %v316 = vpop.f32.mrf.mxu0
    %v317 = vadd.f32 %v119, %v316
    %318 = vmatmul.bf16.gmra.mxu0 %v141
    %v319 = vpop.f32.mrf.mxu0
    %v320 = vadd.f32 %v119, %v319
    %v321 = vpop.f32.mrf.mxu0
    %v322 = vadd.f32 %v119, %v321
    %323 = vmatmul.bf16.gmra.mxu0 %v142
    %v324 = vpop.f32.mrf.mxu0
    %v325 = vadd.f32 %v119, %v324
    %v326 = vpop.f32.mrf.mxu0
    %v327 = vadd.f32 %v119, %v326
    %328 = vmatmul.bf16.gmra.mxu0 %v143
    %v329 = vpop.f32.mrf.mxu0
    %v330 = vadd.f32 %v119, %v329
    %v331 = vpop.f32.mrf.mxu0
    %v332 = vadd.f32 %v119, %v331
    %333 = vdwg.mxu0
    %334 = vmatpush.bf16.msra.mxu0 %v251
    %335 = vmatpush.bf16.msra.mxu0 %v248
    %336 = vmatpush.bf16.msra.mxu0 %v245
    %337 = vmatpush.bf16.msra.mxu0 %v242
    %338 = vmatpush.bf16.msra.mxu0 %v239
    %339 = vmatpush.bf16.msra.mxu0 %v236
    %340 = vmatpush.bf16.msra.mxu0 %v233
    %341 = vmatpush.bf16.msra.mxu0 %v230
    %342 = vmatmul.bf16.gmra.mxu0 %v140
    %v343 = vpop.f32.mrf.mxu0
    %v344 = vadd.f32 %v120, %v343
    %v345 = vpop.f32.mrf.mxu0
    %v346 = vadd.f32 %v120, %v345
    %347 = vmatmul.bf16.gmra.mxu0 %v141
    %v348 = vpop.f32.mrf.mxu0
    %v349 = vadd.f32 %v120, %v348
    %v350 = vpop.f32.mrf.mxu0
    %v351 = vadd.f32 %v120, %v350
    %352 = vmatmul.bf16.gmra.mxu0 %v142
    %v353 = vpop.f32.mrf.mxu0
    %v354 = vadd.f32 %v120, %v353
    %v355 = vpop.f32.mrf.mxu0
    %v356 = vadd.f32 %v120, %v355
    %357 = vmatmul.bf16.gmra.mxu0 %v143
    %v358 = vpop.f32.mrf.mxu0
    %v359 = vadd.f32 %v120, %v358
    %v360 = vpop.f32.mrf.mxu0
    %v361 = vadd.f32 %v120, %v360
    %362 = vdwg.mxu0
    %v363 = vld [vmem:[#allocation6] sm:$0xff]
    %v364 = vld [vmem:[#allocation6 + $0x8] sm:$0xf]
    %v365 = vld [vmem:[#allocation6 + $0xc] sm:$0xff]
    %v366 = vld [vmem:[#allocation6 + $0x14] sm:$0xf]
    %v367 = vld [vmem:[#allocation6 + $0x18] sm:$0xff]
    %v368 = vld [vmem:[#allocation6 + $0x20] sm:$0xf]
    %v369 = vld [vmem:[#allocation6 + $0x24] sm:$0xff]
    %v370 = vld [vmem:[#allocation6 + $0x2c] sm:$0xf]
    %v371 = vld [vmem:[#allocation6 + $0x30] sm:$0xff]
    %v372 = vld [vmem:[#allocation6 + $0x38] sm:$0xf]
    %v373 = vld [vmem:[#allocation6 + $0x3c] sm:$0xff]
    %v374 = vld [vmem:[#allocation6 + $0x44] sm:$0xf]
    %v375 = vld [vmem:[#allocation6 + $0x48] sm:$0xff]
    %v376 = vld [vmem:[#allocation6 + $0x50] sm:$0xf]
    %v377 = vld [vmem:[#allocation6 + $0x54] sm:$0xff]
    %v378 = vld [vmem:[#allocation6 + $0x5c] sm:$0xf]
    %v379 = vld [vmem:[#allocation6 + $0x60] sm:$0xff]
    %v380 = vld [vmem:[#allocation6 + $0x68] sm:$0xf]
    %v381 = vld [vmem:[#allocation6 + $0x6c] sm:$0xff]
    %v382 = vld [vmem:[#allocation6 + $0x74] sm:$0xf]
    %v383 = vld [vmem:[#allocation6 + $0x78] sm:$0xff]
    %v384 = vld [vmem:[#allocation6 + $0x80] sm:$0xf]
    %v385 = vld [vmem:[#allocation6 + $0x84] sm:$0xff]
    %v386 = vld [vmem:[#allocation6 + $0x8c] sm:$0xf]
    %v387 = vld [vmem:[#allocation6 + $0x90] sm:$0xff]
    %v388 = vld [vmem:[#allocation6 + $0x98] sm:$0xf]
    %v389 = vld [vmem:[#allocation6 + $0x9c] sm:$0xff]
    %v390 = vld [vmem:[#allocation6 + $0xa4] sm:$0xf]
    %v391 = vld [vmem:[#allocation6 + $0xa8] sm:$0xff]
    %v392 = vld [vmem:[#allocation6 + $0xb0] sm:$0xf]
    %v393 = vld [vmem:[#allocation6 + $0xb4] sm:$0xff]
    %v394 = vld [vmem:[#allocation6 + $0xbc] sm:$0xf]
    %v395 = vld [vmem:[%s4] sm:$0x1]
    %v397 = vperm.slane %v395, 0
    %v399 = vld [vmem:[#allocation2] sm:$0xff]
    %v400 = vpack.c.bf16 %v399, %v399
    %v433 = vunpack.c.l.b16 %v363
    %v434 = vunpack.c.h.b16 %v363
    %v435 = vunpack.c.l.b16 %v364
    %v436 = vunpack.c.l.b16 %v365
    %v437 = vunpack.c.h.b16 %v365
    %v438 = vunpack.c.l.b16 %v366
    %v439 = vunpack.c.l.b16 %v367
    %v440 = vunpack.c.h.b16 %v367
    %v441 = vunpack.c.l.b16 %v368
    %v442 = vunpack.c.l.b16 %v369
    %v443 = vunpack.c.h.b16 %v369
    %v444 = vunpack.c.l.b16 %v370
    %v445 = vunpack.c.l.b16 %v371
    %v446 = vunpack.c.h.b16 %v371
    %v447 = vunpack.c.l.b16 %v372
    %v448 = vunpack.c.l.b16 %v373
    %v449 = vunpack.c.h.b16 %v373
    %v450 = vunpack.c.l.b16 %v374
    %v451 = vunpack.c.l.b16 %v375
    %v452 = vunpack.c.h.b16 %v375
    %v453 = vunpack.c.l.b16 %v376
    %v454 = vunpack.c.l.b16 %v377
    %v455 = vunpack.c.h.b16 %v377
    %v456 = vunpack.c.l.b16 %v378
    %v457 = vunpack.c.l.b16 %v379
    %v458 = vunpack.c.h.b16 %v379
    %v459 = vunpack.c.l.b16 %v380
    %v460 = vunpack.c.l.b16 %v381
    %v461 = vunpack.c.h.b16 %v381
    %v462 = vunpack.c.l.b16 %v382
    %v463 = vunpack.c.l.b16 %v383
    %v464 = vunpack.c.h.b16 %v383
    %v465 = vunpack.c.l.b16 %v384
    %v466 = vunpack.c.l.b16 %v385
    %v467 = vunpack.c.h.b16 %v385
    %v468 = vunpack.c.l.b16 %v386
    %v469 = vunpack.c.l.b16 %v387
    %v470 = vunpack.c.h.b16 %v387
    %v471 = vunpack.c.l.b16 %v388
    %v472 = vunpack.c.l.b16 %v389
    %v473 = vunpack.c.h.b16 %v389
    %v474 = vunpack.c.l.b16 %v390
    %v475 = vunpack.c.l.b16 %v391
    %v476 = vunpack.c.h.b16 %v391
    %v477 = vunpack.c.l.b16 %v392
    %v478 = vunpack.c.l.b16 %v393
    %v479 = vunpack.c.h.b16 %v393
    %v480 = vunpack.c.l.b16 %v394
    %v481 = vpack.c.b16 %v436, %v433
    %v482 = vpack.c.b16 %v437, %v434
    %v483 = vpack.c.b16 %v438, %v435
    %v484 = vpack.c.b16 %v442, %v439
    %v485 = vpack.c.b16 %v443, %v440
    %v486 = vpack.c.b16 %v444, %v441
    %v487 = vpack.c.b16 %v448, %v445
    %v488 = vpack.c.b16 %v449, %v446
    %v489 = vpack.c.b16 %v450, %v447
    %v490 = vpack.c.b16 %v454, %v451
    %v491 = vpack.c.b16 %v455, %v452
    %v492 = vpack.c.b16 %v456, %v453
    %v493 = vpack.c.b16 %v460, %v457
    %v494 = vpack.c.b16 %v461, %v458
    %v495 = vpack.c.b16 %v462, %v459
    %v496 = vpack.c.b16 %v466, %v463
    %v497 = vpack.c.b16 %v467, %v464
    %v498 = vpack.c.b16 %v468, %v465
    %v499 = vpack.c.b16 %v472, %v469
    %v500 = vpack.c.b16 %v473, %v470
    %v501 = vpack.c.b16 %v474, %v471
    %v502 = vpack.c.b16 %v478, %v475
    %v503 = vpack.c.b16 %v479, %v476
    %v504 = vpack.c.b16 %v480, %v477
    %529 = vmatpush.bf16.msra.mxu0 %v502
    %530 = vmatpush.bf16.msra.mxu0 %v499
    %531 = vmatpush.bf16.msra.mxu0 %v496
    %532 = vmatpush.bf16.msra.mxu0 %v493
    %533 = vmatpush.bf16.msra.mxu0 %v490
    %534 = vmatpush.bf16.msra.mxu0 %v487
    %535 = vmatpush.bf16.msra.mxu0 %v484
    %536 = vmatpush.bf16.msra.mxu0 %v481
    %537 = vmatmul.bf16.gmra.mxu0 %v400
    %v538 = vpop.f32.mrf.mxu0
    %v539 = vadd.f32 0.0, %v538
    %v540 = vpop.f32.mrf.mxu0
    %541 = vdwg.mxu0
    %542 = vmatpush.bf16.msra.mxu0 %v503
    %543 = vmatpush.bf16.msra.mxu0 %v500
    %544 = vmatpush.bf16.msra.mxu0 %v497
    %545 = vmatpush.bf16.msra.mxu0 %v494
    %546 = vmatpush.bf16.msra.mxu0 %v491
    %547 = vmatpush.bf16.msra.mxu0 %v488
    %548 = vmatpush.bf16.msra.mxu0 %v485
    %549 = vmatpush.bf16.msra.mxu0 %v482
    %550 = vmatmul.bf16.gmra.mxu0 %v400
    %v551 = vpop.f32.mrf.mxu0
    %v552 = vadd.f32 0.0, %v551
    %v553 = vpop.f32.mrf.mxu0
    %554 = vdwg.mxu0
    %555 = vmatpush.bf16.msra.mxu0 %v504
    %556 = vmatpush.bf16.msra.mxu0 %v501
    %557 = vmatpush.bf16.msra.mxu0 %v498
    %558 = vmatpush.bf16.msra.mxu0 %v495
    %559 = vmatpush.bf16.msra.mxu0 %v492
    %560 = vmatpush.bf16.msra.mxu0 %v489
    %561 = vmatpush.bf16.msra.mxu0 %v486
    %562 = vmatpush.bf16.msra.mxu0 %v483
    %563 = vmatmul.bf16.gmra.mxu0 %v400
    %v564 = vpop.f32.mrf.mxu0
    %v565 = vadd.f32 0.0, %v564
    %v566 = vpop.f32.mrf.mxu0
    %567 = vdwg.mxu0
    %v568 = vadd.f32 %v286, %v539
    %v569 = vxor.u32 %v568, 2147483648
    %v570 = vmul.f32 %v569, 1.442695
    %v571 = vpow.pop %v570
    %v572 = vadd.f32 %v571, 1.0
    %v573 = vrcp.pop %v572
    %v574 = vmul.f32 %v572, %v573
    %v575 = vsub.f32 1.0, %v574
    %v576 = vmul.f32 %v573, %v575
    %v577 = vadd.f32 %v573, %v576
    %vm578 = vweird.f32 %v572
    %vm579 = vweird.f32 %v573
    %vm580 = vmor %vm578, %vm579
    %v581 = vsel %vm580, %v573, %v577
    %v582 = vand.u32 2147483647, %v572
    %vm583 = vcmp.eq.f32.partialorder %v582, 8.507059e+37
    %v584 = vand.u32 %v572, 2147483648
    %v585 = vor.u32 1.1754944e-38, %v584
    %v586 = vsel %vm583, %v585, %v581
    %v587 = vmul.f32 1.0, %v586
    %v588 = vadd.f32 %v315, %v552
    %v589 = vxor.u32 %v588, 2147483648
    %v590 = vmul.f32 %v589, 1.442695
    %v591 = vpow.pop %v590
    %v592 = vadd.f32 %v591, 1.0
    %v593 = vrcp.pop %v592
    %v594 = vmul.f32 %v592, %v593
    %v595 = vsub.f32 1.0, %v594
    %v596 = vmul.f32 %v593, %v595
    %v597 = vadd.f32 %v593, %v596
    %vm598 = vweird.f32 %v592
    %vm599 = vweird.f32 %v593
    %vm600 = vmor %vm598, %vm599
    %v601 = vsel %vm600, %v593, %v597
    %v602 = vand.u32 2147483647, %v592
    %vm603 = vcmp.eq.f32.partialorder %v602, 8.507059e+37
    %v604 = vand.u32 %v592, 2147483648
    %v605 = vor.u32 1.1754944e-38, %v604
    %v606 = vsel %vm603, %v605, %v601
    %v607 = vmul.f32 1.0, %v606
    %v608 = vadd.f32 %v565, %v397
    %v609 = vmul.f32 %v587, %v608
    %v610 = vadd.f32 %v344, %v609
    %v611 = vtanh.pop %v610
    %v612 = vsub.f32 1.0, %v607
    %v613 = vmul.f32 %v612, %v611
    %v614 = vmul.f32 %v607, %v399
    %v615 = vadd.f32 %v613, %v614
    %616 = vst [vmem:[#allocation3] sm:$0xff] %v615
    %v617 = vpack.c.bf16 %v615, %v615
    %618 = vmatpush.bf16.msra.mxu0 %v502
    %619 = vmatpush.bf16.msra.mxu0 %v499
    %620 = vmatpush.bf16.msra.mxu0 %v496
    %621 = vmatpush.bf16.msra.mxu0 %v493
    %622 = vmatpush.bf16.msra.mxu0 %v490
    %623 = vmatpush.bf16.msra.mxu0 %v487
    %624 = vmatpush.bf16.msra.mxu0 %v484
    %625 = vmatpush.bf16.msra.mxu0 %v481
    %626 = vmatmul.bf16.gmra.mxu0 %v617
    %v627 = vpop.f32.mrf.mxu0
    %v628 = vadd.f32 0.0, %v627
    %v629 = vpop.f32.mrf.mxu0
    %630 = vdwg.mxu0
    %631 = vmatpush.bf16.msra.mxu0 %v503
    %632 = vmatpush.bf16.msra.mxu0 %v500
    %633 = vmatpush.bf16.msra.mxu0 %v497
    %634 = vmatpush.bf16.msra.mxu0 %v494
    %635 = vmatpush.bf16.msra.mxu0 %v491
    %636 = vmatpush.bf16.msra.mxu0 %v488
    %637 = vmatpush.bf16.msra.mxu0 %v485
    %638 = vmatpush.bf16.msra.mxu0 %v482
    %639 = vmatmul.bf16.gmra.mxu0 %v617
    %v640 = vpop.f32.mrf.mxu0
    %v641 = vadd.f32 0.0, %v640
    %v642 = vpop.f32.mrf.mxu0
    %643 = vdwg.mxu0
    %644 = vmatpush.bf16.msra.mxu0 %v504
    %645 = vmatpush.bf16.msra.mxu0 %v501
    %646 = vmatpush.bf16.msra.mxu0 %v498
    %647 = vmatpush.bf16.msra.mxu0 %v495
    %648 = vmatpush.bf16.msra.mxu0 %v492
    %649 = vmatpush.bf16.msra.mxu0 %v489
    %650 = vmatpush.bf16.msra.mxu0 %v486
    %651 = vmatpush.bf16.msra.mxu0 %v483
    %652 = vmatmul.bf16.gmra.mxu0 %v617
    %v653 = vpop.f32.mrf.mxu0
    %v654 = vadd.f32 0.0, %v653
    %v655 = vpop.f32.mrf.mxu0
    %656 = vdwg.mxu0
    %v657 = vadd.f32 %v288, %v628
    %v658 = vxor.u32 %v657, 2147483648
    %v659 = vmul.f32 %v658, 1.442695
    %v660 = vpow.pop %v659
    %v661 = vadd.f32 %v660, 1.0
    %v662 = vrcp.pop %v661
    %v663 = vmul.f32 %v661, %v662
    %v664 = vsub.f32 1.0, %v663
    %v665 = vmul.f32 %v662, %v664
    %v666 = vadd.f32 %v662, %v665
    %vm667 = vweird.f32 %v661
    %vm668 = vweird.f32 %v662
    %vm669 = vmor %vm667, %vm668
    %v670 = vsel %vm669, %v662, %v666
    %v671 = vand.u32 2147483647, %v661
    %vm672 = vcmp.eq.f32.partialorder %v671, 8.507059e+37
    %v673 = vand.u32 %v661, 2147483648
    %v674 = vor.u32 1.1754944e-38, %v673
    %v675 = vsel %vm672, %v674, %v670
    %v676 = vmul.f32 1.0, %v675
    %v677 = vadd.f32 %v317, %v641
    %v678 = vxor.u32 %v677, 2147483648
    %v679 = vmul.f32 %v678, 1.442695
    %v680 = vpow.pop %v679
    %v681 = vadd.f32 %v680, 1.0
    %v682 = vrcp.pop %v681
    %v683 = vmul.f32 %v681, %v682
    %v684 = vsub.f32 1.0, %v683
    %v685 = vmul.f32 %v682, %v684
    %v686 = vadd.f32 %v682, %v685
    %vm687 = vweird.f32 %v681
    %vm688 = vweird.f32 %v682
    %vm689 = vmor %vm687, %vm688
    %v690 = vsel %vm689, %v682, %v686
    %v691 = vand.u32 2147483647, %v681
    %vm692 = vcmp.eq.f32.partialorder %v691, 8.507059e+37
    %v693 = vand.u32 %v681, 2147483648
    %v694 = vor.u32 1.1754944e-38, %v693
    %v695 = vsel %vm692, %v694, %v690
    %v696 = vmul.f32 1.0, %v695
    %v697 = vadd.f32 %v654, %v397
    %v698 = vmul.f32 %v676, %v697
    %v699 = vadd.f32 %v346, %v698
    %v700 = vtanh.pop %v699
    %v701 = vsub.f32 1.0, %v696
    %v702 = vmul.f32 %v701, %v700
    %v703 = vmul.f32 %v696, %v615
    %v704 = vadd.f32 %v702, %v703
    %s705 = scalar_lea.vmem [#allocation3], 8
    %706 = vst [vmem:[%s705] sm:$0xff] %v704
    %v707 = vpack.c.bf16 %v704, %v704
    %708 = vmatpush.bf16.msra.mxu0 %v502
    %709 = vmatpush.bf16.msra.mxu0 %v499
    %710 = vmatpush.bf16.msra.mxu0 %v496
    %711 = vmatpush.bf16.msra.mxu0 %v493
    %712 = vmatpush.bf16.msra.mxu0 %v490
    %713 = vmatpush.bf16.msra.mxu0 %v487
    %714 = vmatpush.bf16.msra.mxu0 %v484
    %715 = vmatpush.bf16.msra.mxu0 %v481
    %716 = vmatmul.bf16.gmra.mxu0 %v707
    %v717 = vpop.f32.mrf.mxu0
    %v718 = vadd.f32 0.0, %v717
    %v719 = vpop.f32.mrf.mxu0
    %720 = vdwg.mxu0
    %721 = vmatpush.bf16.msra.mxu0 %v503
    %722 = vmatpush.bf16.msra.mxu0 %v500
    %723 = vmatpush.bf16.msra.mxu0 %v497
    %724 = vmatpush.bf16.msra.mxu0 %v494
    %725 = vmatpush.bf16.msra.mxu0 %v491
    %726 = vmatpush.bf16.msra.mxu0 %v488
    %727 = vmatpush.bf16.msra.mxu0 %v485
    %728 = vmatpush.bf16.msra.mxu0 %v482
    %729 = vmatmul.bf16.gmra.mxu0 %v707
    %v730 = vpop.f32.mrf.mxu0
    %v731 = vadd.f32 0.0, %v730
    %v732 = vpop.f32.mrf.mxu0
    %733 = vdwg.mxu0
    %734 = vmatpush.bf16.msra.mxu0 %v504
    %735 = vmatpush.bf16.msra.mxu0 %v501
    %736 = vmatpush.bf16.msra.mxu0 %v498
    %737 = vmatpush.bf16.msra.mxu0 %v495
    %738 = vmatpush.bf16.msra.mxu0 %v492
    %739 = vmatpush.bf16.msra.mxu0 %v489
    %740 = vmatpush.bf16.msra.mxu0 %v486
    %741 = vmatpush.bf16.msra.mxu0 %v483
    %742 = vmatmul.bf16.gmra.mxu0 %v707
    %v743 = vpop.f32.mrf.mxu0
    %v744 = vadd.f32 0.0, %v743
    %v745 = vpop.f32.mrf.mxu0
    %746 = vdwg.mxu0
    %v747 = vadd.f32 %v291, %v718
    %v748 = vxor.u32 %v747, 2147483648
    %v749 = vmul.f32 %v748, 1.442695
    %v750 = vpow.pop %v749
    %v751 = vadd.f32 %v750, 1.0
    %v752 = vrcp.pop %v751
    %v753 = vmul.f32 %v751, %v752
    %v754 = vsub.f32 1.0, %v753
    %v755 = vmul.f32 %v752, %v754
    %v756 = vadd.f32 %v752, %v755
    %vm757 = vweird.f32 %v751
    %vm758 = vweird.f32 %v752
    %vm759 = vmor %vm757, %vm758
    %v760 = vsel %vm759, %v752, %v756
    %v761 = vand.u32 2147483647, %v751
    %vm762 = vcmp.eq.f32.partialorder %v761, 8.507059e+37
    %v763 = vand.u32 %v751, 2147483648
    %v764 = vor.u32 1.1754944e-38, %v763
    %v765 = vsel %vm762, %v764, %v760
    %v766 = vmul.f32 1.0, %v765
    %v767 = vadd.f32 %v320, %v731
    %v768 = vxor.u32 %v767, 2147483648
    %v769 = vmul.f32 %v768, 1.442695
    %v770 = vpow.pop %v769
    %v771 = vadd.f32 %v770, 1.0
    %v772 = vrcp.pop %v771
    %v773 = vmul.f32 %v771, %v772
    %v774 = vsub.f32 1.0, %v773
    %v775 = vmul.f32 %v772, %v774
    %v776 = vadd.f32 %v772, %v775
    %vm777 = vweird.f32 %v771
    %vm778 = vweird.f32 %v772
    %vm779 = vmor %vm777, %vm778
    %v780 = vsel %vm779, %v772, %v776
    %v781 = vand.u32 2147483647, %v771
    %vm782 = vcmp.eq.f32.partialorder %v781, 8.507059e+37
    %v783 = vand.u32 %v771, 2147483648
    %v784 = vor.u32 1.1754944e-38, %v783
    %v785 = vsel %vm782, %v784, %v780
    %v786 = vmul.f32 1.0, %v785
    %v787 = vadd.f32 %v744, %v397
    %v788 = vmul.f32 %v766, %v787
    %v789 = vadd.f32 %v349, %v788
    %v790 = vtanh.pop %v789
    %v791 = vsub.f32 1.0, %v786
    %v792 = vmul.f32 %v791, %v790
    %v793 = vmul.f32 %v786, %v704
    %v794 = vadd.f32 %v792, %v793
    %s795 = scalar_lea.vmem [#allocation3], 16
    %796 = vst [vmem:[%s795] sm:$0xff] %v794
    %v797 = vpack.c.bf16 %v794, %v794
    %798 = vmatpush.bf16.msra.mxu0 %v502
    %799 = vmatpush.bf16.msra.mxu0 %v499
    %800 = vmatpush.bf16.msra.mxu0 %v496
    %801 = vmatpush.bf16.msra.mxu0 %v493
    %802 = vmatpush.bf16.msra.mxu0 %v490
    %803 = vmatpush.bf16.msra.mxu0 %v487
    %804 = vmatpush.bf16.msra.mxu0 %v484
    %805 = vmatpush.bf16.msra.mxu0 %v481
    %806 = vmatmul.bf16.gmra.mxu0 %v797
    %v807 = vpop.f32.mrf.mxu0
    %v808 = vadd.f32 0.0, %v807
    %v809 = vpop.f32.mrf.mxu0
    %810 = vdwg.mxu0
    %811 = vmatpush.bf16.msra.mxu0 %v503
    %812 = vmatpush.bf16.msra.mxu0 %v500
    %813 = vmatpush.bf16.msra.mxu0 %v497
    %814 = vmatpush.bf16.msra.mxu0 %v494
    %815 = vmatpush.bf16.msra.mxu0 %v491
    %816 = vmatpush.bf16.msra.mxu0 %v488
    %817 = vmatpush.bf16.msra.mxu0 %v485
    %818 = vmatpush.bf16.msra.mxu0 %v482
    %819 = vmatmul.bf16.gmra.mxu0 %v797
    %v820 = vpop.f32.mrf.mxu0
    %v821 = vadd.f32 0.0, %v820
    %v822 = vpop.f32.mrf.mxu0
    %823 = vdwg.mxu0
    %824 = vmatpush.bf16.msra.mxu0 %v504
    %825 = vmatpush.bf16.msra.mxu0 %v501
    %826 = vmatpush.bf16.msra.mxu0 %v498
    %827 = vmatpush.bf16.msra.mxu0 %v495
    %828 = vmatpush.bf16.msra.mxu0 %v492
    %829 = vmatpush.bf16.msra.mxu0 %v489
    %830 = vmatpush.bf16.msra.mxu0 %v486
    %831 = vmatpush.bf16.msra.mxu0 %v483
    %832 = vmatmul.bf16.gmra.mxu0 %v797
    %v833 = vpop.f32.mrf.mxu0
    %v834 = vadd.f32 0.0, %v833
    %v835 = vpop.f32.mrf.mxu0
    %836 = vdwg.mxu0
    %v837 = vadd.f32 %v293, %v808
    %v838 = vxor.u32 %v837, 2147483648
    %v839 = vmul.f32 %v838, 1.442695
    %v840 = vpow.pop %v839
    %v841 = vadd.f32 %v840, 1.0
    %v842 = vrcp.pop %v841
    %v843 = vmul.f32 %v841, %v842
    %v844 = vsub.f32 1.0, %v843
    %v845 = vmul.f32 %v842, %v844
    %v846 = vadd.f32 %v842, %v845
    %vm847 = vweird.f32 %v841
    %vm848 = vweird.f32 %v842
    %vm849 = vmor %vm847, %vm848
    %v850 = vsel %vm849, %v842, %v846
    %v851 = vand.u32 2147483647, %v841
    %vm852 = vcmp.eq.f32.partialorder %v851, 8.507059e+37
    %v853 = vand.u32 %v841, 2147483648
    %v854 = vor.u32 1.1754944e-38, %v853
    %v855 = vsel %vm852, %v854, %v850
    %v856 = vmul.f32 1.0, %v855
    %v857 = vadd.f32 %v322, %v821
    %v858 = vxor.u32 %v857, 2147483648
    %v859 = vmul.f32 %v858, 1.442695
    %v860 = vpow.pop %v859
    %v861 = vadd.f32 %v860, 1.0
    %v862 = vrcp.pop %v861
    %v863 = vmul.f32 %v861, %v862
    %v864 = vsub.f32 1.0, %v863
    %v865 = vmul.f32 %v862, %v864
    %v866 = vadd.f32 %v862, %v865
    %vm867 = vweird.f32 %v861
    %vm868 = vweird.f32 %v862
    %vm869 = vmor %vm867, %vm868
    %v870 = vsel %vm869, %v862, %v866
    %v871 = vand.u32 2147483647, %v861
    %vm872 = vcmp.eq.f32.partialorder %v871, 8.507059e+37
    %v873 = vand.u32 %v861, 2147483648
    %v874 = vor.u32 1.1754944e-38, %v873
    %v875 = vsel %vm872, %v874, %v870
    %v876 = vmul.f32 1.0, %v875
    %v877 = vadd.f32 %v834, %v397
    %v878 = vmul.f32 %v856, %v877
    %v879 = vadd.f32 %v351, %v878
    %v880 = vtanh.pop %v879
    %v881 = vsub.f32 1.0, %v876
    %v882 = vmul.f32 %v881, %v880
    %v883 = vmul.f32 %v876, %v794
    %v884 = vadd.f32 %v882, %v883
    %s885 = scalar_lea.vmem [#allocation3], 24
    %886 = vst [vmem:[%s885] sm:$0xff] %v884
    %v887 = vpack.c.bf16 %v884, %v884
    %888 = vmatpush.bf16.msra.mxu0 %v502
    %889 = vmatpush.bf16.msra.mxu0 %v499
    %890 = vmatpush.bf16.msra.mxu0 %v496
    %891 = vmatpush.bf16.msra.mxu0 %v493
    %892 = vmatpush.bf16.msra.mxu0 %v490
    %893 = vmatpush.bf16.msra.mxu0 %v487
    %894 = vmatpush.bf16.msra.mxu0 %v484
    %895 = vmatpush.bf16.msra.mxu0 %v481
    %896 = vmatmul.bf16.gmra.mxu0 %v887
    %v897 = vpop.f32.mrf.mxu0
    %v898 = vadd.f32 0.0, %v897
    %v899 = vpop.f32.mrf.mxu0
    %900 = vdwg.mxu0
    %901 = vmatpush.bf16.msra.mxu0 %v503
    %902 = vmatpush.bf16.msra.mxu0 %v500
    %903 = vmatpush.bf16.msra.mxu0 %v497
    %904 = vmatpush.bf16.msra.mxu0 %v494
    %905 = vmatpush.bf16.msra.mxu0 %v491
    %906 = vmatpush.bf16.msra.mxu0 %v488
    %907 = vmatpush.bf16.msra.mxu0 %v485
    %908 = vmatpush.bf16.msra.mxu0 %v482
    %909 = vmatmul.bf16.gmra.mxu0 %v887
    %v910 = vpop.f32.mrf.mxu0
    %v911 = vadd.f32 0.0, %v910
    %v912 = vpop.f32.mrf.mxu0
    %913 = vdwg.mxu0
    %914 = vmatpush.bf16.msra.mxu0 %v504
    %915 = vmatpush.bf16.msra.mxu0 %v501
    %916 = vmatpush.bf16.msra.mxu0 %v498
    %917 = vmatpush.bf16.msra.mxu0 %v495
    %918 = vmatpush.bf16.msra.mxu0 %v492
    %919 = vmatpush.bf16.msra.mxu0 %v489
    %920 = vmatpush.bf16.msra.mxu0 %v486
    %921 = vmatpush.bf16.msra.mxu0 %v483
    %922 = vmatmul.bf16.gmra.mxu0 %v887
    %v923 = vpop.f32.mrf.mxu0
    %v924 = vadd.f32 0.0, %v923
    %v925 = vpop.f32.mrf.mxu0
    %926 = vdwg.mxu0
    %v927 = vadd.f32 %v296, %v898
    %v928 = vxor.u32 %v927, 2147483648
    %v929 = vmul.f32 %v928, 1.442695
    %v930 = vpow.pop %v929
    %v931 = vadd.f32 %v930, 1.0
    %v932 = vrcp.pop %v931
    %v933 = vmul.f32 %v931, %v932
    %v934 = vsub.f32 1.0, %v933
    %v935 = vmul.f32 %v932, %v934
    %v936 = vadd.f32 %v932, %v935
    %vm937 = vweird.f32 %v931
    %vm938 = vweird.f32 %v932
    %vm939 = vmor %vm937, %vm938
    %v940 = vsel %vm939, %v932, %v936
    %v941 = vand.u32 2147483647, %v931
    %vm942 = vcmp.eq.f32.partialorder %v941, 8.507059e+37
    %v943 = vand.u32 %v931, 2147483648
    %v944 = vor.u32 1.1754944e-38, %v943
    %v945 = vsel %vm942, %v944, %v940
    %v946 = vmul.f32 1.0, %v945
    %v947 = vadd.f32 %v325, %v911
    %v948 = vxor.u32 %v947, 2147483648
    %v949 = vmul.f32 %v948, 1.442695
    %v950 = vpow.pop %v949
    %v951 = vadd.f32 %v950, 1.0
    %v952 = vrcp.pop %v951
    %v953 = vmul.f32 %v951, %v952
    %v954 = vsub.f32 1.0, %v953
    %v955 = vmul.f32 %v952, %v954
    %v956 = vadd.f32 %v952, %v955
    %vm957 = vweird.f32 %v951
    %vm958 = vweird.f32 %v952
    %vm959 = vmor %vm957, %vm958
    %v960 = vsel %vm959, %v952, %v956
    %v961 = vand.u32 2147483647, %v951
    %vm962 = vcmp.eq.f32.partialorder %v961, 8.507059e+37
    %v963 = vand.u32 %v951, 2147483648
    %v964 = vor.u32 1.1754944e-38, %v963
    %v965 = vsel %vm962, %v964, %v960
    %v966 = vmul.f32 1.0, %v965
    %v967 = vadd.f32 %v924, %v397
    %v968 = vmul.f32 %v946, %v967
    %v969 = vadd.f32 %v354, %v968
    %v970 = vtanh.pop %v969
    %v971 = vsub.f32 1.0, %v966
    %v972 = vmul.f32 %v971, %v970
    %v973 = vmul.f32 %v966, %v884
    %v974 = vadd.f32 %v972, %v973
    %s975 = scalar_lea.vmem [#allocation3], 32
    %976 = vst [vmem:[%s975] sm:$0xff] %v974
    %v977 = vpack.c.bf16 %v974, %v974
    %978 = vmatpush.bf16.msra.mxu0 %v502
    %979 = vmatpush.bf16.msra.mxu0 %v499
    %980 = vmatpush.bf16.msra.mxu0 %v496
    %981 = vmatpush.bf16.msra.mxu0 %v493
    %982 = vmatpush.bf16.msra.mxu0 %v490
    %983 = vmatpush.bf16.msra.mxu0 %v487
    %984 = vmatpush.bf16.msra.mxu0 %v484
    %985 = vmatpush.bf16.msra.mxu0 %v481
    %986 = vmatmul.bf16.gmra.mxu0 %v977
    %v987 = vpop.f32.mrf.mxu0
    %v988 = vadd.f32 0.0, %v987
    %v989 = vpop.f32.mrf.mxu0
    %990 = vdwg.mxu0
    %991 = vmatpush.bf16.msra.mxu0 %v503
    %992 = vmatpush.bf16.msra.mxu0 %v500
    %993 = vmatpush.bf16.msra.mxu0 %v497
    %994 = vmatpush.bf16.msra.mxu0 %v494
    %995 = vmatpush.bf16.msra.mxu0 %v491
    %996 = vmatpush.bf16.msra.mxu0 %v488
    %997 = vmatpush.bf16.msra.mxu0 %v485
    %998 = vmatpush.bf16.msra.mxu0 %v482
    %999 = vmatmul.bf16.gmra.mxu0 %v977
    %v1000 = vpop.f32.mrf.mxu0
    %v1001 = vadd.f32 0.0, %v1000
    %v1002 = vpop.f32.mrf.mxu0
    %1003 = vdwg.mxu0
    %1004 = vmatpush.bf16.msra.mxu0 %v504
    %1005 = vmatpush.bf16.msra.mxu0 %v501
    %1006 = vmatpush.bf16.msra.mxu0 %v498
    %1007 = vmatpush.bf16.msra.mxu0 %v495
    %1008 = vmatpush.bf16.msra.mxu0 %v492
    %1009 = vmatpush.bf16.msra.mxu0 %v489
    %1010 = vmatpush.bf16.msra.mxu0 %v486
    %1011 = vmatpush.bf16.msra.mxu0 %v483
    %1012 = vmatmul.bf16.gmra.mxu0 %v977
    %v1013 = vpop.f32.mrf.mxu0
    %v1014 = vadd.f32 0.0, %v1013
    %v1015 = vpop.f32.mrf.mxu0
    %1016 = vdwg.mxu0
    %v1017 = vadd.f32 %v298, %v988
    %v1018 = vxor.u32 %v1017, 2147483648
    %v1019 = vmul.f32 %v1018, 1.442695
    %v1020 = vpow.pop %v1019
    %v1021 = vadd.f32 %v1020, 1.0
    %v1022 = vrcp.pop %v1021
    %v1023 = vmul.f32 %v1021, %v1022
    %v1024 = vsub.f32 1.0, %v1023
    %v1025 = vmul.f32 %v1022, %v1024
    %v1026 = vadd.f32 %v1022, %v1025
    %vm1027 = vweird.f32 %v1021
    %vm1028 = vweird.f32 %v1022
    %vm1029 = vmor %vm1027, %vm1028
    %v1030 = vsel %vm1029, %v1022, %v1026
    %v1031 = vand.u32 2147483647, %v1021
    %vm1032 = vcmp.eq.f32.partialorder %v1031, 8.507059e+37
    %v1033 = vand.u32 %v1021, 2147483648
    %v1034 = vor.u32 1.1754944e-38, %v1033
    %v1035 = vsel %vm1032, %v1034, %v1030
    %v1036 = vmul.f32 1.0, %v1035
    %v1037 = vadd.f32 %v327, %v1001
    %v1038 = vxor.u32 %v1037, 2147483648
    %v1039 = vmul.f32 %v1038, 1.442695
    %v1040 = vpow.pop %v1039
    %v1041 = vadd.f32 %v1040, 1.0
    %v1042 = vrcp.pop %v1041
    %v1043 = vmul.f32 %v1041, %v1042
    %v1044 = vsub.f32 1.0, %v1043
    %v1045 = vmul.f32 %v1042, %v1044
    %v1046 = vadd.f32 %v1042, %v1045
    %vm1047 = vweird.f32 %v1041
    %vm1048 = vweird.f32 %v1042
    %vm1049 = vmor %vm1047, %vm1048
    %v1050 = vsel %vm1049, %v1042, %v1046
    %v1051 = vand.u32 2147483647, %v1041
    %vm1052 = vcmp.eq.f32.partialorder %v1051, 8.507059e+37
    %v1053 = vand.u32 %v1041, 2147483648
    %v1054 = vor.u32 1.1754944e-38, %v1053
    %v1055 = vsel %vm1052, %v1054, %v1050
    %v1056 = vmul.f32 1.0, %v1055
    %v1057 = vadd.f32 %v1014, %v397
    %v1058 = vmul.f32 %v1036, %v1057
    %v1059 = vadd.f32 %v356, %v1058
    %v1060 = vtanh.pop %v1059
    %v1061 = vsub.f32 1.0, %v1056
    %v1062 = vmul.f32 %v1061, %v1060
    %v1063 = vmul.f32 %v1056, %v974
    %v1064 = vadd.f32 %v1062, %v1063
    %s1065 = scalar_lea.vmem [#allocation3], 40
    %1066 = vst [vmem:[%s1065] sm:$0xff] %v1064
    %v1067 = vpack.c.bf16 %v1064, %v1064
    %1068 = vmatpush.bf16.msra.mxu0 %v502
    %1069 = vmatpush.bf16.msra.mxu0 %v499
    %1070 = vmatpush.bf16.msra.mxu0 %v496
    %1071 = vmatpush.bf16.msra.mxu0 %v493
    %1072 = vmatpush.bf16.msra.mxu0 %v490
    %1073 = vmatpush.bf16.msra.mxu0 %v487
    %1074 = vmatpush.bf16.msra.mxu0 %v484
    %1075 = vmatpush.bf16.msra.mxu0 %v481
    %1076 = vmatmul.bf16.gmra.mxu0 %v1067
    %v1077 = vpop.f32.mrf.mxu0
    %v1078 = vadd.f32 0.0, %v1077
    %v1079 = vpop.f32.mrf.mxu0
    %1080 = vdwg.mxu0
    %1081 = vmatpush.bf16.msra.mxu0 %v503
    %1082 = vmatpush.bf16.msra.mxu0 %v500
    %1083 = vmatpush.bf16.msra.mxu0 %v497
    %1084 = vmatpush.bf16.msra.mxu0 %v494
    %1085 = vmatpush.bf16.msra.mxu0 %v491
    %1086 = vmatpush.bf16.msra.mxu0 %v488
    %1087 = vmatpush.bf16.msra.mxu0 %v485
    %1088 = vmatpush.bf16.msra.mxu0 %v482
    %1089 = vmatmul.bf16.gmra.mxu0 %v1067
    %v1090 = vpop.f32.mrf.mxu0
    %v1091 = vadd.f32 0.0, %v1090
    %v1092 = vpop.f32.mrf.mxu0
    %1093 = vdwg.mxu0
    %1094 = vmatpush.bf16.msra.mxu0 %v504
    %1095 = vmatpush.bf16.msra.mxu0 %v501
    %1096 = vmatpush.bf16.msra.mxu0 %v498
    %1097 = vmatpush.bf16.msra.mxu0 %v495
    %1098 = vmatpush.bf16.msra.mxu0 %v492
    %1099 = vmatpush.bf16.msra.mxu0 %v489
    %1100 = vmatpush.bf16.msra.mxu0 %v486
    %1101 = vmatpush.bf16.msra.mxu0 %v483
    %1102 = vmatmul.bf16.gmra.mxu0 %v1067
    %v1103 = vpop.f32.mrf.mxu0
    %v1104 = vadd.f32 0.0, %v1103
    %v1105 = vpop.f32.mrf.mxu0
    %1106 = vdwg.mxu0
    %v1107 = vadd.f32 %v301, %v1078
    %v1108 = vxor.u32 %v1107, 2147483648
    %v1109 = vmul.f32 %v1108, 1.442695
    %v1110 = vpow.pop %v1109
    %v1111 = vadd.f32 %v1110, 1.0
    %v1112 = vrcp.pop %v1111
    %v1113 = vmul.f32 %v1111, %v1112
    %v1114 = vsub.f32 1.0, %v1113
    %v1115 = vmul.f32 %v1112, %v1114
    %v1116 = vadd.f32 %v1112, %v1115
    %vm1117 = vweird.f32 %v1111
    %vm1118 = vweird.f32 %v1112
    %vm1119 = vmor %vm1117, %vm1118
    %v1120 = vsel %vm1119, %v1112, %v1116
    %v1121 = vand.u32 2147483647, %v1111
    %vm1122 = vcmp.eq.f32.partialorder %v1121, 8.507059e+37
    %v1123 = vand.u32 %v1111, 2147483648
    %v1124 = vor.u32 1.1754944e-38, %v1123
    %v1125 = vsel %vm1122, %v1124, %v1120
    %v1126 = vmul.f32 1.0, %v1125
    %v1127 = vadd.f32 %v330, %v1091
    %v1128 = vxor.u32 %v1127, 2147483648
    %v1129 = vmul.f32 %v1128, 1.442695
    %v1130 = vpow.pop %v1129
    %v1131 = vadd.f32 %v1130, 1.0
    %v1132 = vrcp.pop %v1131
    %v1133 = vmul.f32 %v1131, %v1132
    %v1134 = vsub.f32 1.0, %v1133
    %v1135 = vmul.f32 %v1132, %v1134
    %v1136 = vadd.f32 %v1132, %v1135
    %vm1137 = vweird.f32 %v1131
    %vm1138 = vweird.f32 %v1132
    %vm1139 = vmor %vm1137, %vm1138
    %v1140 = vsel %vm1139, %v1132, %v1136
    %v1141 = vand.u32 2147483647, %v1131
    %vm1142 = vcmp.eq.f32.partialorder %v1141, 8.507059e+37
    %v1143 = vand.u32 %v1131, 2147483648
    %v1144 = vor.u32 1.1754944e-38, %v1143
    %v1145 = vsel %vm1142, %v1144, %v1140
    %v1146 = vmul.f32 1.0, %v1145
    %v1147 = vadd.f32 %v1104, %v397
    %v1148 = vmul.f32 %v1126, %v1147
    %v1149 = vadd.f32 %v359, %v1148
    %v1150 = vtanh.pop %v1149
    %v1151 = vsub.f32 1.0, %v1146
    %v1152 = vmul.f32 %v1151, %v1150
    %v1153 = vmul.f32 %v1146, %v1064
    %v1154 = vadd.f32 %v1152, %v1153
    %s1155 = scalar_lea.vmem [#allocation3], 48
    %1156 = vst [vmem:[%s1155] sm:$0xff] %v1154
    %v1157 = vpack.c.bf16 %v1154, %v1154
    %1158 = vmatpush.bf16.msra.mxu0 %v502
    %1159 = vmatpush.bf16.msra.mxu0 %v499
    %1160 = vmatpush.bf16.msra.mxu0 %v496
    %1161 = vmatpush.bf16.msra.mxu0 %v493
    %1162 = vmatpush.bf16.msra.mxu0 %v490
    %1163 = vmatpush.bf16.msra.mxu0 %v487
    %1164 = vmatpush.bf16.msra.mxu0 %v484
    %1165 = vmatpush.bf16.msra.mxu0 %v481
    %1166 = vmatmul.bf16.gmra.mxu0 %v1157
    %v1167 = vpop.f32.mrf.mxu0
    %v1168 = vadd.f32 0.0, %v1167
    %v1169 = vpop.f32.mrf.mxu0
    %1170 = vdwg.mxu0
    %1171 = vmatpush.bf16.msra.mxu0 %v503
    %1172 = vmatpush.bf16.msra.mxu0 %v500
    %1173 = vmatpush.bf16.msra.mxu0 %v497
    %1174 = vmatpush.bf16.msra.mxu0 %v494
    %1175 = vmatpush.bf16.msra.mxu0 %v491
    %1176 = vmatpush.bf16.msra.mxu0 %v488
    %1177 = vmatpush.bf16.msra.mxu0 %v485
    %1178 = vmatpush.bf16.msra.mxu0 %v482
    %1179 = vmatmul.bf16.gmra.mxu0 %v1157
    %v1180 = vpop.f32.mrf.mxu0
    %v1181 = vadd.f32 0.0, %v1180
    %v1182 = vpop.f32.mrf.mxu0
    %1183 = vdwg.mxu0
    %1184 = vmatpush.bf16.msra.mxu0 %v504
    %1185 = vmatpush.bf16.msra.mxu0 %v501
    %1186 = vmatpush.bf16.msra.mxu0 %v498
    %1187 = vmatpush.bf16.msra.mxu0 %v495
    %1188 = vmatpush.bf16.msra.mxu0 %v492
    %1189 = vmatpush.bf16.msra.mxu0 %v489
    %1190 = vmatpush.bf16.msra.mxu0 %v486
    %1191 = vmatpush.bf16.msra.mxu0 %v483
    %1192 = vmatmul.bf16.gmra.mxu0 %v1157
    %v1193 = vpop.f32.mrf.mxu0
    %v1194 = vadd.f32 0.0, %v1193
    %v1195 = vpop.f32.mrf.mxu0
    %1196 = vdwg.mxu0
    %v1197 = vadd.f32 %v303, %v1168
    %v1198 = vxor.u32 %v1197, 2147483648
    %v1199 = vmul.f32 %v1198, 1.442695
    %v1200 = vpow.pop %v1199
    %v1201 = vadd.f32 %v1200, 1.0
    %v1202 = vrcp.pop %v1201
    %v1203 = vmul.f32 %v1201, %v1202
    %v1204 = vsub.f32 1.0, %v1203
    %v1205 = vmul.f32 %v1202, %v1204
    %v1206 = vadd.f32 %v1202, %v1205
    %vm1207 = vweird.f32 %v1201
    %vm1208 = vweird.f32 %v1202
    %vm1209 = vmor %vm1207, %vm1208
    %v1210 = vsel %vm1209, %v1202, %v1206
    %v1211 = vand.u32 2147483647, %v1201
    %vm1212 = vcmp.eq.f32.partialorder %v1211, 8.507059e+37
    %v1213 = vand.u32 %v1201, 2147483648
    %v1214 = vor.u32 1.1754944e-38, %v1213
    %v1215 = vsel %vm1212, %v1214, %v1210
    %v1216 = vmul.f32 1.0, %v1215
    %v1217 = vadd.f32 %v332, %v1181
    %v1218 = vxor.u32 %v1217, 2147483648
    %v1219 = vmul.f32 %v1218, 1.442695
    %v1220 = vpow.pop %v1219
    %v1221 = vadd.f32 %v1220, 1.0
    %v1222 = vrcp.pop %v1221
    %v1223 = vmul.f32 %v1221, %v1222
    %v1224 = vsub.f32 1.0, %v1223
    %v1225 = vmul.f32 %v1222, %v1224
    %v1226 = vadd.f32 %v1222, %v1225
    %vm1227 = vweird.f32 %v1221
    %vm1228 = vweird.f32 %v1222
    %vm1229 = vmor %vm1227, %vm1228
    %v1230 = vsel %vm1229, %v1222, %v1226
    %v1231 = vand.u32 2147483647, %v1221
    %vm1232 = vcmp.eq.f32.partialorder %v1231, 8.507059e+37
    %v1233 = vand.u32 %v1221, 2147483648
    %v1234 = vor.u32 1.1754944e-38, %v1233
    %v1235 = vsel %vm1232, %v1234, %v1230
    %v1236 = vmul.f32 1.0, %v1235
    %v1237 = vadd.f32 %v1194, %v397
    %v1238 = vmul.f32 %v1216, %v1237
    %v1239 = vadd.f32 %v361, %v1238
    %v1240 = vtanh.pop %v1239
    %v1241 = vsub.f32 1.0, %v1236
    %v1242 = vmul.f32 %v1241, %v1240
    %v1243 = vmul.f32 %v1236, %v1154
    %v1244 = vadd.f32 %v1242, %v1243
    %s1245 = scalar_lea.vmem [#allocation3], 56
    %1246 = vst [vmem:[%s1245] sm:$0xff] %v1244
    %1247 = vst [vmem:[#allocation2] sm:$0xff] %v1244
    %v1248 = vld [vmem:[#allocation3] sm:$0xff]
    %v1249 = vld [vmem:[#allocation3 + $0x8] sm:$0xff]
    %v1250 = vld [vmem:[#allocation3 + $0x10] sm:$0xff]
    %v1251 = vld [vmem:[#allocation3 + $0x18] sm:$0xff]
    %v1252 = vld [vmem:[#allocation3 + $0x20] sm:$0xff]
    %v1253 = vld [vmem:[#allocation3 + $0x28] sm:$0xff]
    %v1254 = vld [vmem:[#allocation3 + $0x30] sm:$0xff]
    %v1255 = vld [vmem:[#allocation3 + $0x38] sm:$0xff]
    %v1256 = vpack.c.bf16 %v1249, %v1248
    %v1257 = vpack.c.bf16 %v1251, %v1250
    %v1258 = vpack.c.bf16 %v1253, %v1252
    %v1259 = vpack.c.bf16 %v1255, %v1254
    %v1260 = vld [vmem:[%s5] sm:$0xf]
    %v1261 = vld [vmem:[%s5 + $0x4] sm:$0xf]
    %v1262 = vld [vmem:[%s5 + $0x8] sm:$0xf]
    %v1263 = vld [vmem:[%s5 + $0xc] sm:$0xf]
    %v1264 = vld [vmem:[%s5 + $0x10] sm:$0xf]
    %v1265 = vld [vmem:[%s5 + $0x14] sm:$0xf]
    %v1266 = vld [vmem:[%s5 + $0x18] sm:$0xf]
    %v1267 = vld [vmem:[%s5 + $0x1c] sm:$0xf]
    %v1268 = vld [vmem:[%s5 + $0x20] sm:$0xf]
    %v1269 = vld [vmem:[%s5 + $0x24] sm:$0xf]
    %v1270 = vld [vmem:[%s5 + $0x28] sm:$0xf]
    %v1271 = vld [vmem:[%s5 + $0x2c] sm:$0xf]
    %v1272 = vld [vmem:[%s5 + $0x30] sm:$0xf]
    %v1273 = vld [vmem:[%s5 + $0x34] sm:$0xf]
    %v1274 = vld [vmem:[%s5 + $0x38] sm:$0xf]
    %v1275 = vld [vmem:[%s5 + $0x3c] sm:$0xf]
    %v1276 = vld [vmem:[#allocation8] sm:$0x1]
    %v1278 = vperm.slane %v1276, 0
    %v1296 = vunpack.c.l.b16 %v1260
    %v1297 = vunpack.c.l.b16 %v1261
    %v1298 = vunpack.c.l.b16 %v1262
    %v1299 = vunpack.c.l.b16 %v1263
    %v1300 = vunpack.c.l.b16 %v1264
    %v1301 = vunpack.c.l.b16 %v1265
    %v1302 = vunpack.c.l.b16 %v1266
    %v1303 = vunpack.c.l.b16 %v1267
    %v1304 = vunpack.c.l.b16 %v1268
    %v1305 = vunpack.c.l.b16 %v1269
    %v1306 = vunpack.c.l.b16 %v1270
    %v1307 = vunpack.c.l.b16 %v1271
    %v1308 = vunpack.c.l.b16 %v1272
    %v1309 = vunpack.c.l.b16 %v1273
    %v1310 = vunpack.c.l.b16 %v1274
    %v1311 = vunpack.c.l.b16 %v1275
    %v1312 = vpack.c.b16 %v1297, %v1296
    %v1313 = vpack.c.b16 %v1299, %v1298
    %v1314 = vpack.c.b16 %v1301, %v1300
    %v1315 = vpack.c.b16 %v1303, %v1302
    %v1316 = vpack.c.b16 %v1305, %v1304
    %v1317 = vpack.c.b16 %v1307, %v1306
    %v1318 = vpack.c.b16 %v1309, %v1308
    %v1319 = vpack.c.b16 %v1311, %v1310
    %1328 = vmatpush.bf16.msra.mxu0 %v1319
    %1329 = vmatpush.bf16.msra.mxu0 %v1318
    %1330 = vmatpush.bf16.msra.mxu0 %v1317
    %1331 = vmatpush.bf16.msra.mxu0 %v1316
    %1332 = vmatpush.bf16.msra.mxu0 %v1315
    %1333 = vmatpush.bf16.msra.mxu0 %v1314
    %1334 = vmatpush.bf16.msra.mxu0 %v1313
    %1335 = vmatpush.bf16.msra.mxu0 %v1312
    %1336 = vmatmul.bf16.gmra.mxu0 %v1256
    %v1337 = vpop.f32.mrf.mxu0
    %v1338 = vadd.f32 %v1278, %v1337
    %v1339 = vpop.f32.mrf.mxu0
    %v1340 = vadd.f32 %v1278, %v1339
    %1341 = vmatmul.bf16.gmra.mxu0 %v1257
    %v1342 = vpop.f32.mrf.mxu0
    %v1343 = vadd.f32 %v1278, %v1342
    %v1344 = vpop.f32.mrf.mxu0
    %v1345 = vadd.f32 %v1278, %v1344
    %1346 = vmatmul.bf16.gmra.mxu0 %v1258
    %v1347 = vpop.f32.mrf.mxu0
    %v1348 = vadd.f32 %v1278, %v1347
    %v1349 = vpop.f32.mrf.mxu0
    %v1350 = vadd.f32 %v1278, %v1349
    %1351 = vmatmul.bf16.gmra.mxu0 %v1259
    %v1352 = vpop.f32.mrf.mxu0
    %v1353 = vadd.f32 %v1278, %v1352
    %v1354 = vpop.f32.mrf.mxu0
    %v1355 = vadd.f32 %v1278, %v1354
    %1356 = vdwg.mxu0
    %1357 = vst [vmem:[%s7] sm:$0xff] %v1338
    %1358 = vst [vmem:[%s7 + $0x8] sm:$0xff] %v1340
    %1359 = vst [vmem:[%s7 + $0x10] sm:$0xff] %v1343
    %1360 = vst [vmem:[%s7 + $0x18] sm:$0xff] %v1345
    %1361 = vst [vmem:[%s7 + $0x20] sm:$0xff] %v1348
    %1362 = vst [vmem:[%s7 + $0x28] sm:$0xff] %v1350
    %1363 = vst [vmem:[%s7 + $0x30] sm:$0xff] %v1353
    %1364 = vst [vmem:[%s7 + $0x38] sm:$0xff] %v1355
    // Predicated region
    $region46: #{simple_gru_forward.3} parent=1 // pred_check
      _
    $region47: #{simple_gru_forward.3} parent=1 // pred_check_branch
      %1366 = sbr.rel (0) target = $region49
    $region48: #{simple_gru_forward.3} parent=1 // pred_region
      _
    $region49: #{simple_gru_forward.3} parent=1 // pred_fallthru
      _
    // Predicated region
    $region50: #{simple_gru_forward.3} parent=1 // pred_check
      _
    $region51: #{simple_gru_forward.3} parent=1 // pred_check_branch
      %1368 = sbr.rel (0) target = $region53
    $region52: #{simple_gru_forward.3} parent=1 // pred_region
      _
    $region53: #{simple_gru_forward.3} parent=1 // pred_fallthru
      _
    %1369 = vsyncpa [#allocation5], 1
    %1370 = vsyncpa [#allocation7], 1

</llo_original>
